<compile_context>
chip_gen: v7x
topology: tpu7x:2x2x1
jax: 0.10.0
libtpu: 0.0.40
codegen_flags: <defaults>
</compile_context>

<pallas_src>
import functools

import jax
import jax.numpy as jnp
from jax.experimental import pallas as pl
from jax.experimental.pallas import tpu as pltpu


def _block_kernel(x_ref,
                  ln1_g_ref, ln1_b_ref,
                  wqkv_ref, wproj_ref, bproj_ref,
                  ln2_g_ref, ln2_b_ref,
                  w1_ref, b1_ref, w2_ref, b2_ref,
                  o_ref, *, seq_len, n_head, head_size, flat_out):
    M, C = x_ref.shape                    # M = block_b * T rows of the residual stream
    T, H, hs = seq_len, n_head, head_size
    TB = M // T

    x2d = x_ref[...].astype(jnp.float32)                    # (M, C) f32

    def layer_norm(v, gamma, beta):                          # eps matches torch
        mu = jnp.mean(v, axis=-1, keepdims=True)
        d = v - mu
        var = jnp.mean(d * d, axis=-1, keepdims=True)
        return d * jax.lax.rsqrt(var + 1e-5) * gamma + beta

    # ---------------- attention branch ----------------
    h1 = layer_norm(x2d, ln1_g_ref[...].astype(jnp.float32),
                    ln1_b_ref[...].astype(jnp.float32))      # (M, C)

    # Fused Q|K|V projection (bias=False): one MXU pass over the shared LHS,
    # f32 accumulation, then a single f32->bf16 cast of the whole (M, 3C) slab.
    qkv = jnp.dot(h1.astype(jnp.bfloat16), wqkv_ref[...],
                  preferred_element_type=jnp.float32).astype(jnp.bfloat16)

    def gather_heads(section):
        # Heads live in 64-wide lane groups of each C-wide section; move them to
        # the leading (batch) dim so both attention matmuls are single batched
        # einsums (leading-dim concat only -- no lane-dim concat / relayout).
        base = section * C
        return jnp.concatenate(
            [qkv[:, base + h * hs: base + (h + 1) * hs].reshape(TB, T, hs)
             for h in range(H)],
            axis=0)                                          # (H*TB, T, hs), head-major

    q, k, v = gather_heads(0), gather_heads(1), gather_heads(2)

    scale = 1.0 / (hs ** 0.5)
    rows = jax.lax.broadcasted_iota(jnp.int32, (T, T), 0)
    cols = jax.lax.broadcasted_iota(jnp.int32, (T, T), 1)
    causal = (rows >= cols)[None, :, :]                      # (1, T, T)

    s = jnp.einsum('bqd,bkd->bqk', q, k,
                   preferred_element_type=jnp.float32) * scale   # (H*TB, T, T)
    s = jnp.where(causal, s, -1e30)
    s = s - jnp.max(s, axis=-1, keepdims=True)
    p = jnp.exp(s)
    # NOTE: approx reciprocal (EUP) is fine at eval tolerance; switch to an exact
    # divide if this kernel is reused for training / tight-accuracy inference.
    p = p * pl.reciprocal(jnp.sum(p, axis=-1, keepdims=True), approx=True)
    # TODO(synk): attention-weight dropout (train mode); identity in eval.

    ctx = jnp.einsum('bqk,bkd->bqd', p.astype(jnp.bfloat16), v,
                     preferred_element_type=jnp.float32)     # (H*TB, T, hs)
    ctx = ctx.astype(jnp.bfloat16)                           # one cast for the MXU

    # Folded output projection: proj = sum_h ctx_h @ Wproj[h*hs:(h+1)*hs, :].
    # wproj arrives pre-reshaped as (H, hs, C), so no lane-dim concat is needed.
    proj = bproj_ref[...].astype(jnp.float32)                # (1, C), broadcasts
    for h in range(H):                                       # static, 3 heads
        ctx_h = ctx[h * TB:(h + 1) * TB].reshape(M, hs)      # leading collapse only
        proj = proj + jnp.dot(ctx_h, wproj_ref[h],
                              preferred_element_type=jnp.float32)
    # TODO(synk): projection dropout (train mode); identity in eval.
    x1 = x2d + proj                                          # residual 1

    # ---------------- feed-forward branch ----------------
    h2 = layer_norm(x1, ln2_g_ref[...].astype(jnp.float32),
                    ln2_b_ref[...].astype(jnp.float32))
    hid = (jnp.dot(h2.astype(jnp.bfloat16), w1_ref[...],
                   preferred_element_type=jnp.float32)
           + b1_ref[...].astype(jnp.float32))
    hid = jnp.maximum(hid, 0.0)
    ff = (jnp.dot(hid.astype(jnp.bfloat16), w2_ref[...],
                  preferred_element_type=jnp.float32)
          + b2_ref[...].astype(jnp.float32))
    # TODO(synk): FFN dropout (train mode); identity in eval.

    out = x1 + ff                                            # (M, C)
    if flat_out:
        # Lane-dense epilogue: o_ref is (block_b, T*C) so every store row is a
        # run of full 128-lane vregs (no 64-lane masked tail at C=192).
        o_ref[...] = out.reshape(TB, T * C).astype(o_ref.dtype)
    else:
        o_ref[...] = out.astype(o_ref.dtype)


def _pick_block_b(B, T):
    """One big grid step by default (single-TC chips pay ~0.35us/step overhead on
    tiny-M matmuls); split into exactly two 'parallel' steps for v7x megacore only
    when each half still feeds the MXU >= 256 rows and keeps (8,128) divisibility."""
    half = B // 2
    if B % 2 == 0 and half * T >= 256 and half % 8 == 0:
        return half
    return B


def _derive_vmem_limit(resident_arrays, m_rows, c, weight_bufs):
    """Footprint-based VMEM request: resident weights x their buffer count,
    double-buffered x/out row tiles, f32 intermediates, plus headroom for Mosaic
    internal scratch.  No artificial floor; capped well under v7x's 64 MiB."""
    w_bytes = sum(int(a.size) * a.dtype.itemsize for a in resident_arrays)
    io_bytes = 2 * 2 * m_rows * c * 4                 # x + out tiles, double-buffered
    act_bytes = m_rows * (3 * c + 4 * c + 4 * c) * 4  # qkv + ffn hidden + slack (f32)
    total = weight_bufs * w_bytes + io_bytes + 2 * act_bytes + (4 << 20)
    cap = 48 << 20
    try:
        cap = min(cap, (pltpu.get_tpu_info().vmem_capacity_bytes * 3) // 4)
    except Exception:
        pass                                          # keep the static 48 MiB cap
    return int(min(total, cap))


def transformer_block(x, params, *, block_b=None):
    """Forward pass of `Block` (eval semantics). x: [B, T, C] float32."""
    B, T, C = x.shape
    H = int(params["n_head"])
    hs = C // H
    if block_b is None:
        block_b = _pick_block_b(B, T)
    assert B % block_b == 0, "batch must be divisible by block_b"

    # bf16 copies of the matmul weights (MXU path); biases / LN params stay f32.
    wqkv = params["wqkv"].astype(jnp.bfloat16)                       # (C, 3C)
    wproj = params["wproj"].astype(jnp.bfloat16).reshape(H, hs, C)   # per-head slabs
    w1 = params["w1"].astype(jnp.bfloat16)
    w2 = params["w2"].astype(jnp.bfloat16)

    resident = [params["ln1_g"], params["ln1_b"],
                wqkv, wproj, params["bproj"],
                params["ln2_g"], params["ln2_b"],
                w1, params["b1"], w2, params["b2"]]

    x2d = x.reshape(B * T, C)            # free wrapper-side reshape (XLA)
    m_rows = block_b * T
    grid = (B // block_b,)

    def build(flat_out, weight_bufs):
        def res_spec(a):                 # weight stays resident across steps
            zeros = (0,) * a.ndim
            if weight_bufs is None:
                return pl.BlockSpec(a.shape, lambda i: zeros)
            return pl.BlockSpec(a.shape, lambda i: zeros,
                                pipeline_mode=pl.Buffered(weight_bufs))

        in_specs = ([pl.BlockSpec((m_rows, C), lambda i: (i, 0))]
                    + [res_spec(a) for a in resident])
        if flat_out:
            out_shape = jax.ShapeDtypeStruct((B, T * C), x.dtype)
            out_spec = pl.BlockSpec((block_b, T * C), lambda i: (i, 0))
        else:
            out_shape = jax.ShapeDtypeStruct((B * T, C), x.dtype)
            out_spec = pl.BlockSpec((m_rows, C), lambda i: (i, 0))

        kernel = functools.partial(_block_kernel, seq_len=T, n_head=H,
                                   head_size=hs, flat_out=flat_out)
        return pl.pallas_call(
            kernel,
            out_shape=out_shape,
            grid_spec=pltpu.PrefetchScalarGridSpec(
                num_scalar_prefetch=0,
                grid=grid,
                in_specs=in_specs,
                out_specs=out_spec,
            ),
            compiler_params=pltpu.CompilerParams(
                dimension_semantics=("parallel",),   # megacore sharding on v7x
                vmem_limit_bytes=_derive_vmem_limit(
                    resident, m_rows, C, weight_bufs if weight_bufs else 2),
            ),
        )

    try:
        # Optimized configuration: lane-dense (block_b, T*C) stores +
        # single-buffered resident weights (constant index_map, fetched once).
        out = build(flat_out=True, weight_bufs=1)(x2d, *resident)
        out = jax.block_until_ready(out)
    except Exception:
        # Portability guard: some Mosaic versions reject the in-kernel
        # (M, C) -> (block_b, T*C) relayout or pipeline_mode=Buffered(1);
        # fall back to the plain (M, C) output tile with default buffering.
        out = build(flat_out=False, weight_bufs=None)(x2d, *resident)
    return out.reshape(B, T, C)


def init_params(key, n_embd, n_head):
    """PyTorch-Linear-style init: U(-1/sqrt(fan_in), 1/sqrt(fan_in)).
    Weights stored (in, out) so the kernel computes rows @ W (+ b)."""
    hidden = 4 * n_embd
    keys = jax.random.split(key, 13)

    def uni(k, shape, fan_in):
        bound = 1.0 / (fan_in ** 0.5)
        return jax.random.uniform(k, shape, jnp.float32, -bound, bound)

    # Per-head q/k/v projections (bias=False), packed as (C, 3C) = [Q | K | V];
    # within each C-wide group, head h owns columns h*hs:(h+1)*hs.
    wq = uni(keys[0], (n_embd, n_embd), n_embd)
    wk = uni(keys[1], (n_embd, n_embd), n_embd)
    wv = uni(keys[2], (n_embd, n_embd), n_embd)

    return {
        "n_head": n_head,
        "ln1_g": 1.0 + 0.1 * jax.random.normal(keys[3], (1, n_embd), jnp.float32),
        "ln1_b": 0.1 * jax.random.normal(keys[4], (1, n_embd), jnp.float32),
        "wqkv": jnp.concatenate([wq, wk, wv], axis=1),
        "wproj": uni(keys[5], (n_embd, n_embd), n_embd),
        "bproj": uni(keys[6], (1, n_embd), n_embd),
        "ln2_g": 1.0 + 0.1 * jax.random.normal(keys[7], (1, n_embd), jnp.float32),
        "ln2_b": 0.1 * jax.random.normal(keys[8], (1, n_embd), jnp.float32),
        "w1": uni(keys[9], (n_embd, hidden), n_embd),
        "b1": uni(keys[10], (1, hidden), n_embd),
        "w2": uni(keys[11], (hidden, n_embd), hidden),
        "b2": uni(keys[12], (1, n_embd), hidden),
    }


def _reference(x, p):
    """Pure-JAX f32 reference matching the PyTorch Block forward (eval mode)."""
    B, T, C = x.shape
    n_head = int(p["n_head"])
    hs = C // n_head

    def ln(v, g, b):
        mu = v.mean(-1, keepdims=True)
        var = ((v - mu) ** 2).mean(-1, keepdims=True)
        return (v - mu) / jnp.sqrt(var + 1e-5) * g + b

    h1 = ln(x, p["ln1_g"], p["ln1_b"])
    qkv = h1 @ p["wqkv"]
    q, k, v = qkv[..., :C], qkv[..., C:2 * C], qkv[..., 2 * C:]
    mask = jnp.tril(jnp.ones((T, T), dtype=bool))
    outs = []
    for h in range(n_head):
        qh, kh, vh = (q[..., h * hs:(h + 1) * hs],
                      k[..., h * hs:(h + 1) * hs],
                      v[..., h * hs:(h + 1) * hs])
        s = jnp.einsum('btd,bsd->bts', qh, kh) / (hs ** 0.5)
        s = jnp.where(mask, s, -jnp.inf)
        outs.append(jnp.einsum('bts,bsd->btd', jax.nn.softmax(s, axis=-1), vh))
    attn = jnp.concatenate(outs, axis=-1) @ p["wproj"] + p["bproj"]
    x1 = x + attn
    h2 = ln(x1, p["ln2_g"], p["ln2_b"])
    ff = jnp.maximum(h2 @ p["w1"] + p["b1"], 0.0) @ p["w2"] + p["b2"]
    return x1 + ff


if __name__ == "__main__":
    n_embd = 192          # matches the module config
    n_head = 3
    B, T = 2, 16          # T <= block_size (64)

    key = jax.random.PRNGKey(0)
    kx, kp = jax.random.split(key)
    x = jax.random.normal(kx, (B, T, n_embd), dtype=jnp.float32)
    params = init_params(kp, n_embd, n_head)

    out = transformer_block(x, params)
    out = jax.block_until_ready(out)

    ref = _reference(x, params)
    assert out.shape == (B, T, n_embd)
    max_err = float(jnp.max(jnp.abs(out - ref)))
    # bf16 MXU path vs f32 reference -> loosened tolerance per review.
    assert jnp.allclose(out, ref, atol=3e-2, rtol=3e-2), \
        f"mismatch vs reference (max abs err {max_err})"

    print("KERNEL_OK")
</pallas_src>

<mosaic_0001>
module attributes {stable_mosaic.version = 11 : i64} {
  func.func @_block_kernel(%arg0: i32, %arg1: memref<32x192xf32, #tpu.memory_space<vmem>>, %arg2: memref<1x192xf32, #tpu.memory_space<vmem>>, %arg3: memref<1x192xf32, #tpu.memory_space<vmem>>, %arg4: memref<192x576xbf16, #tpu.memory_space<vmem>>, %arg5: memref<3x64x192xbf16, #tpu.memory_space<vmem>>, %arg6: memref<1x192xf32, #tpu.memory_space<vmem>>, %arg7: memref<1x192xf32, #tpu.memory_space<vmem>>, %arg8: memref<1x192xf32, #tpu.memory_space<vmem>>, %arg9: memref<192x768xbf16, #tpu.memory_space<vmem>>, %arg10: memref<1x768xf32, #tpu.memory_space<vmem>>, %arg11: memref<768x192xbf16, #tpu.memory_space<vmem>>, %arg12: memref<1x192xf32, #tpu.memory_space<vmem>>, %arg13: memref<2x3072xf32, #tpu.memory_space<vmem>>) attributes {dimension_semantics = [#tpu.dimension_semantics<parallel>], iteration_bounds = array<i64: 1>, scalar_prefetch = 0 : i64, scratch_operands = 0 : i64, tpu.core_type = #tpu.core_type<tc>, window_params = [{transform_indices = @transform_0, window_bounds = array<i64: 32, 192>}, {pipeline_mode = #tpu.pipeline_mode<synchronous>, transform_indices = @transform_1, window_bounds = array<i64: 1, 192>}, {pipeline_mode = #tpu.pipeline_mode<synchronous>, transform_indices = @transform_2, window_bounds = array<i64: 1, 192>}, {pipeline_mode = #tpu.pipeline_mode<synchronous>, transform_indices = @transform_3, window_bounds = array<i64: 192, 576>}, {pipeline_mode = #tpu.pipeline_mode<synchronous>, transform_indices = @transform_4, window_bounds = array<i64: 3, 64, 192>}, {pipeline_mode = #tpu.pipeline_mode<synchronous>, transform_indices = @transform_5, window_bounds = array<i64: 1, 192>}, {pipeline_mode = #tpu.pipeline_mode<synchronous>, transform_indices = @transform_6, window_bounds = array<i64: 1, 192>}, {pipeline_mode = #tpu.pipeline_mode<synchronous>, transform_indices = @transform_7, window_bounds = array<i64: 1, 192>}, {pipeline_mode = #tpu.pipeline_mode<synchronous>, transform_indices = @transform_8, window_bounds = array<i64: 192, 768>}, {pipeline_mode = #tpu.pipeline_mode<synchronous>, transform_indices = @transform_9, window_bounds = array<i64: 1, 768>}, {pipeline_mode = #tpu.pipeline_mode<synchronous>, transform_indices = @transform_10, window_bounds = array<i64: 768, 192>}, {pipeline_mode = #tpu.pipeline_mode<synchronous>, transform_indices = @transform_11, window_bounds = array<i64: 1, 192>}, {transform_indices = @transform_12, window_bounds = array<i64: 2, 3072>}]} {
    %c0 = arith.constant 0 : index
    %c0_0 = arith.constant 0 : index
    %0 = vector.load %arg1[%c0, %c0_0] : memref<32x192xf32, #tpu.memory_space<vmem>>, vector<32x192xf32>
    %c0_1 = arith.constant 0 : index
    %c0_2 = arith.constant 0 : index
    %1 = vector.load %arg2[%c0_1, %c0_2] : memref<1x192xf32, #tpu.memory_space<vmem>>, vector<1x192xf32>
    %c0_3 = arith.constant 0 : index
    %c0_4 = arith.constant 0 : index
    %2 = vector.load %arg3[%c0_3, %c0_4] : memref<1x192xf32, #tpu.memory_space<vmem>>, vector<1x192xf32>
    %cst = arith.constant dense<0.000000e+00> : vector<32xf32>
    %3 = vector.multi_reduction <add>, %0, %cst [1] : vector<32x192xf32> to vector<32xf32>
    %4 = vector.shape_cast %3 : vector<32xf32> to vector<32x1xf32>
    %cst_5 = arith.constant 1.920000e+02 : f32
    %5 = vector.broadcast %cst_5 : f32 to vector<32x1xf32>
    %6 = arith.divf %4, %5 : vector<32x1xf32>
    %7 = vector.broadcast %6 : vector<32x1xf32> to vector<32x192xf32>
    %8 = arith.subf %0, %7 : vector<32x192xf32>
    %9 = arith.mulf %8, %8 : vector<32x192xf32>
    %cst_6 = arith.constant dense<0.000000e+00> : vector<32xf32>
    %10 = vector.multi_reduction <add>, %9, %cst_6 [1] : vector<32x192xf32> to vector<32xf32>
    %11 = vector.shape_cast %10 : vector<32xf32> to vector<32x1xf32>
    %cst_7 = arith.constant 1.920000e+02 : f32
    %12 = vector.broadcast %cst_7 : f32 to vector<32x1xf32>
    %13 = arith.divf %11, %12 : vector<32x1xf32>
    %cst_8 = arith.constant 9.99999974E-6 : f32
    %14 = vector.broadcast %cst_8 : f32 to vector<32x1xf32>
    %15 = arith.addf %13, %14 : vector<32x1xf32>
    %16 = math.rsqrt %15 : vector<32x1xf32>
    %17 = vector.broadcast %16 : vector<32x1xf32> to vector<32x192xf32>
    %18 = arith.mulf %8, %17 : vector<32x192xf32>
    %19 = vector.broadcast %1 : vector<1x192xf32> to vector<32x192xf32>
    %20 = arith.mulf %18, %19 : vector<32x192xf32>
    %21 = vector.broadcast %2 : vector<1x192xf32> to vector<32x192xf32>
    %22 = arith.addf %20, %21 : vector<32x192xf32>
    %23 = arith.truncf %22 : vector<32x192xf32> to vector<32x192xbf16>
    %c0_9 = arith.constant 0 : index
    %c0_10 = arith.constant 0 : index
    %24 = vector.load %arg4[%c0_9, %c0_10] : memref<192x576xbf16, #tpu.memory_space<vmem>>, vector<192x576xbf16>
    %cst_11 = arith.constant dense<0.000000e+00> : vector<32x576xf32>
    %25 = tpu.matmul %23, %24, %cst_11 {dimension_numbers = #tpu.dot_dimension_numbers<[1], [0], [0], [1], [0, 0, 1, 1], [], []>} : vector<32x192xbf16>, vector<192x576xbf16>, vector<32x576xf32> -> vector<32x576xf32>
    %26 = arith.truncf %25 : vector<32x576xf32> to vector<32x576xbf16>
    %27 = vector.extract_strided_slice %26 {offsets = [0, 0], sizes = [32, 64], strides = [1, 1]} : vector<32x576xbf16> to vector<32x64xbf16>
    %28 = vector.shape_cast %27 : vector<32x64xbf16> to vector<2x16x64xbf16>
    %29 = vector.extract_strided_slice %26 {offsets = [0, 64], sizes = [32, 64], strides = [1, 1]} : vector<32x576xbf16> to vector<32x64xbf16>
    %30 = vector.shape_cast %29 : vector<32x64xbf16> to vector<2x16x64xbf16>
    %31 = vector.extract_strided_slice %26 {offsets = [0, 128], sizes = [32, 64], strides = [1, 1]} : vector<32x576xbf16> to vector<32x64xbf16>
    %32 = vector.shape_cast %31 : vector<32x64xbf16> to vector<2x16x64xbf16>
    %33 = tpu.concatenate %28, %30, %32 in 0 : vector<2x16x64xbf16>, vector<2x16x64xbf16>, vector<2x16x64xbf16> -> vector<6x16x64xbf16>
    %34 = vector.extract_strided_slice %26 {offsets = [0, 192], sizes = [32, 64], strides = [1, 1]} : vector<32x576xbf16> to vector<32x64xbf16>
    %35 = vector.shape_cast %34 : vector<32x64xbf16> to vector<2x16x64xbf16>
    %36 = vector.extract_strided_slice %26 {offsets = [0, 256], sizes = [32, 64], strides = [1, 1]} : vector<32x576xbf16> to vector<32x64xbf16>
    %37 = vector.shape_cast %36 : vector<32x64xbf16> to vector<2x16x64xbf16>
    %38 = vector.extract_strided_slice %26 {offsets = [0, 320], sizes = [32, 64], strides = [1, 1]} : vector<32x576xbf16> to vector<32x64xbf16>
    %39 = vector.shape_cast %38 : vector<32x64xbf16> to vector<2x16x64xbf16>
    %40 = tpu.concatenate %35, %37, %39 in 0 : vector<2x16x64xbf16>, vector<2x16x64xbf16>, vector<2x16x64xbf16> -> vector<6x16x64xbf16>
    %41 = vector.extract_strided_slice %26 {offsets = [0, 384], sizes = [32, 64], strides = [1, 1]} : vector<32x576xbf16> to vector<32x64xbf16>
    %42 = vector.shape_cast %41 : vector<32x64xbf16> to vector<2x16x64xbf16>
    %43 = vector.extract_strided_slice %26 {offsets = [0, 448], sizes = [32, 64], strides = [1, 1]} : vector<32x576xbf16> to vector<32x64xbf16>
    %44 = vector.shape_cast %43 : vector<32x64xbf16> to vector<2x16x64xbf16>
    %45 = vector.extract_strided_slice %26 {offsets = [0, 512], sizes = [32, 64], strides = [1, 1]} : vector<32x576xbf16> to vector<32x64xbf16>
    %46 = vector.shape_cast %45 : vector<32x64xbf16> to vector<2x16x64xbf16>
    %47 = tpu.concatenate %42, %44, %46 in 0 : vector<2x16x64xbf16>, vector<2x16x64xbf16>, vector<2x16x64xbf16> -> vector<6x16x64xbf16>
    %48 = tpu.iota {dimensions = array<i32: 0>} : vector<16x16xi32>
    %49 = tpu.iota {dimensions = array<i32: 1>} : vector<16x16xi32>
    %50 = arith.cmpi sge, %48, %49 : vector<16x16xi32>
    %51 = vector.shape_cast %50 : vector<16x16xi1> to vector<1x16x16xi1>
    "tpu.trace_start"() <{level = 10 : i32, message = "bqd,bkd->bqk"}> : () -> ()
    %cst_12 = arith.constant dense<0.000000e+00> : vector<6x16x16xf32>
    %52 = tpu.matmul %33, %40, %cst_12 {dimension_numbers = #tpu.dot_dimension_numbers<[2], [2], [1], [1], [0, 0, 0, 1, 1, 1], [0], [0]>} : vector<6x16x64xbf16>, vector<6x16x64xbf16>, vector<6x16x16xf32> -> vector<6x16x16xf32>
    "tpu.trace_stop"() : () -> ()
    %cst_13 = arith.constant 1.250000e-01 : f32
    %53 = vector.broadcast %cst_13 : f32 to vector<6x16x16xf32>
    %54 = arith.mulf %52, %53 : vector<6x16x16xf32>
    %cst_14 = arith.constant -1.000000e+30 : f32
    %55 = vector.shape_cast %51 : vector<1x16x16xi1> to vector<1x16x16xi1>
    %56 = vector.broadcast %55 : vector<1x16x16xi1> to vector<6x16x16xi1>
    %57 = vector.broadcast %cst_14 : f32 to vector<6x16x16xf32>
    %58 = arith.select %56, %54, %57 : vector<6x16x16xi1>, vector<6x16x16xf32>
    %cst_15 = arith.constant dense<0xFF800000> : vector<6x16xf32>
    %59 = vector.multi_reduction <maximumf>, %58, %cst_15 [2] : vector<6x16x16xf32> to vector<6x16xf32>
    %60 = vector.shape_cast %59 : vector<6x16xf32> to vector<6x16x1xf32>
    %61 = vector.broadcast %60 : vector<6x16x1xf32> to vector<6x16x16xf32>
    %62 = arith.subf %58, %61 : vector<6x16x16xf32>
    %63 = math.exp %62 : vector<6x16x16xf32>
    %cst_16 = arith.constant dense<0.000000e+00> : vector<6x16xf32>
    %64 = vector.multi_reduction <add>, %63, %cst_16 [2] : vector<6x16x16xf32> to vector<6x16xf32>
    %65 = vector.shape_cast %64 : vector<6x16xf32> to vector<6x16x1xf32>
    %66 = tpu.reciprocal %65 {approx = true} : vector<6x16x1xf32> -> vector<6x16x1xf32>
    %67 = vector.broadcast %66 : vector<6x16x1xf32> to vector<6x16x16xf32>
    %68 = arith.mulf %63, %67 : vector<6x16x16xf32>
    %69 = arith.truncf %68 : vector<6x16x16xf32> to vector<6x16x16xbf16>
    "tpu.trace_start"() <{level = 10 : i32, message = "bqk,bkd->bqd"}> : () -> ()
    %cst_17 = arith.constant dense<0.000000e+00> : vector<6x16x64xf32>
    %70 = tpu.matmul %69, %47, %cst_17 {dimension_numbers = #tpu.dot_dimension_numbers<[2], [1], [1], [2], [0, 0, 0, 1, 1, 2], [0], [0]>} : vector<6x16x16xbf16>, vector<6x16x64xbf16>, vector<6x16x64xf32> -> vector<6x16x64xf32>
    "tpu.trace_stop"() : () -> ()
    %71 = arith.truncf %70 : vector<6x16x64xf32> to vector<6x16x64xbf16>
    %c0_18 = arith.constant 0 : index
    %c0_19 = arith.constant 0 : index
    %72 = vector.load %arg6[%c0_18, %c0_19] : memref<1x192xf32, #tpu.memory_space<vmem>>, vector<1x192xf32>
    %73 = vector.extract_strided_slice %71 {offsets = [0, 0, 0], sizes = [2, 16, 64], strides = [1, 1, 1]} : vector<6x16x64xbf16> to vector<2x16x64xbf16>
    %74 = vector.shape_cast %73 : vector<2x16x64xbf16> to vector<32x64xbf16>
    %c0_20 = arith.constant 0 : index
    %c0_21 = arith.constant 0 : index
    %c0_22 = arith.constant 0 : index
    %75 = vector.load %arg5[%c0_20, %c0_21, %c0_22] : memref<3x64x192xbf16, #tpu.memory_space<vmem>>, vector<1x64x192xbf16>
    %76 = vector.shape_cast %75 : vector<1x64x192xbf16> to vector<64x192xbf16>
    %cst_23 = arith.constant dense<0.000000e+00> : vector<32x192xf32>
    %77 = tpu.matmul %74, %76, %cst_23 {dimension_numbers = #tpu.dot_dimension_numbers<[1], [0], [0], [1], [0, 0, 1, 1], [], []>} : vector<32x64xbf16>, vector<64x192xbf16>, vector<32x192xf32> -> vector<32x192xf32>
    %78 = vector.broadcast %72 : vector<1x192xf32> to vector<32x192xf32>
    %79 = arith.addf %78, %77 : vector<32x192xf32>
    %80 = vector.extract_strided_slice %71 {offsets = [2, 0, 0], sizes = [2, 16, 64], strides = [1, 1, 1]} : vector<6x16x64xbf16> to vector<2x16x64xbf16>
    %81 = vector.shape_cast %80 : vector<2x16x64xbf16> to vector<32x64xbf16>
    %c1 = arith.constant 1 : index
    %c0_24 = arith.constant 0 : index
    %c0_25 = arith.constant 0 : index
    %82 = vector.load %arg5[%c1, %c0_24, %c0_25] : memref<3x64x192xbf16, #tpu.memory_space<vmem>>, vector<1x64x192xbf16>
    %83 = vector.shape_cast %82 : vector<1x64x192xbf16> to vector<64x192xbf16>
    %cst_26 = arith.constant dense<0.000000e+00> : vector<32x192xf32>
    %84 = tpu.matmul %81, %83, %cst_26 {dimension_numbers = #tpu.dot_dimension_numbers<[1], [0], [0], [1], [0, 0, 1, 1], [], []>} : vector<32x64xbf16>, vector<64x192xbf16>, vector<32x192xf32> -> vector<32x192xf32>
    %85 = arith.addf %79, %84 : vector<32x192xf32>
    %86 = vector.extract_strided_slice %71 {offsets = [4, 0, 0], sizes = [2, 16, 64], strides = [1, 1, 1]} : vector<6x16x64xbf16> to vector<2x16x64xbf16>
    %87 = vector.shape_cast %86 : vector<2x16x64xbf16> to vector<32x64xbf16>
    %c2 = arith.constant 2 : index
    %c0_27 = arith.constant 0 : index
    %c0_28 = arith.constant 0 : index
    %88 = vector.load %arg5[%c2, %c0_27, %c0_28] : memref<3x64x192xbf16, #tpu.memory_space<vmem>>, vector<1x64x192xbf16>
    %89 = vector.shape_cast %88 : vector<1x64x192xbf16> to vector<64x192xbf16>
    %cst_29 = arith.constant dense<0.000000e+00> : vector<32x192xf32>
    %90 = tpu.matmul %87, %89, %cst_29 {dimension_numbers = #tpu.dot_dimension_numbers<[1], [0], [0], [1], [0, 0, 1, 1], [], []>} : vector<32x64xbf16>, vector<64x192xbf16>, vector<32x192xf32> -> vector<32x192xf32>
    %91 = arith.addf %85, %90 : vector<32x192xf32>
    %92 = arith.addf %0, %91 : vector<32x192xf32>
    %c0_30 = arith.constant 0 : index
    %c0_31 = arith.constant 0 : index
    %93 = vector.load %arg7[%c0_30, %c0_31] : memref<1x192xf32, #tpu.memory_space<vmem>>, vector<1x192xf32>
    %c0_32 = arith.constant 0 : index
    %c0_33 = arith.constant 0 : index
    %94 = vector.load %arg8[%c0_32, %c0_33] : memref<1x192xf32, #tpu.memory_space<vmem>>, vector<1x192xf32>
    %cst_34 = arith.constant dense<0.000000e+00> : vector<32xf32>
    %95 = vector.multi_reduction <add>, %92, %cst_34 [1] : vector<32x192xf32> to vector<32xf32>
    %96 = vector.shape_cast %95 : vector<32xf32> to vector<32x1xf32>
    %cst_35 = arith.constant 1.920000e+02 : f32
    %97 = vector.broadcast %cst_35 : f32 to vector<32x1xf32>
    %98 = arith.divf %96, %97 : vector<32x1xf32>
    %99 = vector.broadcast %98 : vector<32x1xf32> to vector<32x192xf32>
    %100 = arith.subf %92, %99 : vector<32x192xf32>
    %101 = arith.mulf %100, %100 : vector<32x192xf32>
    %cst_36 = arith.constant dense<0.000000e+00> : vector<32xf32>
    %102 = vector.multi_reduction <add>, %101, %cst_36 [1] : vector<32x192xf32> to vector<32xf32>
    %103 = vector.shape_cast %102 : vector<32xf32> to vector<32x1xf32>
    %cst_37 = arith.constant 1.920000e+02 : f32
    %104 = vector.broadcast %cst_37 : f32 to vector<32x1xf32>
    %105 = arith.divf %103, %104 : vector<32x1xf32>
    %cst_38 = arith.constant 9.99999974E-6 : f32
    %106 = vector.broadcast %cst_38 : f32 to vector<32x1xf32>
    %107 = arith.addf %105, %106 : vector<32x1xf32>
    %108 = math.rsqrt %107 : vector<32x1xf32>
    %109 = vector.broadcast %108 : vector<32x1xf32> to vector<32x192xf32>
    %110 = arith.mulf %100, %109 : vector<32x192xf32>
    %111 = vector.broadcast %93 : vector<1x192xf32> to vector<32x192xf32>
    %112 = arith.mulf %110, %111 : vector<32x192xf32>
    %113 = vector.broadcast %94 : vector<1x192xf32> to vector<32x192xf32>
    %114 = arith.addf %112, %113 : vector<32x192xf32>
    %115 = arith.truncf %114 : vector<32x192xf32> to vector<32x192xbf16>
    %c0_39 = arith.constant 0 : index
    %c0_40 = arith.constant 0 : index
    %116 = vector.load %arg9[%c0_39, %c0_40] : memref<192x768xbf16, #tpu.memory_space<vmem>>, vector<192x768xbf16>
    %cst_41 = arith.constant dense<0.000000e+00> : vector<32x768xf32>
    %117 = tpu.matmul %115, %116, %cst_41 {dimension_numbers = #tpu.dot_dimension_numbers<[1], [0], [0], [1], [0, 0, 1, 1], [], []>} : vector<32x192xbf16>, vector<192x768xbf16>, vector<32x768xf32> -> vector<32x768xf32>
    %c0_42 = arith.constant 0 : index
    %c0_43 = arith.constant 0 : index
    %118 = vector.load %arg10[%c0_42, %c0_43] : memref<1x768xf32, #tpu.memory_space<vmem>>, vector<1x768xf32>
    %119 = vector.broadcast %118 : vector<1x768xf32> to vector<32x768xf32>
    %120 = arith.addf %117, %119 : vector<32x768xf32>
    %cst_44 = arith.constant 0.000000e+00 : f32
    %121 = vector.broadcast %cst_44 : f32 to vector<32x768xf32>
    %122 = arith.maximumf %120, %121 : vector<32x768xf32>
    %123 = arith.truncf %122 : vector<32x768xf32> to vector<32x768xbf16>
    %c0_45 = arith.constant 0 : index
    %c0_46 = arith.constant 0 : index
    %124 = vector.load %arg11[%c0_45, %c0_46] : memref<768x192xbf16, #tpu.memory_space<vmem>>, vector<768x192xbf16>
    %cst_47 = arith.constant dense<0.000000e+00> : vector<32x192xf32>
    %125 = tpu.matmul %123, %124, %cst_47 {dimension_numbers = #tpu.dot_dimension_numbers<[1], [0], [0], [1], [0, 0, 1, 1], [], []>} : vector<32x768xbf16>, vector<768x192xbf16>, vector<32x192xf32> -> vector<32x192xf32>
    %c0_48 = arith.constant 0 : index
    %c0_49 = arith.constant 0 : index
    %126 = vector.load %arg12[%c0_48, %c0_49] : memref<1x192xf32, #tpu.memory_space<vmem>>, vector<1x192xf32>
    %127 = vector.broadcast %126 : vector<1x192xf32> to vector<32x192xf32>
    %128 = arith.addf %125, %127 : vector<32x192xf32>
    %129 = arith.addf %92, %128 : vector<32x192xf32>
    %130 = vector.shape_cast %129 : vector<32x192xf32> to vector<2x3072xf32>
    %c0_50 = arith.constant 0 : index
    %c0_51 = arith.constant 0 : index
    %131 = vector.load %arg13[%c0_50, %c0_51] : memref<2x3072xf32, #tpu.memory_space<vmem>>, vector<2x3072xf32>
    tpu.vector_store %arg13[%c0_50, %c0_51], %130 {strides = array<i32>} : memref<2x3072xf32, #tpu.memory_space<vmem>>, vector<2x3072xf32>,
    return
  }
  func.func @transform_0(%arg0: i32) -> (i32, i32) {
    %c0_i32 = arith.constant 0 : i32
    %c0_i32_0 = arith.constant 0 : i32
    return %arg0, %c0_i32 : i32, i32
  }
  func.func @transform_1(%arg0: i32) -> (i32, i32) {
    %c0_i32 = arith.constant 0 : i32
    %c0_i32_0 = arith.constant 0 : i32
    %c0_i32_1 = arith.constant 0 : i32
    return %c0_i32, %c0_i32_0 : i32, i32
  }
  func.func @transform_2(%arg0: i32) -> (i32, i32) {
    %c0_i32 = arith.constant 0 : i32
    %c0_i32_0 = arith.constant 0 : i32
    %c0_i32_1 = arith.constant 0 : i32
    return %c0_i32, %c0_i32_0 : i32, i32
  }
  func.func @transform_3(%arg0: i32) -> (i32, i32) {
    %c0_i32 = arith.constant 0 : i32
    %c0_i32_0 = arith.constant 0 : i32
    %c0_i32_1 = arith.constant 0 : i32
    return %c0_i32, %c0_i32_0 : i32, i32
  }
  func.func @transform_4(%arg0: i32) -> (i32, i32, i32) {
    %c0_i32 = arith.constant 0 : i32
    %c0_i32_0 = arith.constant 0 : i32
    %c0_i32_1 = arith.constant 0 : i32
    %c0_i32_2 = arith.constant 0 : i32
    return %c0_i32, %c0_i32_0, %c0_i32_1 : i32, i32, i32
  }
  func.func @transform_5(%arg0: i32) -> (i32, i32) {
    %c0_i32 = arith.constant 0 : i32
    %c0_i32_0 = arith.constant 0 : i32
    %c0_i32_1 = arith.constant 0 : i32
    return %c0_i32, %c0_i32_0 : i32, i32
  }
  func.func @transform_6(%arg0: i32) -> (i32, i32) {
    %c0_i32 = arith.constant 0 : i32
    %c0_i32_0 = arith.constant 0 : i32
    %c0_i32_1 = arith.constant 0 : i32
    return %c0_i32, %c0_i32_0 : i32, i32
  }
  func.func @transform_7(%arg0: i32) -> (i32, i32) {
    %c0_i32 = arith.constant 0 : i32
    %c0_i32_0 = arith.constant 0 : i32
    %c0_i32_1 = arith.constant 0 : i32
    return %c0_i32, %c0_i32_0 : i32, i32
  }
  func.func @transform_8(%arg0: i32) -> (i32, i32) {
    %c0_i32 = arith.constant 0 : i32
    %c0_i32_0 = arith.constant 0 : i32
    %c0_i32_1 = arith.constant 0 : i32
    return %c0_i32, %c0_i32_0 : i32, i32
  }
  func.func @transform_9(%arg0: i32) -> (i32, i32) {
    %c0_i32 = arith.constant 0 : i32
    %c0_i32_0 = arith.constant 0 : i32
    %c0_i32_1 = arith.constant 0 : i32
    return %c0_i32, %c0_i32_0 : i32, i32
  }
  func.func @transform_10(%arg0: i32) -> (i32, i32) {
    %c0_i32 = arith.constant 0 : i32
    %c0_i32_0 = arith.constant 0 : i32
    %c0_i32_1 = arith.constant 0 : i32
    return %c0_i32, %c0_i32_0 : i32, i32
  }
  func.func @transform_11(%arg0: i32) -> (i32, i32) {
    %c0_i32 = arith.constant 0 : i32
    %c0_i32_0 = arith.constant 0 : i32
    %c0_i32_1 = arith.constant 0 : i32
    return %c0_i32, %c0_i32_0 : i32, i32
  }
  func.func @transform_12(%arg0: i32) -> (i32, i32) {
    %c0_i32 = arith.constant 0 : i32
    %c0_i32_0 = arith.constant 0 : i32
    return %arg0, %c0_i32 : i32, i32
  }
}

module attributes {stable_mosaic.version = 11 : i64} {
  func.func @_block_kernel(%arg0: i32, %arg1: memref<32x192xf32, #tpu.memory_space<vmem>>, %arg2: memref<1x192xf32, #tpu.memory_space<vmem>>, %arg3: memref<1x192xf32, #tpu.memory_space<vmem>>, %arg4: memref<192x576xbf16, #tpu.memory_space<vmem>>, %arg5: memref<3x64x192xbf16, #tpu.memory_space<vmem>>, %arg6: memref<1x192xf32, #tpu.memory_space<vmem>>, %arg7: memref<1x192xf32, #tpu.memory_space<vmem>>, %arg8: memref<1x192xf32, #tpu.memory_space<vmem>>, %arg9: memref<192x768xbf16, #tpu.memory_space<vmem>>, %arg10: memref<1x768xf32, #tpu.memory_space<vmem>>, %arg11: memref<768x192xbf16, #tpu.memory_space<vmem>>, %arg12: memref<1x192xf32, #tpu.memory_space<vmem>>, %arg13: memref<32x192xf32, #tpu.memory_space<vmem>>) attributes {dimension_semantics = [#tpu.dimension_semantics<parallel>], iteration_bounds = array<i64: 1>, scalar_prefetch = 0 : i64, scratch_operands = 0 : i64, tpu.core_type = #tpu.core_type<tc>, window_params = [{transform_indices = @transform_0, window_bounds = array<i64: 32, 192>}, {pipeline_mode = #tpu.pipeline_mode<synchronous>, transform_indices = @transform_1, window_bounds = array<i64: 1, 192>}, {pipeline_mode = #tpu.pipeline_mode<synchronous>, transform_indices = @transform_2, window_bounds = array<i64: 1, 192>}, {pipeline_mode = #tpu.pipeline_mode<synchronous>, transform_indices = @transform_3, window_bounds = array<i64: 192, 576>}, {pipeline_mode = #tpu.pipeline_mode<synchronous>, transform_indices = @transform_4, window_bounds = array<i64: 3, 64, 192>}, {pipeline_mode = #tpu.pipeline_mode<synchronous>, transform_indices = @transform_5, window_bounds = array<i64: 1, 192>}, {pipeline_mode = #tpu.pipeline_mode<synchronous>, transform_indices = @transform_6, window_bounds = array<i64: 1, 192>}, {pipeline_mode = #tpu.pipeline_mode<synchronous>, transform_indices = @transform_7, window_bounds = array<i64: 1, 192>}, {pipeline_mode = #tpu.pipeline_mode<synchronous>, transform_indices = @transform_8, window_bounds = array<i64: 192, 768>}, {pipeline_mode = #tpu.pipeline_mode<synchronous>, transform_indices = @transform_9, window_bounds = array<i64: 1, 768>}, {pipeline_mode = #tpu.pipeline_mode<synchronous>, transform_indices = @transform_10, window_bounds = array<i64: 768, 192>}, {pipeline_mode = #tpu.pipeline_mode<synchronous>, transform_indices = @transform_11, window_bounds = array<i64: 1, 192>}, {transform_indices = @transform_12, window_bounds = array<i64: 32, 192>}]} {
    %c0 = arith.constant 0 : index
    %c0_0 = arith.constant 0 : index
    %0 = vector.load %arg1[%c0, %c0_0] : memref<32x192xf32, #tpu.memory_space<vmem>>, vector<32x192xf32>
    %c0_1 = arith.constant 0 : index
    %c0_2 = arith.constant 0 : index
    %1 = vector.load %arg2[%c0_1, %c0_2] : memref<1x192xf32, #tpu.memory_space<vmem>>, vector<1x192xf32>
    %c0_3 = arith.constant 0 : index
    %c0_4 = arith.constant 0 : index
    %2 = vector.load %arg3[%c0_3, %c0_4] : memref<1x192xf32, #tpu.memory_space<vmem>>, vector<1x192xf32>
    %cst = arith.constant dense<0.000000e+00> : vector<32xf32>
    %3 = vector.multi_reduction <add>, %0, %cst [1] : vector<32x192xf32> to vector<32xf32>
    %4 = vector.shape_cast %3 : vector<32xf32> to vector<32x1xf32>
    %cst_5 = arith.constant 1.920000e+02 : f32
    %5 = vector.broadcast %cst_5 : f32 to vector<32x1xf32>
    %6 = arith.divf %4, %5 : vector<32x1xf32>
    %7 = vector.broadcast %6 : vector<32x1xf32> to vector<32x192xf32>
    %8 = arith.subf %0, %7 : vector<32x192xf32>
    %9 = arith.mulf %8, %8 : vector<32x192xf32>
    %cst_6 = arith.constant dense<0.000000e+00> : vector<32xf32>
    %10 = vector.multi_reduction <add>, %9, %cst_6 [1] : vector<32x192xf32> to vector<32xf32>
    %11 = vector.shape_cast %10 : vector<32xf32> to vector<32x1xf32>
    %cst_7 = arith.constant 1.920000e+02 : f32
    %12 = vector.broadcast %cst_7 : f32 to vector<32x1xf32>
    %13 = arith.divf %11, %12 : vector<32x1xf32>
    %cst_8 = arith.constant 9.99999974E-6 : f32
    %14 = vector.broadcast %cst_8 : f32 to vector<32x1xf32>
    %15 = arith.addf %13, %14 : vector<32x1xf32>
    %16 = math.rsqrt %15 : vector<32x1xf32>
    %17 = vector.broadcast %16 : vector<32x1xf32> to vector<32x192xf32>
    %18 = arith.mulf %8, %17 : vector<32x192xf32>
    %19 = vector.broadcast %1 : vector<1x192xf32> to vector<32x192xf32>
    %20 = arith.mulf %18, %19 : vector<32x192xf32>
    %21 = vector.broadcast %2 : vector<1x192xf32> to vector<32x192xf32>
    %22 = arith.addf %20, %21 : vector<32x192xf32>
    %23 = arith.truncf %22 : vector<32x192xf32> to vector<32x192xbf16>
    %c0_9 = arith.constant 0 : index
    %c0_10 = arith.constant 0 : index
    %24 = vector.load %arg4[%c0_9, %c0_10] : memref<192x576xbf16, #tpu.memory_space<vmem>>, vector<192x576xbf16>
    %cst_11 = arith.constant dense<0.000000e+00> : vector<32x576xf32>
    %25 = tpu.matmul %23, %24, %cst_11 {dimension_numbers = #tpu.dot_dimension_numbers<[1], [0], [0], [1], [0, 0, 1, 1], [], []>} : vector<32x192xbf16>, vector<192x576xbf16>, vector<32x576xf32> -> vector<32x576xf32>
    %26 = arith.truncf %25 : vector<32x576xf32> to vector<32x576xbf16>
    %27 = vector.extract_strided_slice %26 {offsets = [0, 0], sizes = [32, 64], strides = [1, 1]} : vector<32x576xbf16> to vector<32x64xbf16>
    %28 = vector.shape_cast %27 : vector<32x64xbf16> to vector<2x16x64xbf16>
    %29 = vector.extract_strided_slice %26 {offsets = [0, 64], sizes = [32, 64], strides = [1, 1]} : vector<32x576xbf16> to vector<32x64xbf16>
    %30 = vector.shape_cast %29 : vector<32x64xbf16> to vector<2x16x64xbf16>
    %31 = vector.extract_strided_slice %26 {offsets = [0, 128], sizes = [32, 64], strides = [1, 1]} : vector<32x576xbf16> to vector<32x64xbf16>
    %32 = vector.shape_cast %31 : vector<32x64xbf16> to vector<2x16x64xbf16>
    %33 = tpu.concatenate %28, %30, %32 in 0 : vector<2x16x64xbf16>, vector<2x16x64xbf16>, vector<2x16x64xbf16> -> vector<6x16x64xbf16>
    %34 = vector.extract_strided_slice %26 {offsets = [0, 192], sizes = [32, 64], strides = [1, 1]} : vector<32x576xbf16> to vector<32x64xbf16>
    %35 = vector.shape_cast %34 : vector<32x64xbf16> to vector<2x16x64xbf16>
    %36 = vector.extract_strided_slice %26 {offsets = [0, 256], sizes = [32, 64], strides = [1, 1]} : vector<32x576xbf16> to vector<32x64xbf16>
    %37 = vector.shape_cast %36 : vector<32x64xbf16> to vector<2x16x64xbf16>
    %38 = vector.extract_strided_slice %26 {offsets = [0, 320], sizes = [32, 64], strides = [1, 1]} : vector<32x576xbf16> to vector<32x64xbf16>
    %39 = vector.shape_cast %38 : vector<32x64xbf16> to vector<2x16x64xbf16>
    %40 = tpu.concatenate %35, %37, %39 in 0 : vector<2x16x64xbf16>, vector<2x16x64xbf16>, vector<2x16x64xbf16> -> vector<6x16x64xbf16>
    %41 = vector.extract_strided_slice %26 {offsets = [0, 384], sizes = [32, 64], strides = [1, 1]} : vector<32x576xbf16> to vector<32x64xbf16>
    %42 = vector.shape_cast %41 : vector<32x64xbf16> to vector<2x16x64xbf16>
    %43 = vector.extract_strided_slice %26 {offsets = [0, 448], sizes = [32, 64], strides = [1, 1]} : vector<32x576xbf16> to vector<32x64xbf16>
    %44 = vector.shape_cast %43 : vector<32x64xbf16> to vector<2x16x64xbf16>
    %45 = vector.extract_strided_slice %26 {offsets = [0, 512], sizes = [32, 64], strides = [1, 1]} : vector<32x576xbf16> to vector<32x64xbf16>
    %46 = vector.shape_cast %45 : vector<32x64xbf16> to vector<2x16x64xbf16>
    %47 = tpu.concatenate %42, %44, %46 in 0 : vector<2x16x64xbf16>, vector<2x16x64xbf16>, vector<2x16x64xbf16> -> vector<6x16x64xbf16>
    %48 = tpu.iota {dimensions = array<i32: 0>} : vector<16x16xi32>
    %49 = tpu.iota {dimensions = array<i32: 1>} : vector<16x16xi32>
    %50 = arith.cmpi sge, %48, %49 : vector<16x16xi32>
    %51 = vector.shape_cast %50 : vector<16x16xi1> to vector<1x16x16xi1>
    "tpu.trace_start"() <{level = 10 : i32, message = "bqd,bkd->bqk"}> : () -> ()
    %cst_12 = arith.constant dense<0.000000e+00> : vector<6x16x16xf32>
    %52 = tpu.matmul %33, %40, %cst_12 {dimension_numbers = #tpu.dot_dimension_numbers<[2], [2], [1], [1], [0, 0, 0, 1, 1, 1], [0], [0]>} : vector<6x16x64xbf16>, vector<6x16x64xbf16>, vector<6x16x16xf32> -> vector<6x16x16xf32>
    "tpu.trace_stop"() : () -> ()
    %cst_13 = arith.constant 1.250000e-01 : f32
    %53 = vector.broadcast %cst_13 : f32 to vector<6x16x16xf32>
    %54 = arith.mulf %52, %53 : vector<6x16x16xf32>
    %cst_14 = arith.constant -1.000000e+30 : f32
    %55 = vector.shape_cast %51 : vector<1x16x16xi1> to vector<1x16x16xi1>
    %56 = vector.broadcast %55 : vector<1x16x16xi1> to vector<6x16x16xi1>
    %57 = vector.broadcast %cst_14 : f32 to vector<6x16x16xf32>
    %58 = arith.select %56, %54, %57 : vector<6x16x16xi1>, vector<6x16x16xf32>
    %cst_15 = arith.constant dense<0xFF800000> : vector<6x16xf32>
    %59 = vector.multi_reduction <maximumf>, %58, %cst_15 [2] : vector<6x16x16xf32> to vector<6x16xf32>
    %60 = vector.shape_cast %59 : vector<6x16xf32> to vector<6x16x1xf32>
    %61 = vector.broadcast %60 : vector<6x16x1xf32> to vector<6x16x16xf32>
    %62 = arith.subf %58, %61 : vector<6x16x16xf32>
    %63 = math.exp %62 : vector<6x16x16xf32>
    %cst_16 = arith.constant dense<0.000000e+00> : vector<6x16xf32>
    %64 = vector.multi_reduction <add>, %63, %cst_16 [2] : vector<6x16x16xf32> to vector<6x16xf32>
    %65 = vector.shape_cast %64 : vector<6x16xf32> to vector<6x16x1xf32>
    %66 = tpu.reciprocal %65 {approx = true} : vector<6x16x1xf32> -> vector<6x16x1xf32>
    %67 = vector.broadcast %66 : vector<6x16x1xf32> to vector<6x16x16xf32>
    %68 = arith.mulf %63, %67 : vector<6x16x16xf32>
    %69 = arith.truncf %68 : vector<6x16x16xf32> to vector<6x16x16xbf16>
    "tpu.trace_start"() <{level = 10 : i32, message = "bqk,bkd->bqd"}> : () -> ()
    %cst_17 = arith.constant dense<0.000000e+00> : vector<6x16x64xf32>
    %70 = tpu.matmul %69, %47, %cst_17 {dimension_numbers = #tpu.dot_dimension_numbers<[2], [1], [1], [2], [0, 0, 0, 1, 1, 2], [0], [0]>} : vector<6x16x16xbf16>, vector<6x16x64xbf16>, vector<6x16x64xf32> -> vector<6x16x64xf32>
    "tpu.trace_stop"() : () -> ()
    %71 = arith.truncf %70 : vector<6x16x64xf32> to vector<6x16x64xbf16>
    %c0_18 = arith.constant 0 : index
    %c0_19 = arith.constant 0 : index
    %72 = vector.load %arg6[%c0_18, %c0_19] : memref<1x192xf32, #tpu.memory_space<vmem>>, vector<1x192xf32>
    %73 = vector.extract_strided_slice %71 {offsets = [0, 0, 0], sizes = [2, 16, 64], strides = [1, 1, 1]} : vector<6x16x64xbf16> to vector<2x16x64xbf16>
    %74 = vector.shape_cast %73 : vector<2x16x64xbf16> to vector<32x64xbf16>
    %c0_20 = arith.constant 0 : index
    %c0_21 = arith.constant 0 : index
    %c0_22 = arith.constant 0 : index
    %75 = vector.load %arg5[%c0_20, %c0_21, %c0_22] : memref<3x64x192xbf16, #tpu.memory_space<vmem>>, vector<1x64x192xbf16>
    %76 = vector.shape_cast %75 : vector<1x64x192xbf16> to vector<64x192xbf16>
    %cst_23 = arith.constant dense<0.000000e+00> : vector<32x192xf32>
    %77 = tpu.matmul %74, %76, %cst_23 {dimension_numbers = #tpu.dot_dimension_numbers<[1], [0], [0], [1], [0, 0, 1, 1], [], []>} : vector<32x64xbf16>, vector<64x192xbf16>, vector<32x192xf32> -> vector<32x192xf32>
    %78 = vector.broadcast %72 : vector<1x192xf32> to vector<32x192xf32>
    %79 = arith.addf %78, %77 : vector<32x192xf32>
    %80 = vector.extract_strided_slice %71 {offsets = [2, 0, 0], sizes = [2, 16, 64], strides = [1, 1, 1]} : vector<6x16x64xbf16> to vector<2x16x64xbf16>
    %81 = vector.shape_cast %80 : vector<2x16x64xbf16> to vector<32x64xbf16>
    %c1 = arith.constant 1 : index
    %c0_24 = arith.constant 0 : index
    %c0_25 = arith.constant 0 : index
    %82 = vector.load %arg5[%c1, %c0_24, %c0_25] : memref<3x64x192xbf16, #tpu.memory_space<vmem>>, vector<1x64x192xbf16>
    %83 = vector.shape_cast %82 : vector<1x64x192xbf16> to vector<64x192xbf16>
    %cst_26 = arith.constant dense<0.000000e+00> : vector<32x192xf32>
    %84 = tpu.matmul %81, %83, %cst_26 {dimension_numbers = #tpu.dot_dimension_numbers<[1], [0], [0], [1], [0, 0, 1, 1], [], []>} : vector<32x64xbf16>, vector<64x192xbf16>, vector<32x192xf32> -> vector<32x192xf32>
    %85 = arith.addf %79, %84 : vector<32x192xf32>
    %86 = vector.extract_strided_slice %71 {offsets = [4, 0, 0], sizes = [2, 16, 64], strides = [1, 1, 1]} : vector<6x16x64xbf16> to vector<2x16x64xbf16>
    %87 = vector.shape_cast %86 : vector<2x16x64xbf16> to vector<32x64xbf16>
    %c2 = arith.constant 2 : index
    %c0_27 = arith.constant 0 : index
    %c0_28 = arith.constant 0 : index
    %88 = vector.load %arg5[%c2, %c0_27, %c0_28] : memref<3x64x192xbf16, #tpu.memory_space<vmem>>, vector<1x64x192xbf16>
    %89 = vector.shape_cast %88 : vector<1x64x192xbf16> to vector<64x192xbf16>
    %cst_29 = arith.constant dense<0.000000e+00> : vector<32x192xf32>
    %90 = tpu.matmul %87, %89, %cst_29 {dimension_numbers = #tpu.dot_dimension_numbers<[1], [0], [0], [1], [0, 0, 1, 1], [], []>} : vector<32x64xbf16>, vector<64x192xbf16>, vector<32x192xf32> -> vector<32x192xf32>
    %91 = arith.addf %85, %90 : vector<32x192xf32>
    %92 = arith.addf %0, %91 : vector<32x192xf32>
    %c0_30 = arith.constant 0 : index
    %c0_31 = arith.constant 0 : index
    %93 = vector.load %arg7[%c0_30, %c0_31] : memref<1x192xf32, #tpu.memory_space<vmem>>, vector<1x192xf32>
    %c0_32 = arith.constant 0 : index
    %c0_33 = arith.constant 0 : index
    %94 = vector.load %arg8[%c0_32, %c0_33] : memref<1x192xf32, #tpu.memory_space<vmem>>, vector<1x192xf32>
    %cst_34 = arith.constant dense<0.000000e+00> : vector<32xf32>
    %95 = vector.multi_reduction <add>, %92, %cst_34 [1] : vector<32x192xf32> to vector<32xf32>
    %96 = vector.shape_cast %95 : vector<32xf32> to vector<32x1xf32>
    %cst_35 = arith.constant 1.920000e+02 : f32
    %97 = vector.broadcast %cst_35 : f32 to vector<32x1xf32>
    %98 = arith.divf %96, %97 : vector<32x1xf32>
    %99 = vector.broadcast %98 : vector<32x1xf32> to vector<32x192xf32>
    %100 = arith.subf %92, %99 : vector<32x192xf32>
    %101 = arith.mulf %100, %100 : vector<32x192xf32>
    %cst_36 = arith.constant dense<0.000000e+00> : vector<32xf32>
    %102 = vector.multi_reduction <add>, %101, %cst_36 [1] : vector<32x192xf32> to vector<32xf32>
    %103 = vector.shape_cast %102 : vector<32xf32> to vector<32x1xf32>
    %cst_37 = arith.constant 1.920000e+02 : f32
    %104 = vector.broadcast %cst_37 : f32 to vector<32x1xf32>
    %105 = arith.divf %103, %104 : vector<32x1xf32>
    %cst_38 = arith.constant 9.99999974E-6 : f32
    %106 = vector.broadcast %cst_38 : f32 to vector<32x1xf32>
    %107 = arith.addf %105, %106 : vector<32x1xf32>
    %108 = math.rsqrt %107 : vector<32x1xf32>
    %109 = vector.broadcast %108 : vector<32x1xf32> to vector<32x192xf32>
    %110 = arith.mulf %100, %109 : vector<32x192xf32>
    %111 = vector.broadcast %93 : vector<1x192xf32> to vector<32x192xf32>
    %112 = arith.mulf %110, %111 : vector<32x192xf32>
    %113 = vector.broadcast %94 : vector<1x192xf32> to vector<32x192xf32>
    %114 = arith.addf %112, %113 : vector<32x192xf32>
    %115 = arith.truncf %114 : vector<32x192xf32> to vector<32x192xbf16>
    %c0_39 = arith.constant 0 : index
    %c0_40 = arith.constant 0 : index
    %116 = vector.load %arg9[%c0_39, %c0_40] : memref<192x768xbf16, #tpu.memory_space<vmem>>, vector<192x768xbf16>
    %cst_41 = arith.constant dense<0.000000e+00> : vector<32x768xf32>
    %117 = tpu.matmul %115, %116, %cst_41 {dimension_numbers = #tpu.dot_dimension_numbers<[1], [0], [0], [1], [0, 0, 1, 1], [], []>} : vector<32x192xbf16>, vector<192x768xbf16>, vector<32x768xf32> -> vector<32x768xf32>
    %c0_42 = arith.constant 0 : index
    %c0_43 = arith.constant 0 : index
    %118 = vector.load %arg10[%c0_42, %c0_43] : memref<1x768xf32, #tpu.memory_space<vmem>>, vector<1x768xf32>
    %119 = vector.broadcast %118 : vector<1x768xf32> to vector<32x768xf32>
    %120 = arith.addf %117, %119 : vector<32x768xf32>
    %cst_44 = arith.constant 0.000000e+00 : f32
    %121 = vector.broadcast %cst_44 : f32 to vector<32x768xf32>
    %122 = arith.maximumf %120, %121 : vector<32x768xf32>
    %123 = arith.truncf %122 : vector<32x768xf32> to vector<32x768xbf16>
    %c0_45 = arith.constant 0 : index
    %c0_46 = arith.constant 0 : index
    %124 = vector.load %arg11[%c0_45, %c0_46] : memref<768x192xbf16, #tpu.memory_space<vmem>>, vector<768x192xbf16>
    %cst_47 = arith.constant dense<0.000000e+00> : vector<32x192xf32>
    %125 = tpu.matmul %123, %124, %cst_47 {dimension_numbers = #tpu.dot_dimension_numbers<[1], [0], [0], [1], [0, 0, 1, 1], [], []>} : vector<32x768xbf16>, vector<768x192xbf16>, vector<32x192xf32> -> vector<32x192xf32>
    %c0_48 = arith.constant 0 : index
    %c0_49 = arith.constant 0 : index
    %126 = vector.load %arg12[%c0_48, %c0_49] : memref<1x192xf32, #tpu.memory_space<vmem>>, vector<1x192xf32>
    %127 = vector.broadcast %126 : vector<1x192xf32> to vector<32x192xf32>
    %128 = arith.addf %125, %127 : vector<32x192xf32>
    %129 = arith.addf %92, %128 : vector<32x192xf32>
    %c0_50 = arith.constant 0 : index
    %c0_51 = arith.constant 0 : index
    %130 = vector.load %arg13[%c0_50, %c0_51] : memref<32x192xf32, #tpu.memory_space<vmem>>, vector<32x192xf32>
    tpu.vector_store %arg13[%c0_50, %c0_51], %129 {strides = array<i32>} : memref<32x192xf32, #tpu.memory_space<vmem>>, vector<32x192xf32>,
    return
  }
  func.func @transform_0(%arg0: i32) -> (i32, i32) {
    %c0_i32 = arith.constant 0 : i32
    %c0_i32_0 = arith.constant 0 : i32
    return %arg0, %c0_i32 : i32, i32
  }
  func.func @transform_1(%arg0: i32) -> (i32, i32) {
    %c0_i32 = arith.constant 0 : i32
    %c0_i32_0 = arith.constant 0 : i32
    %c0_i32_1 = arith.constant 0 : i32
    return %c0_i32, %c0_i32_0 : i32, i32
  }
  func.func @transform_2(%arg0: i32) -> (i32, i32) {
    %c0_i32 = arith.constant 0 : i32
    %c0_i32_0 = arith.constant 0 : i32
    %c0_i32_1 = arith.constant 0 : i32
    return %c0_i32, %c0_i32_0 : i32, i32
  }
  func.func @transform_3(%arg0: i32) -> (i32, i32) {
    %c0_i32 = arith.constant 0 : i32
    %c0_i32_0 = arith.constant 0 : i32
    %c0_i32_1 = arith.constant 0 : i32
    return %c0_i32, %c0_i32_0 : i32, i32
  }
  func.func @transform_4(%arg0: i32) -> (i32, i32, i32) {
    %c0_i32 = arith.constant 0 : i32
    %c0_i32_0 = arith.constant 0 : i32
    %c0_i32_1 = arith.constant 0 : i32
    %c0_i32_2 = arith.constant 0 : i32
    return %c0_i32, %c0_i32_0, %c0_i32_1 : i32, i32, i32
  }
  func.func @transform_5(%arg0: i32) -> (i32, i32) {
    %c0_i32 = arith.constant 0 : i32
    %c0_i32_0 = arith.constant 0 : i32
    %c0_i32_1 = arith.constant 0 : i32
    return %c0_i32, %c0_i32_0 : i32, i32
  }
  func.func @transform_6(%arg0: i32) -> (i32, i32) {
    %c0_i32 = arith.constant 0 : i32
    %c0_i32_0 = arith.constant 0 : i32
    %c0_i32_1 = arith.constant 0 : i32
    return %c0_i32, %c0_i32_0 : i32, i32
  }
  func.func @transform_7(%arg0: i32) -> (i32, i32) {
    %c0_i32 = arith.constant 0 : i32
    %c0_i32_0 = arith.constant 0 : i32
    %c0_i32_1 = arith.constant 0 : i32
    return %c0_i32, %c0_i32_0 : i32, i32
  }
  func.func @transform_8(%arg0: i32) -> (i32, i32) {
    %c0_i32 = arith.constant 0 : i32
    %c0_i32_0 = arith.constant 0 : i32
    %c0_i32_1 = arith.constant 0 : i32
    return %c0_i32, %c0_i32_0 : i32, i32
  }
  func.func @transform_9(%arg0: i32) -> (i32, i32) {
    %c0_i32 = arith.constant 0 : i32
    %c0_i32_0 = arith.constant 0 : i32
    %c0_i32_1 = arith.constant 0 : i32
    return %c0_i32, %c0_i32_0 : i32, i32
  }
  func.func @transform_10(%arg0: i32) -> (i32, i32) {
    %c0_i32 = arith.constant 0 : i32
    %c0_i32_0 = arith.constant 0 : i32
    %c0_i32_1 = arith.constant 0 : i32
    return %c0_i32, %c0_i32_0 : i32, i32
  }
  func.func @transform_11(%arg0: i32) -> (i32, i32) {
    %c0_i32 = arith.constant 0 : i32
    %c0_i32_0 = arith.constant 0 : i32
    %c0_i32_1 = arith.constant 0 : i32
    return %c0_i32, %c0_i32_0 : i32, i32
  }
  func.func @transform_12(%arg0: i32) -> (i32, i32) {
    %c0_i32 = arith.constant 0 : i32
    %c0_i32_0 = arith.constant 0 : i32
    return %arg0, %c0_i32 : i32, i32
  }
}

</mosaic_0001>

<llo_original>
// kernel: tpu_custom_call.1
$region0: #{tpu_custom_call.1}
  #allocation0 [shape = 'u32[]', space=smem, size = 0x4, offset = 0x4, fixed_abs, tag = 'smem constant byte address 0x4 - core index']
  #allocation1 [shape = 'u32[144,128]{1,0:T(1,128)}', space=vmem, size = 0x12000, scoped, tag = 'internal scratch']
  %s0 = inlined_call_operand.vmem [shape: f32[32,192], index: 0, kind: input, shape index: {}]
  %s1 = inlined_call_operand.vmem [shape: f32[1,192], index: 1, kind: input, shape index: {}]
  %s2 = inlined_call_operand.vmem [shape: f32[1,192], index: 2, kind: input, shape index: {}]
  %s3 = inlined_call_operand.vmem [shape: bf16[192,576], index: 3, kind: input, shape index: {}]
  %s4 = inlined_call_operand.vmem [shape: bf16[3,64,192], index: 4, kind: input, shape index: {}]
  %s5 = inlined_call_operand.vmem [shape: f32[1,192], index: 5, kind: input, shape index: {}]
  %s6 = inlined_call_operand.vmem [shape: f32[1,192], index: 6, kind: input, shape index: {}]
  %s7 = inlined_call_operand.vmem [shape: f32[1,192], index: 7, kind: input, shape index: {}]
  %s8 = inlined_call_operand.vmem [shape: bf16[192,768], index: 8, kind: input, shape index: {}]
  %s9 = inlined_call_operand.vmem [shape: f32[1,768], index: 9, kind: input, shape index: {}]
  %s10 = inlined_call_operand.vmem [shape: bf16[768,192], index: 10, kind: input, shape index: {}]
  %s11 = inlined_call_operand.vmem [shape: f32[1,192], index: 11, kind: input, shape index: {}]
  %s12 = inlined_call_operand.hbm [shape: f32[32,192], index: 12, kind: output, shape index: {}]
  %s13 = sld [smem:[#allocation0]]
  $region58: #{tpu_custom_call.1} parent=0
    _
  %s15 = ssub.s32 1, %s13
  %s16 = scalar_select 0, %s15, %s13
  $region1: #{tpu_custom_call.1} parent=0
    #allocation2 [shape = 'u8[32768]{0}', space=vmem, size = 0x8000, scoped, tag = 'output window, operand 0, single buffered']
    #allocation3 [shape = 's32[1]{0}', space=sflag, size = 0x4, scoped, tag = 'scoped memory for tpu_custom_call.1']
    %17 = vsyncpa [#allocation3], 0
    // Predicated region
    $region2: #{tpu_custom_call.1} parent=1 // pred_check
      _
    $region3: #{tpu_custom_call.1} parent=1 // pred_check_branch
      %19 = sbr.rel (0) target = $region5
    $region4: #{tpu_custom_call.1} parent=1 // pred_region
      _
    $region5: #{tpu_custom_call.1} parent=1 // pred_fallthru
      _
    // Predicated region
    $region6: #{tpu_custom_call.1} parent=1 // pred_check
      _
    $region7: #{tpu_custom_call.1} parent=1 // pred_check_branch
      %21 = sbr.rel (0) target = $region9
    $region8: #{tpu_custom_call.1} parent=1 // pred_region
      _
    $region9: #{tpu_custom_call.1} parent=1 // pred_fallthru
      _
    // Predicated region
    $region10: #{tpu_custom_call.1} parent=1 // pred_check
      _
    $region11: #{tpu_custom_call.1} parent=1 // pred_check_branch
      %23 = sbr.rel (0) target = $region13
    $region12: #{tpu_custom_call.1} parent=1 // pred_region
      _
    $region13: #{tpu_custom_call.1} parent=1 // pred_fallthru
      _
    // Predicated region
    $region14: #{tpu_custom_call.1} parent=1 // pred_check
      _
    $region15: #{tpu_custom_call.1} parent=1 // pred_check_branch
      %25 = sbr.rel (0) target = $region17
    $region16: #{tpu_custom_call.1} parent=1 // pred_region
      _
    $region17: #{tpu_custom_call.1} parent=1 // pred_fallthru
      _
    // Predicated region
    $region18: #{tpu_custom_call.1} parent=1 // pred_check
      _
    $region19: #{tpu_custom_call.1} parent=1 // pred_check_branch
      %27 = sbr.rel (0) target = $region21
    $region20: #{tpu_custom_call.1} parent=1 // pred_region
      _
    $region21: #{tpu_custom_call.1} parent=1 // pred_fallthru
      _
    // Predicated region
    $region22: #{tpu_custom_call.1} parent=1 // pred_check
      _
    $region23: #{tpu_custom_call.1} parent=1 // pred_check_branch
      %29 = sbr.rel (0) target = $region25
    $region24: #{tpu_custom_call.1} parent=1 // pred_region
      _
    $region25: #{tpu_custom_call.1} parent=1 // pred_fallthru
      _
    // Predicated region
    $region26: #{tpu_custom_call.1} parent=1 // pred_check
      _
    $region27: #{tpu_custom_call.1} parent=1 // pred_check_branch
      %31 = sbr.rel (0) target = $region29
    $region28: #{tpu_custom_call.1} parent=1 // pred_region
      _
    $region29: #{tpu_custom_call.1} parent=1 // pred_fallthru
      _
    // Predicated region
    $region30: #{tpu_custom_call.1} parent=1 // pred_check
      _
    $region31: #{tpu_custom_call.1} parent=1 // pred_check_branch
      %33 = sbr.rel (0) target = $region33
    $region32: #{tpu_custom_call.1} parent=1 // pred_region
      _
    $region33: #{tpu_custom_call.1} parent=1 // pred_fallthru
      _
    // Predicated region
    $region34: #{tpu_custom_call.1} parent=1 // pred_check
      _
    $region35: #{tpu_custom_call.1} parent=1 // pred_check_branch
      %35 = sbr.rel (0) target = $region37
    $region36: #{tpu_custom_call.1} parent=1 // pred_region
      _
    $region37: #{tpu_custom_call.1} parent=1 // pred_fallthru
      _
    // Predicated region
    $region38: #{tpu_custom_call.1} parent=1 // pred_check
      _
    $region39: #{tpu_custom_call.1} parent=1 // pred_check_branch
      %37 = sbr.rel (0) target = $region41
    $region40: #{tpu_custom_call.1} parent=1 // pred_region
      _
    $region41: #{tpu_custom_call.1} parent=1 // pred_fallthru
      _
    // Predicated region
    $region42: #{tpu_custom_call.1} parent=1 // pred_check
      _
    $region43: #{tpu_custom_call.1} parent=1 // pred_check_branch
      %39 = sbr.rel (0) target = $region45
    $region44: #{tpu_custom_call.1} parent=1 // pred_region
      _
    $region45: #{tpu_custom_call.1} parent=1 // pred_fallthru
      _
    // Predicated region
    $region46: #{tpu_custom_call.1} parent=1 // pred_check
      _
    $region47: #{tpu_custom_call.1} parent=1 // pred_check_branch
      %41 = sbr.rel (0) target = $region49
    $region48: #{tpu_custom_call.1} parent=1 // pred_region
      _
    $region49: #{tpu_custom_call.1} parent=1 // pred_fallthru
      _
    %v43 = vld [vmem:[%s0] sm:$0xff]
    %v44 = vld [vmem:[%s0 + $0x8] sm:$0xff]
    %v45 = vld [vmem:[%s0 + $0x10] sm:$0xff]
    %v46 = vld [vmem:[%s0 + $0x18] sm:$0xff]
    %v47 = vld [vmem:[%s0 + $0x20] sm:$0xff]
    %v48 = vld [vmem:[%s0 + $0x28] sm:$0xff]
    %v49 = vld [vmem:[%s0 + $0x30] sm:$0xff]
    %v50 = vld [vmem:[%s0 + $0x38] sm:$0xff]
    %v51 = vld [vmem:[%s1] sm:$0x3]
    %v52 = vld [vmem:[%s2] sm:$0x3]
    %vm53 = vcmask 523264
    %v54 = vsel %vm53, %v44, 0.0
    %v55 = vadd.f32 %v43, %v54
    %56 = vadd.xlane.f32.xlu0 %v55
    %v57 = vpop.xlane.xlu0 %56
    %v58 = vsel %vm53, %v46, 0.0
    %v59 = vadd.f32 %v45, %v58
    %60 = vadd.xlane.f32.xlu0 %v59
    %v61 = vpop.xlane.xlu0 %60
    %v62 = vsel %vm53, %v48, 0.0
    %v63 = vadd.f32 %v47, %v62
    %64 = vadd.xlane.f32.xlu0 %v63
    %v65 = vpop.xlane.xlu0 %64
    %v66 = vsel %vm53, %v50, 0.0
    %v67 = vadd.f32 %v49, %v66
    %68 = vadd.xlane.f32.xlu0 %v67
    %v69 = vpop.xlane.xlu0 %68
    %v70 = vrcp.pop 192.0
    %v71 = vmul.f32 %v57, %v70
    %v72 = vmul.f32 %v61, %v70
    %v73 = vmul.f32 %v65, %v70
    %v74 = vmul.f32 %v69, %v70
    %v75 = vsub.f32 %v43, %v71
    %v76 = vsub.f32 %v44, %v71
    %v77 = vsub.f32 %v45, %v72
    %v78 = vsub.f32 %v46, %v72
    %v79 = vsub.f32 %v47, %v73
    %v80 = vsub.f32 %v48, %v73
    %v81 = vsub.f32 %v49, %v74
    %v82 = vsub.f32 %v50, %v74
    %v83 = vmul.f32 %v75, %v75
    %v84 = vmul.f32 %v76, %v76
    %v85 = vmul.f32 %v77, %v77
    %v86 = vmul.f32 %v78, %v78
    %v87 = vmul.f32 %v79, %v79
    %v88 = vmul.f32 %v80, %v80
    %v89 = vmul.f32 %v81, %v81
    %v90 = vmul.f32 %v82, %v82
    %v91 = vsel %vm53, %v84, 0.0
    %v92 = vadd.f32 %v83, %v91
    %93 = vadd.xlane.f32.xlu0 %v92
    %v94 = vpop.xlane.xlu0 %93
    %v95 = vsel %vm53, %v86, 0.0
    %v96 = vadd.f32 %v85, %v95
    %97 = vadd.xlane.f32.xlu0 %v96
    %v98 = vpop.xlane.xlu0 %97
    %v99 = vsel %vm53, %v88, 0.0
    %v100 = vadd.f32 %v87, %v99
    %101 = vadd.xlane.f32.xlu0 %v100
    %v102 = vpop.xlane.xlu0 %101
    %v103 = vsel %vm53, %v90, 0.0
    %v104 = vadd.f32 %v89, %v103
    %105 = vadd.xlane.f32.xlu0 %v104
    %v106 = vpop.xlane.xlu0 %105
    %v107 = vmul.f32 %v94, %v70
    %v108 = vmul.f32 %v98, %v70
    %v109 = vmul.f32 %v102, %v70
    %v110 = vmul.f32 %v106, %v70
    %v111 = vadd.f32 %v107, 1e-05
    %v112 = vadd.f32 %v108, 1e-05
    %v113 = vadd.f32 %v109, 1e-05
    %v114 = vadd.f32 %v110, 1e-05
    %v115 = vrsqrt.pop %v111
    %v116 = vrsqrt.pop %v112
    %v117 = vrsqrt.pop %v113
    %v118 = vrsqrt.pop %v114
    %v119 = vmul.f32 %v75, %v115
    %v120 = vmul.f32 %v76, %v115
    %v121 = vmul.f32 %v77, %v116
    %v122 = vmul.f32 %v78, %v116
    %v123 = vmul.f32 %v79, %v117
    %v124 = vmul.f32 %v80, %v117
    %v125 = vmul.f32 %v81, %v118
    %v126 = vmul.f32 %v82, %v118
    %v128 = vlaneseq
    %v129 = vshrl.u32 %v128, 7
    %v130 = vsub.s32 0, %v129
    %v131 = vrot.slane %v51, %v130
    %v132 = vlaneseq
    %v133 = vshrl.u32 %v132, 7
    %v134 = vsub.s32 1, %v133
    %v135 = vrot.slane %v51, %v134
    %v138 = vmul.f32 %v119, %v131
    %v139 = vmul.f32 %v120, %v135
    %v140 = vmul.f32 %v121, %v131
    %v141 = vmul.f32 %v122, %v135
    %v142 = vmul.f32 %v123, %v131
    %v143 = vmul.f32 %v124, %v135
    %v144 = vmul.f32 %v125, %v131
    %v145 = vmul.f32 %v126, %v135
    %v147 = vlaneseq
    %v148 = vshrl.u32 %v147, 7
    %v149 = vsub.s32 0, %v148
    %v150 = vrot.slane %v52, %v149
    %v151 = vlaneseq
    %v152 = vshrl.u32 %v151, 7
    %v153 = vsub.s32 1, %v152
    %v154 = vrot.slane %v52, %v153
    %v157 = vadd.f32 %v138, %v150
    %v158 = vadd.f32 %v139, %v154
    %v159 = vadd.f32 %v140, %v150
    %v160 = vadd.f32 %v141, %v154
    %v161 = vadd.f32 %v142, %v150
    %v162 = vadd.f32 %v143, %v154
    %v163 = vadd.f32 %v144, %v150
    %v164 = vadd.f32 %v145, %v154
    %v165 = vpack.c.bf16 %v159, %v157
    %v166 = vpack.c.bf16 %v160, %v158
    %v167 = vpack.c.bf16 %v163, %v161
    %v168 = vpack.c.bf16 %v164, %v162
    %v169 = vld [vmem:[%s3] sm:$0xff]
    %v170 = vld [vmem:[%s3 + $0x8] sm:$0xff]
    %v171 = vld [vmem:[%s3 + $0x10] sm:$0xf]
    %v172 = vld [vmem:[%s3 + $0x14] sm:$0xff]
    %v173 = vld [vmem:[%s3 + $0x1c] sm:$0xff]
    %v174 = vld [vmem:[%s3 + $0x24] sm:$0xf]
    %v175 = vld [vmem:[%s3 + $0x28] sm:$0xff]
    %v176 = vld [vmem:[%s3 + $0x30] sm:$0xff]
    %v177 = vld [vmem:[%s3 + $0x38] sm:$0xf]
    %v178 = vld [vmem:[%s3 + $0x3c] sm:$0xff]
    %v179 = vld [vmem:[%s3 + $0x44] sm:$0xff]
    %v180 = vld [vmem:[%s3 + $0x4c] sm:$0xf]
    %v181 = vld [vmem:[%s3 + $0x50] sm:$0xff]
    %v182 = vld [vmem:[%s3 + $0x58] sm:$0xff]
    %v183 = vld [vmem:[%s3 + $0x60] sm:$0xf]
    %v184 = vld [vmem:[%s3 + $0x64] sm:$0xff]
    %v185 = vld [vmem:[%s3 + $0x6c] sm:$0xff]
    %v186 = vld [vmem:[%s3 + $0x74] sm:$0xf]
    %v187 = vld [vmem:[%s3 + $0x78] sm:$0xff]
    %v188 = vld [vmem:[%s3 + $0x80] sm:$0xff]
    %v189 = vld [vmem:[%s3 + $0x88] sm:$0xf]
    %v190 = vld [vmem:[%s3 + $0x8c] sm:$0xff]
    %v191 = vld [vmem:[%s3 + $0x94] sm:$0xff]
    %v192 = vld [vmem:[%s3 + $0x9c] sm:$0xf]
    %v193 = vld [vmem:[%s3 + $0xa0] sm:$0xff]
    %v194 = vld [vmem:[%s3 + $0xa8] sm:$0xff]
    %v195 = vld [vmem:[%s3 + $0xb0] sm:$0xf]
    %v196 = vld [vmem:[%s3 + $0xb4] sm:$0xff]
    %v197 = vld [vmem:[%s3 + $0xbc] sm:$0xff]
    %v198 = vld [vmem:[%s3 + $0xc4] sm:$0xf]
    %v199 = vld [vmem:[%s3 + $0xc8] sm:$0xff]
    %v200 = vld [vmem:[%s3 + $0xd0] sm:$0xff]
    %v201 = vld [vmem:[%s3 + $0xd8] sm:$0xf]
    %v202 = vld [vmem:[%s3 + $0xdc] sm:$0xff]
    %v203 = vld [vmem:[%s3 + $0xe4] sm:$0xff]
    %v204 = vld [vmem:[%s3 + $0xec] sm:$0xf]
    %v205 = vld [vmem:[%s3 + $0xf0] sm:$0xff]
    %v206 = vld [vmem:[%s3 + $0xf8] sm:$0xff]
    %v207 = vld [vmem:[%s3 + $0x100] sm:$0xf]
    %v208 = vld [vmem:[%s3 + $0x104] sm:$0xff]
    %v209 = vld [vmem:[%s3 + $0x10c] sm:$0xff]
    %v210 = vld [vmem:[%s3 + $0x114] sm:$0xf]
    %v211 = vld [vmem:[%s3 + $0x118] sm:$0xff]
    %v212 = vld [vmem:[%s3 + $0x120] sm:$0xff]
    %v213 = vld [vmem:[%s3 + $0x128] sm:$0xf]
    %v214 = vld [vmem:[%s3 + $0x12c] sm:$0xff]
    %v215 = vld [vmem:[%s3 + $0x134] sm:$0xff]
    %v216 = vld [vmem:[%s3 + $0x13c] sm:$0xf]
    %v217 = vld [vmem:[%s3 + $0x140] sm:$0xff]
    %v218 = vld [vmem:[%s3 + $0x148] sm:$0xff]
    %v219 = vld [vmem:[%s3 + $0x150] sm:$0xf]
    %v220 = vld [vmem:[%s3 + $0x154] sm:$0xff]
    %v221 = vld [vmem:[%s3 + $0x15c] sm:$0xff]
    %v222 = vld [vmem:[%s3 + $0x164] sm:$0xf]
    %v223 = vld [vmem:[%s3 + $0x168] sm:$0xff]
    %v224 = vld [vmem:[%s3 + $0x170] sm:$0xff]
    %v225 = vld [vmem:[%s3 + $0x178] sm:$0xf]
    %v226 = vld [vmem:[%s3 + $0x17c] sm:$0xff]
    %v227 = vld [vmem:[%s3 + $0x184] sm:$0xff]
    %v228 = vld [vmem:[%s3 + $0x18c] sm:$0xf]
    %v229 = vld [vmem:[%s3 + $0x190] sm:$0xff]
    %v230 = vld [vmem:[%s3 + $0x198] sm:$0xff]
    %v231 = vld [vmem:[%s3 + $0x1a0] sm:$0xf]
    %v232 = vld [vmem:[%s3 + $0x1a4] sm:$0xff]
    %v233 = vld [vmem:[%s3 + $0x1ac] sm:$0xff]
    %v234 = vld [vmem:[%s3 + $0x1b4] sm:$0xf]
    %v235 = vld [vmem:[%s3 + $0x1b8] sm:$0xff]
    %v236 = vld [vmem:[%s3 + $0x1c0] sm:$0xff]
    %v237 = vld [vmem:[%s3 + $0x1c8] sm:$0xf]
    %v238 = vld [vmem:[%s3 + $0x1cc] sm:$0xff]
    %v239 = vld [vmem:[%s3 + $0x1d4] sm:$0xff]
    %v240 = vld [vmem:[%s3 + $0x1dc] sm:$0xf]
    %v313 = vunpack.c.l.b16 %v169
    %v314 = vunpack.c.h.b16 %v169
    %v315 = vunpack.c.l.b16 %v170
    %v316 = vunpack.c.h.b16 %v170
    %v317 = vunpack.c.l.b16 %v171
    %v318 = vunpack.c.l.b16 %v172
    %v319 = vunpack.c.h.b16 %v172
    %v320 = vunpack.c.l.b16 %v173
    %v321 = vunpack.c.h.b16 %v173
    %v322 = vunpack.c.l.b16 %v174
    %v323 = vunpack.c.l.b16 %v175
    %v324 = vunpack.c.h.b16 %v175
    %v325 = vunpack.c.l.b16 %v176
    %v326 = vunpack.c.h.b16 %v176
    %v327 = vunpack.c.l.b16 %v177
    %v328 = vunpack.c.l.b16 %v178
    %v329 = vunpack.c.h.b16 %v178
    %v330 = vunpack.c.l.b16 %v179
    %v331 = vunpack.c.h.b16 %v179
    %v332 = vunpack.c.l.b16 %v180
    %v333 = vunpack.c.l.b16 %v181
    %v334 = vunpack.c.h.b16 %v181
    %v335 = vunpack.c.l.b16 %v182
    %v336 = vunpack.c.h.b16 %v182
    %v337 = vunpack.c.l.b16 %v183
    %v338 = vunpack.c.l.b16 %v184
    %v339 = vunpack.c.h.b16 %v184
    %v340 = vunpack.c.l.b16 %v185
    %v341 = vunpack.c.h.b16 %v185
    %v342 = vunpack.c.l.b16 %v186
    %v343 = vunpack.c.l.b16 %v187
    %v344 = vunpack.c.h.b16 %v187
    %v345 = vunpack.c.l.b16 %v188
    %v346 = vunpack.c.h.b16 %v188
    %v347 = vunpack.c.l.b16 %v189
    %v348 = vunpack.c.l.b16 %v190
    %v349 = vunpack.c.h.b16 %v190
    %v350 = vunpack.c.l.b16 %v191
    %v351 = vunpack.c.h.b16 %v191
    %v352 = vunpack.c.l.b16 %v192
    %v353 = vunpack.c.l.b16 %v193
    %v354 = vunpack.c.h.b16 %v193
    %v355 = vunpack.c.l.b16 %v194
    %v356 = vunpack.c.h.b16 %v194
    %v357 = vunpack.c.l.b16 %v195
    %v358 = vunpack.c.l.b16 %v196
    %v359 = vunpack.c.h.b16 %v196
    %v360 = vunpack.c.l.b16 %v197
    %v361 = vunpack.c.h.b16 %v197
    %v362 = vunpack.c.l.b16 %v198
    %v363 = vunpack.c.l.b16 %v199
    %v364 = vunpack.c.h.b16 %v199
    %v365 = vunpack.c.l.b16 %v200
    %v366 = vunpack.c.h.b16 %v200
    %v367 = vunpack.c.l.b16 %v201
    %v368 = vunpack.c.l.b16 %v202
    %v369 = vunpack.c.h.b16 %v202
    %v370 = vunpack.c.l.b16 %v203
    %v371 = vunpack.c.h.b16 %v203
    %v372 = vunpack.c.l.b16 %v204
    %v373 = vunpack.c.l.b16 %v205
    %v374 = vunpack.c.h.b16 %v205
    %v375 = vunpack.c.l.b16 %v206
    %v376 = vunpack.c.h.b16 %v206
    %v377 = vunpack.c.l.b16 %v207
    %v378 = vunpack.c.l.b16 %v208
    %v379 = vunpack.c.h.b16 %v208
    %v380 = vunpack.c.l.b16 %v209
    %v381 = vunpack.c.h.b16 %v209
    %v382 = vunpack.c.l.b16 %v210
    %v383 = vunpack.c.l.b16 %v211
    %v384 = vunpack.c.h.b16 %v211
    %v385 = vunpack.c.l.b16 %v212
    %v386 = vunpack.c.h.b16 %v212
    %v387 = vunpack.c.l.b16 %v213
    %v388 = vunpack.c.l.b16 %v214
    %v389 = vunpack.c.h.b16 %v214
    %v390 = vunpack.c.l.b16 %v215
    %v391 = vunpack.c.h.b16 %v215
    %v392 = vunpack.c.l.b16 %v216
    %v393 = vunpack.c.l.b16 %v217
    %v394 = vunpack.c.h.b16 %v217
    %v395 = vunpack.c.l.b16 %v218
    %v396 = vunpack.c.h.b16 %v218
    %v397 = vunpack.c.l.b16 %v219
    %v398 = vunpack.c.l.b16 %v220
    %v399 = vunpack.c.h.b16 %v220
    %v400 = vunpack.c.l.b16 %v221
    %v401 = vunpack.c.h.b16 %v221
    %v402 = vunpack.c.l.b16 %v222
    %v403 = vunpack.c.l.b16 %v223
    %v404 = vunpack.c.h.b16 %v223
    %v405 = vunpack.c.l.b16 %v224
    %v406 = vunpack.c.h.b16 %v224
    %v407 = vunpack.c.l.b16 %v225
    %v408 = vunpack.c.l.b16 %v226
    %v409 = vunpack.c.h.b16 %v226
    %v410 = vunpack.c.l.b16 %v227
    %v411 = vunpack.c.h.b16 %v227
    %v412 = vunpack.c.l.b16 %v228
    %v413 = vunpack.c.l.b16 %v229
    %v414 = vunpack.c.h.b16 %v229
    %v415 = vunpack.c.l.b16 %v230
    %v416 = vunpack.c.h.b16 %v230
    %v417 = vunpack.c.l.b16 %v231
    %v418 = vunpack.c.l.b16 %v232
    %v419 = vunpack.c.h.b16 %v232
    %v420 = vunpack.c.l.b16 %v233
    %v421 = vunpack.c.h.b16 %v233
    %v422 = vunpack.c.l.b16 %v234
    %v423 = vunpack.c.l.b16 %v235
    %v424 = vunpack.c.h.b16 %v235
    %v425 = vunpack.c.l.b16 %v236
    %v426 = vunpack.c.h.b16 %v236
    %v427 = vunpack.c.l.b16 %v237
    %v428 = vunpack.c.l.b16 %v238
    %v429 = vunpack.c.h.b16 %v238
    %v430 = vunpack.c.l.b16 %v239
    %v431 = vunpack.c.h.b16 %v239
    %v432 = vunpack.c.l.b16 %v240
    %v433 = vpack.c.b16 %v318, %v313
    %v434 = vpack.c.b16 %v319, %v314
    %v435 = vpack.c.b16 %v320, %v315
    %v436 = vpack.c.b16 %v321, %v316
    %v437 = vpack.c.b16 %v322, %v317
    %v438 = vpack.c.b16 %v328, %v323
    %v439 = vpack.c.b16 %v329, %v324
    %v440 = vpack.c.b16 %v330, %v325
    %v441 = vpack.c.b16 %v331, %v326
    %v442 = vpack.c.b16 %v332, %v327
    %v443 = vpack.c.b16 %v338, %v333
    %v444 = vpack.c.b16 %v339, %v334
    %v445 = vpack.c.b16 %v340, %v335
    %v446 = vpack.c.b16 %v341, %v336
    %v447 = vpack.c.b16 %v342, %v337
    %v448 = vpack.c.b16 %v348, %v343
    %v449 = vpack.c.b16 %v349, %v344
    %v450 = vpack.c.b16 %v350, %v345
    %v451 = vpack.c.b16 %v351, %v346
    %v452 = vpack.c.b16 %v352, %v347
    %v453 = vpack.c.b16 %v358, %v353
    %v454 = vpack.c.b16 %v359, %v354
    %v455 = vpack.c.b16 %v360, %v355
    %v456 = vpack.c.b16 %v361, %v356
    %v457 = vpack.c.b16 %v362, %v357
    %v458 = vpack.c.b16 %v368, %v363
    %v459 = vpack.c.b16 %v369, %v364
    %v460 = vpack.c.b16 %v370, %v365
    %v461 = vpack.c.b16 %v371, %v366
    %v462 = vpack.c.b16 %v372, %v367
    %v463 = vpack.c.b16 %v378, %v373
    %v464 = vpack.c.b16 %v379, %v374
    %v465 = vpack.c.b16 %v380, %v375
    %v466 = vpack.c.b16 %v381, %v376
    %v467 = vpack.c.b16 %v382, %v377
    %v468 = vpack.c.b16 %v388, %v383
    %v469 = vpack.c.b16 %v389, %v384
    %v470 = vpack.c.b16 %v390, %v385
    %v471 = vpack.c.b16 %v391, %v386
    %v472 = vpack.c.b16 %v392, %v387
    %v473 = vpack.c.b16 %v398, %v393
    %v474 = vpack.c.b16 %v399, %v394
    %v475 = vpack.c.b16 %v400, %v395
    %v476 = vpack.c.b16 %v401, %v396
    %v477 = vpack.c.b16 %v402, %v397
    %v478 = vpack.c.b16 %v408, %v403
    %v479 = vpack.c.b16 %v409, %v404
    %v480 = vpack.c.b16 %v410, %v405
    %v481 = vpack.c.b16 %v411, %v406
    %v482 = vpack.c.b16 %v412, %v407
    %v483 = vpack.c.b16 %v418, %v413
    %v484 = vpack.c.b16 %v419, %v414
    %v485 = vpack.c.b16 %v420, %v415
    %v486 = vpack.c.b16 %v421, %v416
    %v487 = vpack.c.b16 %v422, %v417
    %v488 = vpack.c.b16 %v428, %v423
    %v489 = vpack.c.b16 %v429, %v424
    %v490 = vpack.c.b16 %v430, %v425
    %v491 = vpack.c.b16 %v431, %v426
    %v492 = vpack.c.b16 %v432, %v427
    %v554 = vsel %vm53, %v166, 0
    %v557 = vsel %vm53, %v168, 0
    %559 = vmatprep.subr.bf16.mxu0 %v434
    %560 = vmatpush1.bf16.msra.mxu0 %v433
    %561 = vmatprep.subr.bf16.mxu0 %v439
    %562 = vmatpush1.bf16.msra.mxu0 %v438
    %563 = vmatprep.subr.bf16.mxu0 %v444
    %564 = vmatpush1.bf16.msra.mxu0 %v443
    %565 = vmatprep.subr.bf16.mxu0 %v449
    %566 = vmatpush1.bf16.msra.mxu0 %v448
    %567 = vmatprep.subr.bf16.mxu0 %v454
    %568 = vmatpush1.bf16.msra.mxu0 %v453
    %569 = vmatprep.subr.bf16.mxu0 %v459
    %570 = vmatpush1.bf16.msra.mxu0 %v458
    %571 = vmatprep.subr.bf16.mxu0 %v464
    %572 = vmatpush1.bf16.msra.mxu0 %v463
    %573 = vmatprep.subr.bf16.mxu0 %v469
    %574 = vmatpush1.bf16.msra.mxu0 %v468
    %575 = vmatprep.subr.bf16.mxu0 %v474
    %576 = vmatpush1.bf16.msra.mxu0 %v473
    %577 = vmatprep.subr.bf16.mxu0 %v479
    %578 = vmatpush1.bf16.msra.mxu0 %v478
    %579 = vmatprep.subr.bf16.mxu0 %v484
    %580 = vmatpush1.bf16.msra.mxu0 %v483
    %581 = vmatprep.subr.bf16.mxu0 %v489
    %582 = vmatpush1.bf16.msra.mxu0 %v488
    %583 = vmatprep.subr.bf16.mxu0 0
    %584 = vmatpush1.bf16.msra.mxu0 0
    %585 = vmatprep.subr.bf16.mxu0 0
    %586 = vmatpush1.bf16.msra.mxu0 0
    %587 = vmatprep.subr.bf16.mxu0 0
    %588 = vmatpush1.bf16.msra.mxu0 0
    %589 = vmatprep.subr.bf16.mxu0 0
    %590 = vmatpush1.bf16.msra.mxu0 0
    %591 = vmatprep.mubr.bf16.mxu0 %v554
    %592 = vmatmul.mubr.bf16.gmra.mrb[0].mxu0 %v165
    %v593 = vpop.f32.mrb[0].mxu0
    %v594 = vadd.f32 0.0, %v593
    %v595 = vpop.f32.mrb[0].mxu0
    %v596 = vadd.f32 0.0, %v595
    %v597 = vpop.f32.mrb[0].mxu0
    %v598 = vadd.f32 0.0, %v597
    %v599 = vpop.f32.mrb[0].mxu0
    %v600 = vadd.f32 0.0, %v599
    %601 = vmatprep.mubr.bf16.mxu0 %v557
    %602 = vmatmul.mubr.bf16.gmra.mrb[0].mxu0 %v167
    %v603 = vpop.f32.mrb[0].mxu0
    %v604 = vadd.f32 0.0, %v603
    %v605 = vpop.f32.mrb[0].mxu0
    %v606 = vadd.f32 0.0, %v605
    %v607 = vpop.f32.mrb[0].mxu0
    %v608 = vadd.f32 0.0, %v607
    %v609 = vpop.f32.mrb[0].mxu0
    %v610 = vadd.f32 0.0, %v609
    %611 = vdwg.mxu0
    %612 = vmatprep.subr.bf16.mxu0 %v436
    %613 = vmatpush1.bf16.msra.mxu0 %v435
    %614 = vmatprep.subr.bf16.mxu0 %v441
    %615 = vmatpush1.bf16.msra.mxu0 %v440
    %616 = vmatprep.subr.bf16.mxu0 %v446
    %617 = vmatpush1.bf16.msra.mxu0 %v445
    %618 = vmatprep.subr.bf16.mxu0 %v451
    %619 = vmatpush1.bf16.msra.mxu0 %v450
    %620 = vmatprep.subr.bf16.mxu0 %v456
    %621 = vmatpush1.bf16.msra.mxu0 %v455
    %622 = vmatprep.subr.bf16.mxu0 %v461
    %623 = vmatpush1.bf16.msra.mxu0 %v460
    %624 = vmatprep.subr.bf16.mxu0 %v466
    %625 = vmatpush1.bf16.msra.mxu0 %v465
    %626 = vmatprep.subr.bf16.mxu0 %v471
    %627 = vmatpush1.bf16.msra.mxu0 %v470
    %628 = vmatprep.subr.bf16.mxu0 %v476
    %629 = vmatpush1.bf16.msra.mxu0 %v475
    %630 = vmatprep.subr.bf16.mxu0 %v481
    %631 = vmatpush1.bf16.msra.mxu0 %v480
    %632 = vmatprep.subr.bf16.mxu0 %v486
    %633 = vmatpush1.bf16.msra.mxu0 %v485
    %634 = vmatprep.subr.bf16.mxu0 %v491
    %635 = vmatpush1.bf16.msra.mxu0 %v490
    %636 = vmatprep.subr.bf16.mxu0 0
    %637 = vmatpush1.bf16.msra.mxu0 0
    %638 = vmatprep.subr.bf16.mxu0 0
    %639 = vmatpush1.bf16.msra.mxu0 0
    %640 = vmatprep.subr.bf16.mxu0 0
    %641 = vmatpush1.bf16.msra.mxu0 0
    %642 = vmatprep.subr.bf16.mxu0 0
    %643 = vmatpush1.bf16.msra.mxu0 0
    %644 = vmatprep.mubr.bf16.mxu0 %v554
    %645 = vmatmul.mubr.bf16.gmra.mrb[0].mxu0 %v165
    %v646 = vpop.f32.mrb[0].mxu0
    %v647 = vadd.f32 0.0, %v646
    %v648 = vpop.f32.mrb[0].mxu0
    %v649 = vadd.f32 0.0, %v648
    %v650 = vpop.f32.mrb[0].mxu0
    %v651 = vadd.f32 0.0, %v650
    %v652 = vpop.f32.mrb[0].mxu0
    %v653 = vadd.f32 0.0, %v652
    %654 = vmatprep.mubr.bf16.mxu0 %v557
    %655 = vmatmul.mubr.bf16.gmra.mrb[0].mxu0 %v167
    %v656 = vpop.f32.mrb[0].mxu0
    %v657 = vadd.f32 0.0, %v656
    %v658 = vpop.f32.mrb[0].mxu0
    %v659 = vadd.f32 0.0, %v658
    %v660 = vpop.f32.mrb[0].mxu0
    %v661 = vadd.f32 0.0, %v660
    %v662 = vpop.f32.mrb[0].mxu0
    %v663 = vadd.f32 0.0, %v662
    %664 = vdwg.mxu0
    %665 = vmatprep.subr.bf16.mxu0 0
    %666 = vmatpush1.bf16.msra.mxu0 %v437
    %667 = vmatprep.subr.bf16.mxu0 0
    %668 = vmatpush1.bf16.msra.mxu0 %v442
    %669 = vmatprep.subr.bf16.mxu0 0
    %670 = vmatpush1.bf16.msra.mxu0 %v447
    %671 = vmatprep.subr.bf16.mxu0 0
    %672 = vmatpush1.bf16.msra.mxu0 %v452
    %673 = vmatprep.subr.bf16.mxu0 0
    %674 = vmatpush1.bf16.msra.mxu0 %v457
    %675 = vmatprep.subr.bf16.mxu0 0
    %676 = vmatpush1.bf16.msra.mxu0 %v462
    %677 = vmatprep.subr.bf16.mxu0 0
    %678 = vmatpush1.bf16.msra.mxu0 %v467
    %679 = vmatprep.subr.bf16.mxu0 0
    %680 = vmatpush1.bf16.msra.mxu0 %v472
    %681 = vmatprep.subr.bf16.mxu0 0
    %682 = vmatpush1.bf16.msra.mxu0 %v477
    %683 = vmatprep.subr.bf16.mxu0 0
    %684 = vmatpush1.bf16.msra.mxu0 %v482
    %685 = vmatprep.subr.bf16.mxu0 0
    %686 = vmatpush1.bf16.msra.mxu0 %v487
    %687 = vmatprep.subr.bf16.mxu0 0
    %688 = vmatpush1.bf16.msra.mxu0 %v492
    %689 = vmatprep.subr.bf16.mxu0 0
    %690 = vmatpush1.bf16.msra.mxu0 0
    %691 = vmatprep.subr.bf16.mxu0 0
    %692 = vmatpush1.bf16.msra.mxu0 0
    %693 = vmatprep.subr.bf16.mxu0 0
    %694 = vmatpush1.bf16.msra.mxu0 0
    %695 = vmatprep.subr.bf16.mxu0 0
    %696 = vmatpush1.bf16.msra.mxu0 0
    %697 = vmatprep.mubr.bf16.mxu0 %v554
    %698 = vmatmul.mubr.bf16.gmra.mrb[0].mxu0 %v165
    %v699 = vpop.f32.mrb[0].mxu0
    %v700 = vadd.f32 0.0, %v699
    %v701 = vpop.f32.mrb[0].mxu0
    %v702 = vpop.f32.mrb[0].mxu0
    %v703 = vadd.f32 0.0, %v702
    %v704 = vpop.f32.mrb[0].mxu0
    %705 = vmatprep.mubr.bf16.mxu0 %v557
    %706 = vmatmul.mubr.bf16.gmra.mrb[0].mxu0 %v167
    %v707 = vpop.f32.mrb[0].mxu0
    %v708 = vadd.f32 0.0, %v707
    %v709 = vpop.f32.mrb[0].mxu0
    %v710 = vpop.f32.mrb[0].mxu0
    %v711 = vadd.f32 0.0, %v710
    %v712 = vpop.f32.mrb[0].mxu0
    %713 = vdwg.mxu0
    %v714 = vpack.c.bf16 %v598, %v594
    %v715 = vpack.c.bf16 %v600, %v596
    %v716 = vpack.c.bf16 %v651, %v647
    %v717 = vpack.c.bf16 %v653, %v649
    %v718 = vpack.c.bf16 %v703, %v700
    %v719 = vpack.c.bf16 %v608, %v604
    %v720 = vpack.c.bf16 %v610, %v606
    %v721 = vpack.c.bf16 %v661, %v657
    %v722 = vpack.c.bf16 %v663, %v659
    %v723 = vpack.c.bf16 %v711, %v708
    %726 = vrot.lane.b32.xlu0 %v714, 64
    %v727 = vpop.permute.xlu0 %726
    %728 = vrot.lane.b32.xlu0 %v719, 64
    %v729 = vpop.permute.xlu0 %728
    %732 = vrot.lane.b32.xlu0 %v716, 64
    %v733 = vpop.permute.xlu0 %732
    %734 = vrot.lane.b32.xlu0 %v721, 64
    %v735 = vpop.permute.xlu0 %734
    %738 = vrot.lane.b32.xlu0 %v717, 64
    %v739 = vpop.permute.xlu0 %738
    %740 = vrot.lane.b32.xlu0 %v722, 64
    %v741 = vpop.permute.xlu0 %740
    %v744 = vlaneseq
    %v745 = vshrl.u32 %v744, 7
    %v746 = vadd.s32 %v745, 8
    %v747 = vlaneseq
    %v748 = vand.u32 %v747, 127
    %vm749 = vcmp.ge.s32.totalorder %v745, %v748
    %vm750 = vcmp.ge.s32.totalorder %v746, %v748
    %752 = vrot.lane.b32.xlu0 %v715, 64
    %v753 = vpop.permute.xlu0 %752
    %v755 = vsel %vm53, %v714, 0
    %v758 = vsel %vm53, %v753, 0
    %760 = vmatprep.subr.bf16.mxu0 0
    %761 = vmatpush1.bf16.xpose.msra.mxu0 %v758
    %762 = vmatprep.subr.bf16.mxu0 0
    %763 = vmatpush1.bf16.xpose.msra.mxu0 0
    %764 = vmatprep.subr.bf16.mxu0 0
    %765 = vmatpush1.bf16.xpose.msra.mxu0 0
    %766 = vmatprep.subr.bf16.mxu0 0
    %767 = vmatpush1.bf16.xpose.msra.mxu0 0
    %768 = vmatprep.subr.bf16.mxu0 0
    %769 = vmatpush1.bf16.xpose.msra.mxu0 0
    %770 = vmatprep.subr.bf16.mxu0 0
    %771 = vmatpush1.bf16.xpose.msra.mxu0 0
    %772 = vmatprep.subr.bf16.mxu0 0
    %773 = vmatpush1.bf16.xpose.msra.mxu0 0
    %774 = vmatprep.subr.bf16.mxu0 0
    %775 = vmatpush1.bf16.xpose.msra.mxu0 0
    %776 = vmatprep.subr.bf16.mxu0 0
    %777 = vmatpush1.bf16.xpose.msra.mxu0 0
    %778 = vmatprep.subr.bf16.mxu0 0
    %779 = vmatpush1.bf16.xpose.msra.mxu0 0
    %780 = vmatprep.subr.bf16.mxu0 0
    %781 = vmatpush1.bf16.xpose.msra.mxu0 0
    %782 = vmatprep.subr.bf16.mxu0 0
    %783 = vmatpush1.bf16.xpose.msra.mxu0 0
    %784 = vmatprep.subr.bf16.mxu0 0
    %785 = vmatpush1.bf16.xpose.msra.mxu0 0
    %786 = vmatprep.subr.bf16.mxu0 0
    %787 = vmatpush1.bf16.xpose.msra.mxu0 0
    %788 = vmatprep.subr.bf16.mxu0 0
    %789 = vmatpush1.bf16.xpose.msra.mxu0 0
    %790 = vmatprep.subr.bf16.mxu0 0
    %791 = vmatpush1.bf16.xpose.msra.mxu0 0
    %792 = vmatprep.mubr.bf16.mxu0 0
    %793 = vmatmul.mubr.bf16.gmra.mrb[0].mxu0 %v755
    %v794 = vpop.f32.mrb[0].mxu0
    %v795 = vadd.f32 0.0, %v794
    %v796 = vpop.f32.mrb[0].mxu0
    %v797 = vpop.f32.mrb[0].mxu0
    %v798 = vadd.f32 0.0, %v797
    %v799 = vpop.f32.mrb[0].mxu0
    %800 = vdwg.mxu0
    %802 = vrot.lane.b32.xlu0 %v720, 64
    %v803 = vpop.permute.xlu0 %802
    %v805 = vsel %vm53, %v719, 0
    %v808 = vsel %vm53, %v803, 0
    %810 = vmatprep.subr.bf16.mxu0 0
    %811 = vmatpush1.bf16.xpose.msra.mxu0 %v808
    %812 = vmatprep.subr.bf16.mxu0 0
    %813 = vmatpush1.bf16.xpose.msra.mxu0 0
    %814 = vmatprep.subr.bf16.mxu0 0
    %815 = vmatpush1.bf16.xpose.msra.mxu0 0
    %816 = vmatprep.subr.bf16.mxu0 0
    %817 = vmatpush1.bf16.xpose.msra.mxu0 0
    %818 = vmatprep.subr.bf16.mxu0 0
    %819 = vmatpush1.bf16.xpose.msra.mxu0 0
    %820 = vmatprep.subr.bf16.mxu0 0
    %821 = vmatpush1.bf16.xpose.msra.mxu0 0
    %822 = vmatprep.subr.bf16.mxu0 0
    %823 = vmatpush1.bf16.xpose.msra.mxu0 0
    %824 = vmatprep.subr.bf16.mxu0 0
    %825 = vmatpush1.bf16.xpose.msra.mxu0 0
    %826 = vmatprep.subr.bf16.mxu0 0
    %827 = vmatpush1.bf16.xpose.msra.mxu0 0
    %828 = vmatprep.subr.bf16.mxu0 0
    %829 = vmatpush1.bf16.xpose.msra.mxu0 0
    %830 = vmatprep.subr.bf16.mxu0 0
    %831 = vmatpush1.bf16.xpose.msra.mxu0 0
    %832 = vmatprep.subr.bf16.mxu0 0
    %833 = vmatpush1.bf16.xpose.msra.mxu0 0
    %834 = vmatprep.subr.bf16.mxu0 0
    %835 = vmatpush1.bf16.xpose.msra.mxu0 0
    %836 = vmatprep.subr.bf16.mxu0 0
    %837 = vmatpush1.bf16.xpose.msra.mxu0 0
    %838 = vmatprep.subr.bf16.mxu0 0
    %839 = vmatpush1.bf16.xpose.msra.mxu0 0
    %840 = vmatprep.subr.bf16.mxu0 0
    %841 = vmatpush1.bf16.xpose.msra.mxu0 0
    %842 = vmatprep.mubr.bf16.mxu0 0
    %843 = vmatmul.mubr.bf16.gmra.mrb[0].mxu0 %v805
    %v844 = vpop.f32.mrb[0].mxu0
    %v845 = vadd.f32 0.0, %v844
    %v846 = vpop.f32.mrb[0].mxu0
    %v847 = vpop.f32.mrb[0].mxu0
    %v848 = vadd.f32 0.0, %v847
    %v849 = vpop.f32.mrb[0].mxu0
    %850 = vdwg.mxu0
    %851 = vrot.lane.b32.xlu0 %v733, 64
    %v852 = vpop.permute.xlu0 %851
    %v854 = vsel %vm53, %v727, 0
    %v857 = vsel %vm53, %v852, 0
    %859 = vmatprep.subr.bf16.mxu0 0
    %860 = vmatpush1.bf16.xpose.msra.mxu0 %v857
    %861 = vmatprep.subr.bf16.mxu0 0
    %862 = vmatpush1.bf16.xpose.msra.mxu0 0
    %863 = vmatprep.subr.bf16.mxu0 0
    %864 = vmatpush1.bf16.xpose.msra.mxu0 0
    %865 = vmatprep.subr.bf16.mxu0 0
    %866 = vmatpush1.bf16.xpose.msra.mxu0 0
    %867 = vmatprep.subr.bf16.mxu0 0
    %868 = vmatpush1.bf16.xpose.msra.mxu0 0
    %869 = vmatprep.subr.bf16.mxu0 0
    %870 = vmatpush1.bf16.xpose.msra.mxu0 0
    %871 = vmatprep.subr.bf16.mxu0 0
    %872 = vmatpush1.bf16.xpose.msra.mxu0 0
    %873 = vmatprep.subr.bf16.mxu0 0
    %874 = vmatpush1.bf16.xpose.msra.mxu0 0
    %875 = vmatprep.subr.bf16.mxu0 0
    %876 = vmatpush1.bf16.xpose.msra.mxu0 0
    %877 = vmatprep.subr.bf16.mxu0 0
    %878 = vmatpush1.bf16.xpose.msra.mxu0 0
    %879 = vmatprep.subr.bf16.mxu0 0
    %880 = vmatpush1.bf16.xpose.msra.mxu0 0
    %881 = vmatprep.subr.bf16.mxu0 0
    %882 = vmatpush1.bf16.xpose.msra.mxu0 0
    %883 = vmatprep.subr.bf16.mxu0 0
    %884 = vmatpush1.bf16.xpose.msra.mxu0 0
    %885 = vmatprep.subr.bf16.mxu0 0
    %886 = vmatpush1.bf16.xpose.msra.mxu0 0
    %887 = vmatprep.subr.bf16.mxu0 0
    %888 = vmatpush1.bf16.xpose.msra.mxu0 0
    %889 = vmatprep.subr.bf16.mxu0 0
    %890 = vmatpush1.bf16.xpose.msra.mxu0 0
    %891 = vmatprep.mubr.bf16.mxu0 0
    %892 = vmatmul.mubr.bf16.gmra.mrb[0].mxu0 %v854
    %v893 = vpop.f32.mrb[0].mxu0
    %v894 = vadd.f32 0.0, %v893
    %v895 = vpop.f32.mrb[0].mxu0
    %v896 = vpop.f32.mrb[0].mxu0
    %v897 = vadd.f32 0.0, %v896
    %v898 = vpop.f32.mrb[0].mxu0
    %899 = vdwg.mxu0
    %900 = vrot.lane.b32.xlu0 %v735, 64
    %v901 = vpop.permute.xlu0 %900
    %v903 = vsel %vm53, %v729, 0
    %v906 = vsel %vm53, %v901, 0
    %908 = vmatprep.subr.bf16.mxu0 0
    %909 = vmatpush1.bf16.xpose.msra.mxu0 %v906
    %910 = vmatprep.subr.bf16.mxu0 0
    %911 = vmatpush1.bf16.xpose.msra.mxu0 0
    %912 = vmatprep.subr.bf16.mxu0 0
    %913 = vmatpush1.bf16.xpose.msra.mxu0 0
    %914 = vmatprep.subr.bf16.mxu0 0
    %915 = vmatpush1.bf16.xpose.msra.mxu0 0
    %916 = vmatprep.subr.bf16.mxu0 0
    %917 = vmatpush1.bf16.xpose.msra.mxu0 0
    %918 = vmatprep.subr.bf16.mxu0 0
    %919 = vmatpush1.bf16.xpose.msra.mxu0 0
    %920 = vmatprep.subr.bf16.mxu0 0
    %921 = vmatpush1.bf16.xpose.msra.mxu0 0
    %922 = vmatprep.subr.bf16.mxu0 0
    %923 = vmatpush1.bf16.xpose.msra.mxu0 0
    %924 = vmatprep.subr.bf16.mxu0 0
    %925 = vmatpush1.bf16.xpose.msra.mxu0 0
    %926 = vmatprep.subr.bf16.mxu0 0
    %927 = vmatpush1.bf16.xpose.msra.mxu0 0
    %928 = vmatprep.subr.bf16.mxu0 0
    %929 = vmatpush1.bf16.xpose.msra.mxu0 0
    %930 = vmatprep.subr.bf16.mxu0 0
    %931 = vmatpush1.bf16.xpose.msra.mxu0 0
    %932 = vmatprep.subr.bf16.mxu0 0
    %933 = vmatpush1.bf16.xpose.msra.mxu0 0
    %934 = vmatprep.subr.bf16.mxu0 0
    %935 = vmatpush1.bf16.xpose.msra.mxu0 0
    %936 = vmatprep.subr.bf16.mxu0 0
    %937 = vmatpush1.bf16.xpose.msra.mxu0 0
    %938 = vmatprep.subr.bf16.mxu0 0
    %939 = vmatpush1.bf16.xpose.msra.mxu0 0
    %940 = vmatprep.mubr.bf16.mxu0 0
    %941 = vmatmul.mubr.bf16.gmra.mrb[0].mxu0 %v903
    %v942 = vpop.f32.mrb[0].mxu0
    %v943 = vadd.f32 0.0, %v942
    %v944 = vpop.f32.mrb[0].mxu0
    %v945 = vpop.f32.mrb[0].mxu0
    %v946 = vadd.f32 0.0, %v945
    %v947 = vpop.f32.mrb[0].mxu0
    %948 = vdwg.mxu0
    %v950 = vsel %vm53, %v715, 0
    %v953 = vsel %vm53, %v733, 0
    %955 = vmatprep.subr.bf16.mxu0 0
    %956 = vmatpush1.bf16.xpose.msra.mxu0 %v953
    %957 = vmatprep.subr.bf16.mxu0 0
    %958 = vmatpush1.bf16.xpose.msra.mxu0 0
    %959 = vmatprep.subr.bf16.mxu0 0
    %960 = vmatpush1.bf16.xpose.msra.mxu0 0
    %961 = vmatprep.subr.bf16.mxu0 0
    %962 = vmatpush1.bf16.xpose.msra.mxu0 0
    %963 = vmatprep.subr.bf16.mxu0 0
    %964 = vmatpush1.bf16.xpose.msra.mxu0 0
    %965 = vmatprep.subr.bf16.mxu0 0
    %966 = vmatpush1.bf16.xpose.msra.mxu0 0
    %967 = vmatprep.subr.bf16.mxu0 0
    %968 = vmatpush1.bf16.xpose.msra.mxu0 0
    %969 = vmatprep.subr.bf16.mxu0 0
    %970 = vmatpush1.bf16.xpose.msra.mxu0 0
    %971 = vmatprep.subr.bf16.mxu0 0
    %972 = vmatpush1.bf16.xpose.msra.mxu0 0
    %973 = vmatprep.subr.bf16.mxu0 0
    %974 = vmatpush1.bf16.xpose.msra.mxu0 0
    %975 = vmatprep.subr.bf16.mxu0 0
    %976 = vmatpush1.bf16.xpose.msra.mxu0 0
    %977 = vmatprep.subr.bf16.mxu0 0
    %978 = vmatpush1.bf16.xpose.msra.mxu0 0
    %979 = vmatprep.subr.bf16.mxu0 0
    %980 = vmatpush1.bf16.xpose.msra.mxu0 0
    %981 = vmatprep.subr.bf16.mxu0 0
    %982 = vmatpush1.bf16.xpose.msra.mxu0 0
    %983 = vmatprep.subr.bf16.mxu0 0
    %984 = vmatpush1.bf16.xpose.msra.mxu0 0
    %985 = vmatprep.subr.bf16.mxu0 0
    %986 = vmatpush1.bf16.xpose.msra.mxu0 0
    %987 = vmatprep.mubr.bf16.mxu0 0
    %988 = vmatmul.mubr.bf16.gmra.mrb[0].mxu0 %v950
    %v989 = vpop.f32.mrb[0].mxu0
    %v990 = vadd.f32 0.0, %v989
    %v991 = vpop.f32.mrb[0].mxu0
    %v992 = vpop.f32.mrb[0].mxu0
    %v993 = vadd.f32 0.0, %v992
    %v994 = vpop.f32.mrb[0].mxu0
    %995 = vdwg.mxu0
    %v997 = vsel %vm53, %v720, 0
    %v1000 = vsel %vm53, %v735, 0
    %1002 = vmatprep.subr.bf16.mxu0 0
    %1003 = vmatpush1.bf16.xpose.msra.mxu0 %v1000
    %1004 = vmatprep.subr.bf16.mxu0 0
    %1005 = vmatpush1.bf16.xpose.msra.mxu0 0
    %1006 = vmatprep.subr.bf16.mxu0 0
    %1007 = vmatpush1.bf16.xpose.msra.mxu0 0
    %1008 = vmatprep.subr.bf16.mxu0 0
    %1009 = vmatpush1.bf16.xpose.msra.mxu0 0
    %1010 = vmatprep.subr.bf16.mxu0 0
    %1011 = vmatpush1.bf16.xpose.msra.mxu0 0
    %1012 = vmatprep.subr.bf16.mxu0 0
    %1013 = vmatpush1.bf16.xpose.msra.mxu0 0
    %1014 = vmatprep.subr.bf16.mxu0 0
    %1015 = vmatpush1.bf16.xpose.msra.mxu0 0
    %1016 = vmatprep.subr.bf16.mxu0 0
    %1017 = vmatpush1.bf16.xpose.msra.mxu0 0
    %1018 = vmatprep.subr.bf16.mxu0 0
    %1019 = vmatpush1.bf16.xpose.msra.mxu0 0
    %1020 = vmatprep.subr.bf16.mxu0 0
    %1021 = vmatpush1.bf16.xpose.msra.mxu0 0
    %1022 = vmatprep.subr.bf16.mxu0 0
    %1023 = vmatpush1.bf16.xpose.msra.mxu0 0
    %1024 = vmatprep.subr.bf16.mxu0 0
    %1025 = vmatpush1.bf16.xpose.msra.mxu0 0
    %1026 = vmatprep.subr.bf16.mxu0 0
    %1027 = vmatpush1.bf16.xpose.msra.mxu0 0
    %1028 = vmatprep.subr.bf16.mxu0 0
    %1029 = vmatpush1.bf16.xpose.msra.mxu0 0
    %1030 = vmatprep.subr.bf16.mxu0 0
    %1031 = vmatpush1.bf16.xpose.msra.mxu0 0
    %1032 = vmatprep.subr.bf16.mxu0 0
    %1033 = vmatpush1.bf16.xpose.msra.mxu0 0
    %1034 = vmatprep.mubr.bf16.mxu0 0
    %1035 = vmatmul.mubr.bf16.gmra.mrb[0].mxu0 %v997
    %v1036 = vpop.f32.mrb[0].mxu0
    %v1037 = vadd.f32 0.0, %v1036
    %v1038 = vpop.f32.mrb[0].mxu0
    %v1039 = vpop.f32.mrb[0].mxu0
    %v1040 = vadd.f32 0.0, %v1039
    %v1041 = vpop.f32.mrb[0].mxu0
    %1042 = vdwg.mxu0
    %v1043 = vmul.f32 %v795, 0.125
    %v1044 = vmul.f32 %v798, 0.125
    %v1045 = vmul.f32 %v845, 0.125
    %v1046 = vmul.f32 %v848, 0.125
    %v1047 = vmul.f32 %v894, 0.125
    %v1048 = vmul.f32 %v897, 0.125
    %v1049 = vmul.f32 %v943, 0.125
    %v1050 = vmul.f32 %v946, 0.125
    %v1051 = vmul.f32 %v990, 0.125
    %v1052 = vmul.f32 %v993, 0.125
    %v1053 = vmul.f32 %v1037, 0.125
    %v1054 = vmul.f32 %v1040, 0.125
    %v1055 = vsel %vm749, 1, 0
    %v1056 = vsel %vm750, 1, 0
    %vm1057 = vcmp.eq.s32.totalorder %v1055, 1
    %vm1058 = vcmp.eq.s32.totalorder %v1056, 1
    %v1059 = vsel %vm1057, %v1043, -1e+30
    %v1060 = vsel %vm1058, %v1044, -1e+30
    %v1061 = vsel %vm1057, %v1045, -1e+30
    %v1062 = vsel %vm1058, %v1046, -1e+30
    %v1063 = vsel %vm1057, %v1047, -1e+30
    %v1064 = vsel %vm1058, %v1048, -1e+30
    %v1065 = vsel %vm1057, %v1049, -1e+30
    %v1066 = vsel %vm1058, %v1050, -1e+30
    %v1067 = vsel %vm1057, %v1051, -1e+30
    %v1068 = vsel %vm1058, %v1052, -1e+30
    %v1069 = vsel %vm1057, %v1053, -1e+30
    %v1070 = vsel %vm1058, %v1054, -1e+30
    %vm1071 = vcmask 130048
    %v1072 = vsel %vm1071, %v1059, -inf
    %1073 = vmax.xlane.f32.xlu0 %v1072
    %v1074 = vpop.xlane.xlu0 %1073
    %v1075 = vsel %vm1071, %v1060, -inf
    %1076 = vmax.xlane.f32.xlu0 %v1075
    %v1077 = vpop.xlane.xlu0 %1076
    %v1078 = vsel %vm1071, %v1061, -inf
    %1079 = vmax.xlane.f32.xlu0 %v1078
    %v1080 = vpop.xlane.xlu0 %1079
    %v1081 = vsel %vm1071, %v1062, -inf
    %1082 = vmax.xlane.f32.xlu0 %v1081
    %v1083 = vpop.xlane.xlu0 %1082
    %v1084 = vsel %vm1071, %v1063, -inf
    %1085 = vmax.xlane.f32.xlu0 %v1084
    %v1086 = vpop.xlane.xlu0 %1085
    %v1087 = vsel %vm1071, %v1064, -inf
    %1088 = vmax.xlane.f32.xlu0 %v1087
    %v1089 = vpop.xlane.xlu0 %1088
    %v1090 = vsel %vm1071, %v1065, -inf
    %1091 = vmax.xlane.f32.xlu0 %v1090
    %v1092 = vpop.xlane.xlu0 %1091
    %v1093 = vsel %vm1071, %v1066, -inf
    %1094 = vmax.xlane.f32.xlu0 %v1093
    %v1095 = vpop.xlane.xlu0 %1094
    %v1096 = vsel %vm1071, %v1067, -inf
    %1097 = vmax.xlane.f32.xlu0 %v1096
    %v1098 = vpop.xlane.xlu0 %1097
    %v1099 = vsel %vm1071, %v1068, -inf
    %1100 = vmax.xlane.f32.xlu0 %v1099
    %v1101 = vpop.xlane.xlu0 %1100
    %v1102 = vsel %vm1071, %v1069, -inf
    %1103 = vmax.xlane.f32.xlu0 %v1102
    %v1104 = vpop.xlane.xlu0 %1103
    %v1105 = vsel %vm1071, %v1070, -inf
    %1106 = vmax.xlane.f32.xlu0 %v1105
    %v1107 = vpop.xlane.xlu0 %1106
    %v1108 = vsub.f32 %v1059, %v1074
    %v1109 = vsub.f32 %v1060, %v1077
    %v1110 = vsub.f32 %v1061, %v1080
    %v1111 = vsub.f32 %v1062, %v1083
    %v1112 = vsub.f32 %v1063, %v1086
    %v1113 = vsub.f32 %v1064, %v1089
    %v1114 = vsub.f32 %v1065, %v1092
    %v1115 = vsub.f32 %v1066, %v1095
    %v1116 = vsub.f32 %v1067, %v1098
    %v1117 = vsub.f32 %v1068, %v1101
    %v1118 = vsub.f32 %v1069, %v1104
    %v1119 = vsub.f32 %v1070, %v1107
    %v1120 = vmul.f32 %v1108, 1.442695
    %v1121 = vpow.pop %v1120
    %v1122 = vmul.f32 %v1109, 1.442695
    %v1123 = vpow.pop %v1122
    %v1124 = vmul.f32 %v1110, 1.442695
    %v1125 = vpow.pop %v1124
    %v1126 = vmul.f32 %v1111, 1.442695
    %v1127 = vpow.pop %v1126
    %v1128 = vmul.f32 %v1112, 1.442695
    %v1129 = vpow.pop %v1128
    %v1130 = vmul.f32 %v1113, 1.442695
    %v1131 = vpow.pop %v1130
    %v1132 = vmul.f32 %v1114, 1.442695
    %v1133 = vpow.pop %v1132
    %v1134 = vmul.f32 %v1115, 1.442695
    %v1135 = vpow.pop %v1134
    %v1136 = vmul.f32 %v1116, 1.442695
    %v1137 = vpow.pop %v1136
    %v1138 = vmul.f32 %v1117, 1.442695
    %v1139 = vpow.pop %v1138
    %v1140 = vmul.f32 %v1118, 1.442695
    %v1141 = vpow.pop %v1140
    %v1142 = vmul.f32 %v1119, 1.442695
    %v1143 = vpow.pop %v1142
    %v1144 = vsel %vm1071, %v1121, 0.0
    %1145 = vadd.xlane.f32.xlu0 %v1144
    %v1146 = vpop.xlane.xlu0 %1145
    %v1147 = vsel %vm1071, %v1123, 0.0
    %1148 = vadd.xlane.f32.xlu0 %v1147
    %v1149 = vpop.xlane.xlu0 %1148
    %v1150 = vsel %vm1071, %v1125, 0.0
    %1151 = vadd.xlane.f32.xlu0 %v1150
    %v1152 = vpop.xlane.xlu0 %1151
    %v1153 = vsel %vm1071, %v1127, 0.0
    %1154 = vadd.xlane.f32.xlu0 %v1153
    %v1155 = vpop.xlane.xlu0 %1154
    %v1156 = vsel %vm1071, %v1129, 0.0
    %1157 = vadd.xlane.f32.xlu0 %v1156
    %v1158 = vpop.xlane.xlu0 %1157
    %v1159 = vsel %vm1071, %v1131, 0.0
    %1160 = vadd.xlane.f32.xlu0 %v1159
    %v1161 = vpop.xlane.xlu0 %1160
    %v1162 = vsel %vm1071, %v1133, 0.0
    %1163 = vadd.xlane.f32.xlu0 %v1162
    %v1164 = vpop.xlane.xlu0 %1163
    %v1165 = vsel %vm1071, %v1135, 0.0
    %1166 = vadd.xlane.f32.xlu0 %v1165
    %v1167 = vpop.xlane.xlu0 %1166
    %v1168 = vsel %vm1071, %v1137, 0.0
    %1169 = vadd.xlane.f32.xlu0 %v1168
    %v1170 = vpop.xlane.xlu0 %1169
    %v1171 = vsel %vm1071, %v1139, 0.0
    %1172 = vadd.xlane.f32.xlu0 %v1171
    %v1173 = vpop.xlane.xlu0 %1172
    %v1174 = vsel %vm1071, %v1141, 0.0
    %1175 = vadd.xlane.f32.xlu0 %v1174
    %v1176 = vpop.xlane.xlu0 %1175
    %v1177 = vsel %vm1071, %v1143, 0.0
    %1178 = vadd.xlane.f32.xlu0 %v1177
    %v1179 = vpop.xlane.xlu0 %1178
    %v1180 = vrcp.pop %v1146
    %v1181 = vrcp.pop %v1149
    %v1182 = vrcp.pop %v1152
    %v1183 = vrcp.pop %v1155
    %v1184 = vrcp.pop %v1158
    %v1185 = vrcp.pop %v1161
    %v1186 = vrcp.pop %v1164
    %v1187 = vrcp.pop %v1167
    %v1188 = vrcp.pop %v1170
    %v1189 = vrcp.pop %v1173
    %v1190 = vrcp.pop %v1176
    %v1191 = vrcp.pop %v1179
    %v1192 = vmul.f32 %v1121, %v1180
    %v1193 = vmul.f32 %v1123, %v1181
    %v1194 = vmul.f32 %v1125, %v1182
    %v1195 = vmul.f32 %v1127, %v1183
    %v1196 = vmul.f32 %v1129, %v1184
    %v1197 = vmul.f32 %v1131, %v1185
    %v1198 = vmul.f32 %v1133, %v1186
    %v1199 = vmul.f32 %v1135, %v1187
    %v1200 = vmul.f32 %v1137, %v1188
    %v1201 = vmul.f32 %v1139, %v1189
    %v1202 = vmul.f32 %v1141, %v1190
    %v1203 = vmul.f32 %v1143, %v1191
    %v1204 = vpack.c.bf16 %v1193, %v1192
    %v1205 = vpack.c.bf16 %v1195, %v1194
    %v1206 = vpack.c.bf16 %v1197, %v1196
    %v1207 = vpack.c.bf16 %v1199, %v1198
    %v1208 = vpack.c.bf16 %v1201, %v1200
    %v1209 = vpack.c.bf16 %v1203, %v1202
    %v1211 = vsel %vm1071, %v1204, 0
    %1213 = vmatprep.subr.bf16.mxu0 0
    %1214 = vmatpush1.bf16.msra.mxu0 %v717
    %1215 = vmatprep.subr.bf16.mxu0 0
    %1216 = vmatpush1.bf16.msra.mxu0 0
    %1217 = vmatprep.subr.bf16.mxu0 0
    %1218 = vmatpush1.bf16.msra.mxu0 0
    %1219 = vmatprep.subr.bf16.mxu0 0
    %1220 = vmatpush1.bf16.msra.mxu0 0
    %1221 = vmatprep.subr.bf16.mxu0 0
    %1222 = vmatpush1.bf16.msra.mxu0 0
    %1223 = vmatprep.subr.bf16.mxu0 0
    %1224 = vmatpush1.bf16.msra.mxu0 0
    %1225 = vmatprep.subr.bf16.mxu0 0
    %1226 = vmatpush1.bf16.msra.mxu0 0
    %1227 = vmatprep.subr.bf16.mxu0 0
    %1228 = vmatpush1.bf16.msra.mxu0 0
    %1229 = vmatprep.subr.bf16.mxu0 0
    %1230 = vmatpush1.bf16.msra.mxu0 0
    %1231 = vmatprep.subr.bf16.mxu0 0
    %1232 = vmatpush1.bf16.msra.mxu0 0
    %1233 = vmatprep.subr.bf16.mxu0 0
    %1234 = vmatpush1.bf16.msra.mxu0 0
    %1235 = vmatprep.subr.bf16.mxu0 0
    %1236 = vmatpush1.bf16.msra.mxu0 0
    %1237 = vmatprep.subr.bf16.mxu0 0
    %1238 = vmatpush1.bf16.msra.mxu0 0
    %1239 = vmatprep.subr.bf16.mxu0 0
    %1240 = vmatpush1.bf16.msra.mxu0 0
    %1241 = vmatprep.subr.bf16.mxu0 0
    %1242 = vmatpush1.bf16.msra.mxu0 0
    %1243 = vmatprep.subr.bf16.mxu0 0
    %1244 = vmatpush1.bf16.msra.mxu0 0
    %1245 = vmatprep.mubr.bf16.mxu0 0
    %1246 = vmatmul.mubr.bf16.gmra.mrb[0].mxu0 %v1211
    %v1247 = vpop.f32.mrb[0].mxu0
    %v1248 = vadd.f32 0.0, %v1247
    %v1249 = vpop.f32.mrb[0].mxu0
    %v1250 = vpop.f32.mrb[0].mxu0
    %v1251 = vadd.f32 0.0, %v1250
    %v1252 = vpop.f32.mrb[0].mxu0
    %1253 = vdwg.mxu0
    %v1255 = vsel %vm1071, %v1205, 0
    %1257 = vmatprep.subr.bf16.mxu0 0
    %1258 = vmatpush1.bf16.msra.mxu0 %v722
    %1259 = vmatprep.subr.bf16.mxu0 0
    %1260 = vmatpush1.bf16.msra.mxu0 0
    %1261 = vmatprep.subr.bf16.mxu0 0
    %1262 = vmatpush1.bf16.msra.mxu0 0
    %1263 = vmatprep.subr.bf16.mxu0 0
    %1264 = vmatpush1.bf16.msra.mxu0 0
    %1265 = vmatprep.subr.bf16.mxu0 0
    %1266 = vmatpush1.bf16.msra.mxu0 0
    %1267 = vmatprep.subr.bf16.mxu0 0
    %1268 = vmatpush1.bf16.msra.mxu0 0
    %1269 = vmatprep.subr.bf16.mxu0 0
    %1270 = vmatpush1.bf16.msra.mxu0 0
    %1271 = vmatprep.subr.bf16.mxu0 0
    %1272 = vmatpush1.bf16.msra.mxu0 0
    %1273 = vmatprep.subr.bf16.mxu0 0
    %1274 = vmatpush1.bf16.msra.mxu0 0
    %1275 = vmatprep.subr.bf16.mxu0 0
    %1276 = vmatpush1.bf16.msra.mxu0 0
    %1277 = vmatprep.subr.bf16.mxu0 0
    %1278 = vmatpush1.bf16.msra.mxu0 0
    %1279 = vmatprep.subr.bf16.mxu0 0
    %1280 = vmatpush1.bf16.msra.mxu0 0
    %1281 = vmatprep.subr.bf16.mxu0 0
    %1282 = vmatpush1.bf16.msra.mxu0 0
    %1283 = vmatprep.subr.bf16.mxu0 0
    %1284 = vmatpush1.bf16.msra.mxu0 0
    %1285 = vmatprep.subr.bf16.mxu0 0
    %1286 = vmatpush1.bf16.msra.mxu0 0
    %1287 = vmatprep.subr.bf16.mxu0 0
    %1288 = vmatpush1.bf16.msra.mxu0 0
    %1289 = vmatprep.mubr.bf16.mxu0 0
    %1290 = vmatmul.mubr.bf16.gmra.mrb[0].mxu0 %v1255
    %v1291 = vpop.f32.mrb[0].mxu0
    %v1292 = vadd.f32 0.0, %v1291
    %v1293 = vpop.f32.mrb[0].mxu0
    %v1294 = vpop.f32.mrb[0].mxu0
    %v1295 = vadd.f32 0.0, %v1294
    %v1296 = vpop.f32.mrb[0].mxu0
    %1297 = vdwg.mxu0
    %v1299 = vsel %vm1071, %v1206, 0
    %1301 = vmatprep.subr.bf16.mxu0 0
    %1302 = vmatpush1.bf16.msra.mxu0 %v739
    %1303 = vmatprep.subr.bf16.mxu0 0
    %1304 = vmatpush1.bf16.msra.mxu0 0
    %1305 = vmatprep.subr.bf16.mxu0 0
    %1306 = vmatpush1.bf16.msra.mxu0 0
    %1307 = vmatprep.subr.bf16.mxu0 0
    %1308 = vmatpush1.bf16.msra.mxu0 0
    %1309 = vmatprep.subr.bf16.mxu0 0
    %1310 = vmatpush1.bf16.msra.mxu0 0
    %1311 = vmatprep.subr.bf16.mxu0 0
    %1312 = vmatpush1.bf16.msra.mxu0 0
    %1313 = vmatprep.subr.bf16.mxu0 0
    %1314 = vmatpush1.bf16.msra.mxu0 0
    %1315 = vmatprep.subr.bf16.mxu0 0
    %1316 = vmatpush1.bf16.msra.mxu0 0
    %1317 = vmatprep.subr.bf16.mxu0 0
    %1318 = vmatpush1.bf16.msra.mxu0 0
    %1319 = vmatprep.subr.bf16.mxu0 0
    %1320 = vmatpush1.bf16.msra.mxu0 0
    %1321 = vmatprep.subr.bf16.mxu0 0
    %1322 = vmatpush1.bf16.msra.mxu0 0
    %1323 = vmatprep.subr.bf16.mxu0 0
    %1324 = vmatpush1.bf16.msra.mxu0 0
    %1325 = vmatprep.subr.bf16.mxu0 0
    %1326 = vmatpush1.bf16.msra.mxu0 0
    %1327 = vmatprep.subr.bf16.mxu0 0
    %1328 = vmatpush1.bf16.msra.mxu0 0
    %1329 = vmatprep.subr.bf16.mxu0 0
    %1330 = vmatpush1.bf16.msra.mxu0 0
    %1331 = vmatprep.subr.bf16.mxu0 0
    %1332 = vmatpush1.bf16.msra.mxu0 0
    %1333 = vmatprep.mubr.bf16.mxu0 0
    %1334 = vmatmul.mubr.bf16.gmra.mrb[0].mxu0 %v1299
    %v1335 = vpop.f32.mrb[0].mxu0
    %v1336 = vadd.f32 0.0, %v1335
    %v1337 = vpop.f32.mrb[0].mxu0
    %v1338 = vpop.f32.mrb[0].mxu0
    %v1339 = vadd.f32 0.0, %v1338
    %v1340 = vpop.f32.mrb[0].mxu0
    %1341 = vdwg.mxu0
    %v1343 = vsel %vm1071, %v1207, 0
    %1345 = vmatprep.subr.bf16.mxu0 0
    %1346 = vmatpush1.bf16.msra.mxu0 %v741
    %1347 = vmatprep.subr.bf16.mxu0 0
    %1348 = vmatpush1.bf16.msra.mxu0 0
    %1349 = vmatprep.subr.bf16.mxu0 0
    %1350 = vmatpush1.bf16.msra.mxu0 0
    %1351 = vmatprep.subr.bf16.mxu0 0
    %1352 = vmatpush1.bf16.msra.mxu0 0
    %1353 = vmatprep.subr.bf16.mxu0 0
    %1354 = vmatpush1.bf16.msra.mxu0 0
    %1355 = vmatprep.subr.bf16.mxu0 0
    %1356 = vmatpush1.bf16.msra.mxu0 0
    %1357 = vmatprep.subr.bf16.mxu0 0
    %1358 = vmatpush1.bf16.msra.mxu0 0
    %1359 = vmatprep.subr.bf16.mxu0 0
    %1360 = vmatpush1.bf16.msra.mxu0 0
    %1361 = vmatprep.subr.bf16.mxu0 0
    %1362 = vmatpush1.bf16.msra.mxu0 0
    %1363 = vmatprep.subr.bf16.mxu0 0
    %1364 = vmatpush1.bf16.msra.mxu0 0
    %1365 = vmatprep.subr.bf16.mxu0 0
    %1366 = vmatpush1.bf16.msra.mxu0 0
    %1367 = vmatprep.subr.bf16.mxu0 0
    %1368 = vmatpush1.bf16.msra.mxu0 0
    %1369 = vmatprep.subr.bf16.mxu0 0
    %1370 = vmatpush1.bf16.msra.mxu0 0
    %1371 = vmatprep.subr.bf16.mxu0 0
    %1372 = vmatpush1.bf16.msra.mxu0 0
    %1373 = vmatprep.subr.bf16.mxu0 0
    %1374 = vmatpush1.bf16.msra.mxu0 0
    %1375 = vmatprep.subr.bf16.mxu0 0
    %1376 = vmatpush1.bf16.msra.mxu0 0
    %1377 = vmatprep.mubr.bf16.mxu0 0
    %1378 = vmatmul.mubr.bf16.gmra.mrb[0].mxu0 %v1343
    %v1379 = vpop.f32.mrb[0].mxu0
    %v1380 = vadd.f32 0.0, %v1379
    %v1381 = vpop.f32.mrb[0].mxu0
    %v1382 = vpop.f32.mrb[0].mxu0
    %v1383 = vadd.f32 0.0, %v1382
    %v1384 = vpop.f32.mrb[0].mxu0
    %1385 = vdwg.mxu0
    %v1387 = vsel %vm1071, %v1208, 0
    %1389 = vmatprep.subr.bf16.mxu0 0
    %1390 = vmatpush1.bf16.msra.mxu0 %v718
    %1391 = vmatprep.subr.bf16.mxu0 0
    %1392 = vmatpush1.bf16.msra.mxu0 0
    %1393 = vmatprep.subr.bf16.mxu0 0
    %1394 = vmatpush1.bf16.msra.mxu0 0
    %1395 = vmatprep.subr.bf16.mxu0 0
    %1396 = vmatpush1.bf16.msra.mxu0 0
    %1397 = vmatprep.subr.bf16.mxu0 0
    %1398 = vmatpush1.bf16.msra.mxu0 0
    %1399 = vmatprep.subr.bf16.mxu0 0
    %1400 = vmatpush1.bf16.msra.mxu0 0
    %1401 = vmatprep.subr.bf16.mxu0 0
    %1402 = vmatpush1.bf16.msra.mxu0 0
    %1403 = vmatprep.subr.bf16.mxu0 0
    %1404 = vmatpush1.bf16.msra.mxu0 0
    %1405 = vmatprep.subr.bf16.mxu0 0
    %1406 = vmatpush1.bf16.msra.mxu0 0
    %1407 = vmatprep.subr.bf16.mxu0 0
    %1408 = vmatpush1.bf16.msra.mxu0 0
    %1409 = vmatprep.subr.bf16.mxu0 0
    %1410 = vmatpush1.bf16.msra.mxu0 0
    %1411 = vmatprep.subr.bf16.mxu0 0
    %1412 = vmatpush1.bf16.msra.mxu0 0
    %1413 = vmatprep.subr.bf16.mxu0 0
    %1414 = vmatpush1.bf16.msra.mxu0 0
    %1415 = vmatprep.subr.bf16.mxu0 0
    %1416 = vmatpush1.bf16.msra.mxu0 0
    %1417 = vmatprep.subr.bf16.mxu0 0
    %1418 = vmatpush1.bf16.msra.mxu0 0
    %1419 = vmatprep.subr.bf16.mxu0 0
    %1420 = vmatpush1.bf16.msra.mxu0 0
    %1421 = vmatprep.mubr.bf16.mxu0 0
    %1422 = vmatmul.mubr.bf16.gmra.mrb[0].mxu0 %v1387
    %v1423 = vpop.f32.mrb[0].mxu0
    %v1424 = vadd.f32 0.0, %v1423
    %v1425 = vpop.f32.mrb[0].mxu0
    %v1426 = vpop.f32.mrb[0].mxu0
    %v1427 = vadd.f32 0.0, %v1426
    %v1428 = vpop.f32.mrb[0].mxu0
    %1429 = vdwg.mxu0
    %v1431 = vsel %vm1071, %v1209, 0
    %1433 = vmatprep.subr.bf16.mxu0 0
    %1434 = vmatpush1.bf16.msra.mxu0 %v723
    %1435 = vmatprep.subr.bf16.mxu0 0
    %1436 = vmatpush1.bf16.msra.mxu0 0
    %1437 = vmatprep.subr.bf16.mxu0 0
    %1438 = vmatpush1.bf16.msra.mxu0 0
    %1439 = vmatprep.subr.bf16.mxu0 0
    %1440 = vmatpush1.bf16.msra.mxu0 0
    %1441 = vmatprep.subr.bf16.mxu0 0
    %1442 = vmatpush1.bf16.msra.mxu0 0
    %1443 = vmatprep.subr.bf16.mxu0 0
    %1444 = vmatpush1.bf16.msra.mxu0 0
    %1445 = vmatprep.subr.bf16.mxu0 0
    %1446 = vmatpush1.bf16.msra.mxu0 0
    %1447 = vmatprep.subr.bf16.mxu0 0
    %1448 = vmatpush1.bf16.msra.mxu0 0
    %1449 = vmatprep.subr.bf16.mxu0 0
    %1450 = vmatpush1.bf16.msra.mxu0 0
    %1451 = vmatprep.subr.bf16.mxu0 0
    %1452 = vmatpush1.bf16.msra.mxu0 0
    %1453 = vmatprep.subr.bf16.mxu0 0
    %1454 = vmatpush1.bf16.msra.mxu0 0
    %1455 = vmatprep.subr.bf16.mxu0 0
    %1456 = vmatpush1.bf16.msra.mxu0 0
    %1457 = vmatprep.subr.bf16.mxu0 0
    %1458 = vmatpush1.bf16.msra.mxu0 0
    %1459 = vmatprep.subr.bf16.mxu0 0
    %1460 = vmatpush1.bf16.msra.mxu0 0
    %1461 = vmatprep.subr.bf16.mxu0 0
    %1462 = vmatpush1.bf16.msra.mxu0 0
    %1463 = vmatprep.subr.bf16.mxu0 0
    %1464 = vmatpush1.bf16.msra.mxu0 0
    %1465 = vmatprep.mubr.bf16.mxu0 0
    %1466 = vmatmul.mubr.bf16.gmra.mrb[0].mxu0 %v1431
    %v1467 = vpop.f32.mrb[0].mxu0
    %v1468 = vadd.f32 0.0, %v1467
    %v1469 = vpop.f32.mrb[0].mxu0
    %v1470 = vpop.f32.mrb[0].mxu0
    %v1471 = vadd.f32 0.0, %v1470
    %v1472 = vpop.f32.mrb[0].mxu0
    %1473 = vdwg.mxu0
    %v1474 = vpack.c.bf16 %v1251, %v1248
    %v1475 = vpack.c.bf16 %v1295, %v1292
    %v1476 = vpack.c.bf16 %v1339, %v1336
    %v1477 = vpack.c.bf16 %v1383, %v1380
    %v1478 = vpack.c.bf16 %v1427, %v1424
    %v1479 = vpack.c.bf16 %v1471, %v1468
    %v1480 = vld [vmem:[%s5] sm:$0x3]
    %v1481 = vld [vmem:[%s4] sm:$0xff]
    %v1482 = vld [vmem:[%s4 + $0x8] sm:$0xff]
    %v1483 = vld [vmem:[%s4 + $0x10] sm:$0xff]
    %v1484 = vld [vmem:[%s4 + $0x18] sm:$0xff]
    %v1485 = vld [vmem:[%s4 + $0x20] sm:$0xff]
    %v1486 = vld [vmem:[%s4 + $0x28] sm:$0xff]
    %v1487 = vld [vmem:[%s4 + $0x30] sm:$0xff]
    %v1488 = vld [vmem:[%s4 + $0x38] sm:$0xff]
    %v1497 = vunpack.c.l.b16 %v1481
    %v1498 = vunpack.c.h.b16 %v1481
    %v1499 = vunpack.c.l.b16 %v1482
    %v1500 = vunpack.c.h.b16 %v1482
    %v1501 = vunpack.c.l.b16 %v1483
    %v1502 = vunpack.c.h.b16 %v1483
    %v1503 = vunpack.c.l.b16 %v1484
    %v1504 = vunpack.c.h.b16 %v1484
    %v1505 = vunpack.c.l.b16 %v1485
    %v1506 = vunpack.c.h.b16 %v1485
    %v1507 = vunpack.c.l.b16 %v1486
    %v1508 = vunpack.c.h.b16 %v1486
    %v1509 = vunpack.c.l.b16 %v1487
    %v1510 = vunpack.c.h.b16 %v1487
    %v1511 = vunpack.c.l.b16 %v1488
    %v1512 = vunpack.c.h.b16 %v1488
    %v1513 = vpack.c.b16 %v1499, %v1497
    %v1514 = vpack.c.b16 %v1500, %v1498
    %v1515 = vpack.c.b16 %v1503, %v1501
    %v1516 = vpack.c.b16 %v1504, %v1502
    %v1517 = vpack.c.b16 %v1507, %v1505
    %v1518 = vpack.c.b16 %v1508, %v1506
    %v1519 = vpack.c.b16 %v1511, %v1509
    %v1520 = vpack.c.b16 %v1512, %v1510
    %v1530 = vsel %vm53, %v1474, 0
    %v1533 = vsel %vm53, %v1475, 0
    %1535 = vmatprep.subr.bf16.mxu0 %v1514
    %1536 = vmatpush1.bf16.msra.mxu0 %v1513
    %1537 = vmatprep.subr.bf16.mxu0 %v1516
    %1538 = vmatpush1.bf16.msra.mxu0 %v1515
    %1539 = vmatprep.subr.bf16.mxu0 %v1518
    %1540 = vmatpush1.bf16.msra.mxu0 %v1517
    %1541 = vmatprep.subr.bf16.mxu0 %v1520
    %1542 = vmatpush1.bf16.msra.mxu0 %v1519
    %1543 = vmatprep.subr.bf16.mxu0 0
    %1544 = vmatpush1.bf16.msra.mxu0 0
    %1545 = vmatprep.subr.bf16.mxu0 0
    %1546 = vmatpush1.bf16.msra.mxu0 0
    %1547 = vmatprep.subr.bf16.mxu0 0
    %1548 = vmatpush1.bf16.msra.mxu0 0
    %1549 = vmatprep.subr.bf16.mxu0 0
    %1550 = vmatpush1.bf16.msra.mxu0 0
    %1551 = vmatprep.subr.bf16.mxu0 0
    %1552 = vmatpush1.bf16.msra.mxu0 0
    %1553 = vmatprep.subr.bf16.mxu0 0
    %1554 = vmatpush1.bf16.msra.mxu0 0
    %1555 = vmatprep.subr.bf16.mxu0 0
    %1556 = vmatpush1.bf16.msra.mxu0 0
    %1557 = vmatprep.subr.bf16.mxu0 0
    %1558 = vmatpush1.bf16.msra.mxu0 0
    %1559 = vmatprep.subr.bf16.mxu0 0
    %1560 = vmatpush1.bf16.msra.mxu0 0
    %1561 = vmatprep.subr.bf16.mxu0 0
    %1562 = vmatpush1.bf16.msra.mxu0 0
    %1563 = vmatprep.subr.bf16.mxu0 0
    %1564 = vmatpush1.bf16.msra.mxu0 0
    %1565 = vmatprep.subr.bf16.mxu0 0
    %1566 = vmatpush1.bf16.msra.mxu0 0
    %1567 = vmatprep.mubr.bf16.mxu0 0
    %1568 = vmatmul.mubr.bf16.gmra.mrb[0].mxu0 %v1530
    %v1569 = vpop.f32.mrb[0].mxu0
    %v1570 = vadd.f32 0.0, %v1569
    %v1571 = vpop.f32.mrb[0].mxu0
    %v1572 = vadd.f32 0.0, %v1571
    %v1573 = vpop.f32.mrb[0].mxu0
    %v1574 = vadd.f32 0.0, %v1573
    %v1575 = vpop.f32.mrb[0].mxu0
    %v1576 = vadd.f32 0.0, %v1575
    %1577 = vmatprep.mubr.bf16.mxu0 0
    %1578 = vmatmul.mubr.bf16.gmra.mrb[0].mxu0 %v1533
    %v1579 = vpop.f32.mrb[0].mxu0
    %v1580 = vadd.f32 0.0, %v1579
    %v1581 = vpop.f32.mrb[0].mxu0
    %v1582 = vadd.f32 0.0, %v1581
    %v1583 = vpop.f32.mrb[0].mxu0
    %v1584 = vadd.f32 0.0, %v1583
    %v1585 = vpop.f32.mrb[0].mxu0
    %v1586 = vadd.f32 0.0, %v1585
    %1587 = vdwg.mxu0
    %v1589 = vlaneseq
    %v1590 = vshrl.u32 %v1589, 7
    %v1591 = vsub.s32 0, %v1590
    %v1592 = vrot.slane %v1480, %v1591
    %v1593 = vlaneseq
    %v1594 = vshrl.u32 %v1593, 7
    %v1595 = vsub.s32 1, %v1594
    %v1596 = vrot.slane %v1480, %v1595
    %v1599 = vadd.f32 %v1592, %v1570
    %v1600 = vadd.f32 %v1596, %v1572
    %v1601 = vadd.f32 %v1592, %v1574
    %v1602 = vadd.f32 %v1596, %v1576
    %v1603 = vadd.f32 %v1592, %v1580
    %v1604 = vadd.f32 %v1596, %v1582
    %v1605 = vadd.f32 %v1592, %v1584
    %v1606 = vadd.f32 %v1596, %v1586
    %s1607 = scalar_lea.vmem %s4, 64
    %v1608 = vld [vmem:[%s1607] sm:$0xff]
    %v1609 = vld [vmem:[%s1607 + $0x8] sm:$0xff]
    %v1610 = vld [vmem:[%s1607 + $0x10] sm:$0xff]
    %v1611 = vld [vmem:[%s1607 + $0x18] sm:$0xff]
    %v1612 = vld [vmem:[%s1607 + $0x20] sm:$0xff]
    %v1613 = vld [vmem:[%s1607 + $0x28] sm:$0xff]
    %v1614 = vld [vmem:[%s1607 + $0x30] sm:$0xff]
    %v1615 = vld [vmem:[%s1607 + $0x38] sm:$0xff]
    %v1624 = vunpack.c.l.b16 %v1608
    %v1625 = vunpack.c.h.b16 %v1608
    %v1626 = vunpack.c.l.b16 %v1609
    %v1627 = vunpack.c.h.b16 %v1609
    %v1628 = vunpack.c.l.b16 %v1610
    %v1629 = vunpack.c.h.b16 %v1610
    %v1630 = vunpack.c.l.b16 %v1611
    %v1631 = vunpack.c.h.b16 %v1611
    %v1632 = vunpack.c.l.b16 %v1612
    %v1633 = vunpack.c.h.b16 %v1612
    %v1634 = vunpack.c.l.b16 %v1613
    %v1635 = vunpack.c.h.b16 %v1613
    %v1636 = vunpack.c.l.b16 %v1614
    %v1637 = vunpack.c.h.b16 %v1614
    %v1638 = vunpack.c.l.b16 %v1615
    %v1639 = vunpack.c.h.b16 %v1615
    %v1640 = vpack.c.b16 %v1626, %v1624
    %v1641 = vpack.c.b16 %v1627, %v1625
    %v1642 = vpack.c.b16 %v1630, %v1628
    %v1643 = vpack.c.b16 %v1631, %v1629
    %v1644 = vpack.c.b16 %v1634, %v1632
    %v1645 = vpack.c.b16 %v1635, %v1633
    %v1646 = vpack.c.b16 %v1638, %v1636
    %v1647 = vpack.c.b16 %v1639, %v1637
    %v1657 = vsel %vm53, %v1476, 0
    %v1660 = vsel %vm53, %v1477, 0
    %1662 = vmatprep.subr.bf16.mxu0 %v1641
    %1663 = vmatpush1.bf16.msra.mxu0 %v1640
    %1664 = vmatprep.subr.bf16.mxu0 %v1643
    %1665 = vmatpush1.bf16.msra.mxu0 %v1642
    %1666 = vmatprep.subr.bf16.mxu0 %v1645
    %1667 = vmatpush1.bf16.msra.mxu0 %v1644
    %1668 = vmatprep.subr.bf16.mxu0 %v1647
    %1669 = vmatpush1.bf16.msra.mxu0 %v1646
    %1670 = vmatprep.subr.bf16.mxu0 0
    %1671 = vmatpush1.bf16.msra.mxu0 0
    %1672 = vmatprep.subr.bf16.mxu0 0
    %1673 = vmatpush1.bf16.msra.mxu0 0
    %1674 = vmatprep.subr.bf16.mxu0 0
    %1675 = vmatpush1.bf16.msra.mxu0 0
    %1676 = vmatprep.subr.bf16.mxu0 0
    %1677 = vmatpush1.bf16.msra.mxu0 0
    %1678 = vmatprep.subr.bf16.mxu0 0
    %1679 = vmatpush1.bf16.msra.mxu0 0
    %1680 = vmatprep.subr.bf16.mxu0 0
    %1681 = vmatpush1.bf16.msra.mxu0 0
    %1682 = vmatprep.subr.bf16.mxu0 0
    %1683 = vmatpush1.bf16.msra.mxu0 0
    %1684 = vmatprep.subr.bf16.mxu0 0
    %1685 = vmatpush1.bf16.msra.mxu0 0
    %1686 = vmatprep.subr.bf16.mxu0 0
    %1687 = vmatpush1.bf16.msra.mxu0 0
    %1688 = vmatprep.subr.bf16.mxu0 0
    %1689 = vmatpush1.bf16.msra.mxu0 0
    %1690 = vmatprep.subr.bf16.mxu0 0
    %1691 = vmatpush1.bf16.msra.mxu0 0
    %1692 = vmatprep.subr.bf16.mxu0 0
    %1693 = vmatpush1.bf16.msra.mxu0 0
    %1694 = vmatprep.mubr.bf16.mxu0 0
    %1695 = vmatmul.mubr.bf16.gmra.mrb[0].mxu0 %v1657
    %v1696 = vpop.f32.mrb[0].mxu0
    %v1697 = vadd.f32 0.0, %v1696
    %v1698 = vpop.f32.mrb[0].mxu0
    %v1699 = vadd.f32 0.0, %v1698
    %v1700 = vpop.f32.mrb[0].mxu0
    %v1701 = vadd.f32 0.0, %v1700
    %v1702 = vpop.f32.mrb[0].mxu0
    %v1703 = vadd.f32 0.0, %v1702
    %1704 = vmatprep.mubr.bf16.mxu0 0
    %1705 = vmatmul.mubr.bf16.gmra.mrb[0].mxu0 %v1660
    %v1706 = vpop.f32.mrb[0].mxu0
    %v1707 = vadd.f32 0.0, %v1706
    %v1708 = vpop.f32.mrb[0].mxu0
    %v1709 = vadd.f32 0.0, %v1708
    %v1710 = vpop.f32.mrb[0].mxu0
    %v1711 = vadd.f32 0.0, %v1710
    %v1712 = vpop.f32.mrb[0].mxu0
    %v1713 = vadd.f32 0.0, %v1712
    %1714 = vdwg.mxu0
    %v1715 = vadd.f32 %v1599, %v1697
    %v1716 = vadd.f32 %v1600, %v1699
    %v1717 = vadd.f32 %v1601, %v1701
    %v1718 = vadd.f32 %v1602, %v1703
    %v1719 = vadd.f32 %v1603, %v1707
    %v1720 = vadd.f32 %v1604, %v1709
    %v1721 = vadd.f32 %v1605, %v1711
    %v1722 = vadd.f32 %v1606, %v1713
    %s1723 = scalar_lea.vmem %s4, 128
    %v1724 = vld [vmem:[%s1723] sm:$0xff]
    %v1725 = vld [vmem:[%s1723 + $0x8] sm:$0xff]
    %v1726 = vld [vmem:[%s1723 + $0x10] sm:$0xff]
    %v1727 = vld [vmem:[%s1723 + $0x18] sm:$0xff]
    %v1728 = vld [vmem:[%s1723 + $0x20] sm:$0xff]
    %v1729 = vld [vmem:[%s1723 + $0x28] sm:$0xff]
    %v1730 = vld [vmem:[%s1723 + $0x30] sm:$0xff]
    %v1731 = vld [vmem:[%s1723 + $0x38] sm:$0xff]
    %v1740 = vunpack.c.l.b16 %v1724
    %v1741 = vunpack.c.h.b16 %v1724
    %v1742 = vunpack.c.l.b16 %v1725
    %v1743 = vunpack.c.h.b16 %v1725
    %v1744 = vunpack.c.l.b16 %v1726
    %v1745 = vunpack.c.h.b16 %v1726
    %v1746 = vunpack.c.l.b16 %v1727
    %v1747 = vunpack.c.h.b16 %v1727
    %v1748 = vunpack.c.l.b16 %v1728
    %v1749 = vunpack.c.h.b16 %v1728
    %v1750 = vunpack.c.l.b16 %v1729
    %v1751 = vunpack.c.h.b16 %v1729
    %v1752 = vunpack.c.l.b16 %v1730
    %v1753 = vunpack.c.h.b16 %v1730
    %v1754 = vunpack.c.l.b16 %v1731
    %v1755 = vunpack.c.h.b16 %v1731
    %v1756 = vpack.c.b16 %v1742, %v1740
    %v1757 = vpack.c.b16 %v1743, %v1741
    %v1758 = vpack.c.b16 %v1746, %v1744
    %v1759 = vpack.c.b16 %v1747, %v1745
    %v1760 = vpack.c.b16 %v1750, %v1748
    %v1761 = vpack.c.b16 %v1751, %v1749
    %v1762 = vpack.c.b16 %v1754, %v1752
    %v1763 = vpack.c.b16 %v1755, %v1753
    %v1773 = vsel %vm53, %v1478, 0
    %v1776 = vsel %vm53, %v1479, 0
    %1778 = vmatprep.subr.bf16.mxu0 %v1757
    %1779 = vmatpush1.bf16.msra.mxu0 %v1756
    %1780 = vmatprep.subr.bf16.mxu0 %v1759
    %1781 = vmatpush1.bf16.msra.mxu0 %v1758
    %1782 = vmatprep.subr.bf16.mxu0 %v1761
    %1783 = vmatpush1.bf16.msra.mxu0 %v1760
    %1784 = vmatprep.subr.bf16.mxu0 %v1763
    %1785 = vmatpush1.bf16.msra.mxu0 %v1762
    %1786 = vmatprep.subr.bf16.mxu0 0
    %1787 = vmatpush1.bf16.msra.mxu0 0
    %1788 = vmatprep.subr.bf16.mxu0 0
    %1789 = vmatpush1.bf16.msra.mxu0 0
    %1790 = vmatprep.subr.bf16.mxu0 0
    %1791 = vmatpush1.bf16.msra.mxu0 0
    %1792 = vmatprep.subr.bf16.mxu0 0
    %1793 = vmatpush1.bf16.msra.mxu0 0
    %1794 = vmatprep.subr.bf16.mxu0 0
    %1795 = vmatpush1.bf16.msra.mxu0 0
    %1796 = vmatprep.subr.bf16.mxu0 0
    %1797 = vmatpush1.bf16.msra.mxu0 0
    %1798 = vmatprep.subr.bf16.mxu0 0
    %1799 = vmatpush1.bf16.msra.mxu0 0
    %1800 = vmatprep.subr.bf16.mxu0 0
    %1801 = vmatpush1.bf16.msra.mxu0 0
    %1802 = vmatprep.subr.bf16.mxu0 0
    %1803 = vmatpush1.bf16.msra.mxu0 0
    %1804 = vmatprep.subr.bf16.mxu0 0
    %1805 = vmatpush1.bf16.msra.mxu0 0
    %1806 = vmatprep.subr.bf16.mxu0 0
    %1807 = vmatpush1.bf16.msra.mxu0 0
    %1808 = vmatprep.subr.bf16.mxu0 0
    %1809 = vmatpush1.bf16.msra.mxu0 0
    %1810 = vmatprep.mubr.bf16.mxu0 0
    %1811 = vmatmul.mubr.bf16.gmra.mrb[0].mxu0 %v1773
    %v1812 = vpop.f32.mrb[0].mxu0
    %v1813 = vadd.f32 0.0, %v1812
    %v1814 = vpop.f32.mrb[0].mxu0
    %v1815 = vadd.f32 0.0, %v1814
    %v1816 = vpop.f32.mrb[0].mxu0
    %v1817 = vadd.f32 0.0, %v1816
    %v1818 = vpop.f32.mrb[0].mxu0
    %v1819 = vadd.f32 0.0, %v1818
    %1820 = vmatprep.mubr.bf16.mxu0 0
    %1821 = vmatmul.mubr.bf16.gmra.mrb[0].mxu0 %v1776
    %v1822 = vpop.f32.mrb[0].mxu0
    %v1823 = vadd.f32 0.0, %v1822
    %v1824 = vpop.f32.mrb[0].mxu0
    %v1825 = vadd.f32 0.0, %v1824
    %v1826 = vpop.f32.mrb[0].mxu0
    %v1827 = vadd.f32 0.0, %v1826
    %v1828 = vpop.f32.mrb[0].mxu0
    %v1829 = vadd.f32 0.0, %v1828
    %1830 = vdwg.mxu0
    %v1831 = vadd.f32 %v1715, %v1813
    %v1832 = vadd.f32 %v1716, %v1815
    %v1833 = vadd.f32 %v1717, %v1817
    %v1834 = vadd.f32 %v1718, %v1819
    %v1835 = vadd.f32 %v1719, %v1823
    %v1836 = vadd.f32 %v1720, %v1825
    %v1837 = vadd.f32 %v1721, %v1827
    %v1838 = vadd.f32 %v1722, %v1829
    %v1839 = vadd.f32 %v43, %v1831
    %v1840 = vadd.f32 %v44, %v1832
    %v1841 = vadd.f32 %v45, %v1833
    %v1842 = vadd.f32 %v46, %v1834
    %v1843 = vadd.f32 %v47, %v1835
    %v1844 = vadd.f32 %v48, %v1836
    %v1845 = vadd.f32 %v49, %v1837
    %v1846 = vadd.f32 %v50, %v1838
    %v1847 = vld [vmem:[%s6] sm:$0x3]
    %v1848 = vld [vmem:[%s7] sm:$0x3]
    %v1849 = vsel %vm53, %v1840, 0.0
    %v1850 = vadd.f32 %v1839, %v1849
    %1851 = vadd.xlane.f32.xlu0 %v1850
    %v1852 = vpop.xlane.xlu0 %1851
    %v1853 = vsel %vm53, %v1842, 0.0
    %v1854 = vadd.f32 %v1841, %v1853
    %1855 = vadd.xlane.f32.xlu0 %v1854
    %v1856 = vpop.xlane.xlu0 %1855
    %v1857 = vsel %vm53, %v1844, 0.0
    %v1858 = vadd.f32 %v1843, %v1857
    %1859 = vadd.xlane.f32.xlu0 %v1858
    %v1860 = vpop.xlane.xlu0 %1859
    %v1861 = vsel %vm53, %v1846, 0.0
    %v1862 = vadd.f32 %v1845, %v1861
    %1863 = vadd.xlane.f32.xlu0 %v1862
    %v1864 = vpop.xlane.xlu0 %1863
    %v1865 = vmul.f32 %v1852, %v70
    %v1866 = vmul.f32 %v1856, %v70
    %v1867 = vmul.f32 %v1860, %v70
    %v1868 = vmul.f32 %v1864, %v70
    %v1869 = vsub.f32 %v1839, %v1865
    %v1870 = vsub.f32 %v1840, %v1865
    %v1871 = vsub.f32 %v1841, %v1866
    %v1872 = vsub.f32 %v1842, %v1866
    %v1873 = vsub.f32 %v1843, %v1867
    %v1874 = vsub.f32 %v1844, %v1867
    %v1875 = vsub.f32 %v1845, %v1868
    %v1876 = vsub.f32 %v1846, %v1868
    %v1877 = vmul.f32 %v1869, %v1869
    %v1878 = vmul.f32 %v1870, %v1870
    %v1879 = vmul.f32 %v1871, %v1871
    %v1880 = vmul.f32 %v1872, %v1872
    %v1881 = vmul.f32 %v1873, %v1873
    %v1882 = vmul.f32 %v1874, %v1874
    %v1883 = vmul.f32 %v1875, %v1875
    %v1884 = vmul.f32 %v1876, %v1876
    %v1885 = vsel %vm53, %v1878, 0.0
    %v1886 = vadd.f32 %v1877, %v1885
    %1887 = vadd.xlane.f32.xlu0 %v1886
    %v1888 = vpop.xlane.xlu0 %1887
    %v1889 = vsel %vm53, %v1880, 0.0
    %v1890 = vadd.f32 %v1879, %v1889
    %1891 = vadd.xlane.f32.xlu0 %v1890
    %v1892 = vpop.xlane.xlu0 %1891
    %v1893 = vsel %vm53, %v1882, 0.0
    %v1894 = vadd.f32 %v1881, %v1893
    %1895 = vadd.xlane.f32.xlu0 %v1894
    %v1896 = vpop.xlane.xlu0 %1895
    %v1897 = vsel %vm53, %v1884, 0.0
    %v1898 = vadd.f32 %v1883, %v1897
    %1899 = vadd.xlane.f32.xlu0 %v1898
    %v1900 = vpop.xlane.xlu0 %1899
    %v1901 = vmul.f32 %v1888, %v70
    %v1902 = vmul.f32 %v1892, %v70
    %v1903 = vmul.f32 %v1896, %v70
    %v1904 = vmul.f32 %v1900, %v70
    %v1905 = vadd.f32 %v1901, 1e-05
    %v1906 = vadd.f32 %v1902, 1e-05
    %v1907 = vadd.f32 %v1903, 1e-05
    %v1908 = vadd.f32 %v1904, 1e-05
    %v1909 = vrsqrt.pop %v1905
    %v1910 = vrsqrt.pop %v1906
    %v1911 = vrsqrt.pop %v1907
    %v1912 = vrsqrt.pop %v1908
    %v1913 = vmul.f32 %v1869, %v1909
    %v1914 = vmul.f32 %v1870, %v1909
    %v1915 = vmul.f32 %v1871, %v1910
    %v1916 = vmul.f32 %v1872, %v1910
    %v1917 = vmul.f32 %v1873, %v1911
    %v1918 = vmul.f32 %v1874, %v1911
    %v1919 = vmul.f32 %v1875, %v1912
    %v1920 = vmul.f32 %v1876, %v1912
    %v1922 = vlaneseq
    %v1923 = vshrl.u32 %v1922, 7
    %v1924 = vsub.s32 0, %v1923
    %v1925 = vrot.slane %v1847, %v1924
    %v1926 = vlaneseq
    %v1927 = vshrl.u32 %v1926, 7
    %v1928 = vsub.s32 1, %v1927
    %v1929 = vrot.slane %v1847, %v1928
    %v1932 = vmul.f32 %v1913, %v1925
    %v1933 = vmul.f32 %v1914, %v1929
    %v1934 = vmul.f32 %v1915, %v1925
    %v1935 = vmul.f32 %v1916, %v1929
    %v1936 = vmul.f32 %v1917, %v1925
    %v1937 = vmul.f32 %v1918, %v1929
    %v1938 = vmul.f32 %v1919, %v1925
    %v1939 = vmul.f32 %v1920, %v1929
    %v1941 = vlaneseq
    %v1942 = vshrl.u32 %v1941, 7
    %v1943 = vsub.s32 0, %v1942
    %v1944 = vrot.slane %v1848, %v1943
    %v1945 = vlaneseq
    %v1946 = vshrl.u32 %v1945, 7
    %v1947 = vsub.s32 1, %v1946
    %v1948 = vrot.slane %v1848, %v1947
    %v1951 = vadd.f32 %v1932, %v1944
    %v1952 = vadd.f32 %v1933, %v1948
    %v1953 = vadd.f32 %v1934, %v1944
    %v1954 = vadd.f32 %v1935, %v1948
    %v1955 = vadd.f32 %v1936, %v1944
    %v1956 = vadd.f32 %v1937, %v1948
    %v1957 = vadd.f32 %v1938, %v1944
    %v1958 = vadd.f32 %v1939, %v1948
    %v1959 = vpack.c.bf16 %v1953, %v1951
    %v1960 = vpack.c.bf16 %v1954, %v1952
    %v1961 = vpack.c.bf16 %v1957, %v1955
    %v1962 = vpack.c.bf16 %v1958, %v1956
    %v1963 = vld [vmem:[%s8] sm:$0xff]
    %v1964 = vld [vmem:[%s8 + $0x8] sm:$0xff]
    %v1965 = vld [vmem:[%s8 + $0x10] sm:$0xff]
    %v1966 = vld [vmem:[%s8 + $0x18] sm:$0xff]
    %v1967 = vld [vmem:[%s8 + $0x20] sm:$0xff]
    %v1968 = vld [vmem:[%s8 + $0x28] sm:$0xff]
    %v1969 = vld [vmem:[%s8 + $0x30] sm:$0xff]
    %v1970 = vld [vmem:[%s8 + $0x38] sm:$0xff]
    %v1971 = vld [vmem:[%s8 + $0x40] sm:$0xff]
    %v1972 = vld [vmem:[%s8 + $0x48] sm:$0xff]
    %v1973 = vld [vmem:[%s8 + $0x50] sm:$0xff]
    %v1974 = vld [vmem:[%s8 + $0x58] sm:$0xff]
    %v1975 = vld [vmem:[%s8 + $0x60] sm:$0xff]
    %v1976 = vld [vmem:[%s8 + $0x68] sm:$0xff]
    %v1977 = vld [vmem:[%s8 + $0x70] sm:$0xff]
    %v1978 = vld [vmem:[%s8 + $0x78] sm:$0xff]
    %v1979 = vld [vmem:[%s8 + $0x80] sm:$0xff]
    %v1980 = vld [vmem:[%s8 + $0x88] sm:$0xff]
    %v1981 = vld [vmem:[%s8 + $0x90] sm:$0xff]
    %v1982 = vld [vmem:[%s8 + $0x98] sm:$0xff]
    %v1983 = vld [vmem:[%s8 + $0xa0] sm:$0xff]
    %v1984 = vld [vmem:[%s8 + $0xa8] sm:$0xff]
    %v1985 = vld [vmem:[%s8 + $0xb0] sm:$0xff]
    %v1986 = vld [vmem:[%s8 + $0xb8] sm:$0xff]
    %v1987 = vld [vmem:[%s8 + $0xc0] sm:$0xff]
    %v1988 = vld [vmem:[%s8 + $0xc8] sm:$0xff]
    %v1989 = vld [vmem:[%s8 + $0xd0] sm:$0xff]
    %v1990 = vld [vmem:[%s8 + $0xd8] sm:$0xff]
    %v1991 = vld [vmem:[%s8 + $0xe0] sm:$0xff]
    %v1992 = vld [vmem:[%s8 + $0xe8] sm:$0xff]
    %v1993 = vld [vmem:[%s8 + $0xf0] sm:$0xff]
    %v1994 = vld [vmem:[%s8 + $0xf8] sm:$0xff]
    %v1995 = vld [vmem:[%s8 + $0x100] sm:$0xff]
    %v1996 = vld [vmem:[%s8 + $0x108] sm:$0xff]
    %v1997 = vld [vmem:[%s8 + $0x110] sm:$0xff]
    %v1998 = vld [vmem:[%s8 + $0x118] sm:$0xff]
    %v1999 = vld [vmem:[%s8 + $0x120] sm:$0xff]
    %v2000 = vld [vmem:[%s8 + $0x128] sm:$0xff]
    %v2001 = vld [vmem:[%s8 + $0x130] sm:$0xff]
    %v2002 = vld [vmem:[%s8 + $0x138] sm:$0xff]
    %v2003 = vld [vmem:[%s8 + $0x140] sm:$0xff]
    %v2004 = vld [vmem:[%s8 + $0x148] sm:$0xff]
    %v2005 = vld [vmem:[%s8 + $0x150] sm:$0xff]
    %v2006 = vld [vmem:[%s8 + $0x158] sm:$0xff]
    %v2007 = vld [vmem:[%s8 + $0x160] sm:$0xff]
    %v2008 = vld [vmem:[%s8 + $0x168] sm:$0xff]
    %v2009 = vld [vmem:[%s8 + $0x170] sm:$0xff]
    %v2010 = vld [vmem:[%s8 + $0x178] sm:$0xff]
    %v2011 = vld [vmem:[%s8 + $0x180] sm:$0xff]
    %v2012 = vld [vmem:[%s8 + $0x188] sm:$0xff]
    %v2013 = vld [vmem:[%s8 + $0x190] sm:$0xff]
    %v2014 = vld [vmem:[%s8 + $0x198] sm:$0xff]
    %v2015 = vld [vmem:[%s8 + $0x1a0] sm:$0xff]
    %v2016 = vld [vmem:[%s8 + $0x1a8] sm:$0xff]
    %v2017 = vld [vmem:[%s8 + $0x1b0] sm:$0xff]
    %v2018 = vld [vmem:[%s8 + $0x1b8] sm:$0xff]
    %v2019 = vld [vmem:[%s8 + $0x1c0] sm:$0xff]
    %v2020 = vld [vmem:[%s8 + $0x1c8] sm:$0xff]
    %v2021 = vld [vmem:[%s8 + $0x1d0] sm:$0xff]
    %v2022 = vld [vmem:[%s8 + $0x1d8] sm:$0xff]
    %v2023 = vld [vmem:[%s8 + $0x1e0] sm:$0xff]
    %v2024 = vld [vmem:[%s8 + $0x1e8] sm:$0xff]
    %v2025 = vld [vmem:[%s8 + $0x1f0] sm:$0xff]
    %v2026 = vld [vmem:[%s8 + $0x1f8] sm:$0xff]
    %v2027 = vld [vmem:[%s8 + $0x200] sm:$0xff]
    %v2028 = vld [vmem:[%s8 + $0x208] sm:$0xff]
    %v2029 = vld [vmem:[%s8 + $0x210] sm:$0xff]
    %v2030 = vld [vmem:[%s8 + $0x218] sm:$0xff]
    %v2031 = vld [vmem:[%s8 + $0x220] sm:$0xff]
    %v2032 = vld [vmem:[%s8 + $0x228] sm:$0xff]
    %v2033 = vld [vmem:[%s8 + $0x230] sm:$0xff]
    %v2034 = vld [vmem:[%s8 + $0x238] sm:$0xff]
    %v2035 = vld [vmem:[%s9] sm:$0x3f]
    %v2037 = vlaneseq
    %v2038 = vshrl.u32 %v2037, 7
    %v2039 = vsub.s32 0, %v2038
    %v2040 = vrot.slane %v2035, %v2039
    %v2041 = vlaneseq
    %v2042 = vshrl.u32 %v2041, 7
    %v2043 = vsub.s32 1, %v2042
    %v2044 = vrot.slane %v2035, %v2043
    %v2045 = vlaneseq
    %v2046 = vshrl.u32 %v2045, 7
    %v2047 = vsub.s32 2, %v2046
    %v2048 = vrot.slane %v2035, %v2047
    %v2049 = vlaneseq
    %v2050 = vshrl.u32 %v2049, 7
    %v2051 = vsub.s32 3, %v2050
    %v2052 = vrot.slane %v2035, %v2051
    %v2053 = vlaneseq
    %v2054 = vshrl.u32 %v2053, 7
    %v2055 = vsub.s32 4, %v2054
    %v2056 = vrot.slane %v2035, %v2055
    %v2057 = vlaneseq
    %v2058 = vshrl.u32 %v2057, 7
    %v2059 = vsub.s32 5, %v2058
    %v2060 = vrot.slane %v2035, %v2059
    %v2139 = vunpack.c.l.b16 %v1963
    %v2140 = vunpack.c.h.b16 %v1963
    %v2141 = vunpack.c.l.b16 %v1964
    %v2142 = vunpack.c.h.b16 %v1964
    %v2143 = vunpack.c.l.b16 %v1965
    %v2144 = vunpack.c.h.b16 %v1965
    %v2145 = vunpack.c.l.b16 %v1966
    %v2146 = vunpack.c.h.b16 %v1966
    %v2147 = vunpack.c.l.b16 %v1967
    %v2148 = vunpack.c.h.b16 %v1967
    %v2149 = vunpack.c.l.b16 %v1968
    %v2150 = vunpack.c.h.b16 %v1968
    %v2151 = vunpack.c.l.b16 %v1969
    %v2152 = vunpack.c.h.b16 %v1969
    %v2153 = vunpack.c.l.b16 %v1970
    %v2154 = vunpack.c.h.b16 %v1970
    %v2155 = vunpack.c.l.b16 %v1971
    %v2156 = vunpack.c.h.b16 %v1971
    %v2157 = vunpack.c.l.b16 %v1972
    %v2158 = vunpack.c.h.b16 %v1972
    %v2159 = vunpack.c.l.b16 %v1973
    %v2160 = vunpack.c.h.b16 %v1973
    %v2161 = vunpack.c.l.b16 %v1974
    %v2162 = vunpack.c.h.b16 %v1974
    %v2163 = vunpack.c.l.b16 %v1975
    %v2164 = vunpack.c.h.b16 %v1975
    %v2165 = vunpack.c.l.b16 %v1976
    %v2166 = vunpack.c.h.b16 %v1976
    %v2167 = vunpack.c.l.b16 %v1977
    %v2168 = vunpack.c.h.b16 %v1977
    %v2169 = vunpack.c.l.b16 %v1978
    %v2170 = vunpack.c.h.b16 %v1978
    %v2171 = vunpack.c.l.b16 %v1979
    %v2172 = vunpack.c.h.b16 %v1979
    %v2173 = vunpack.c.l.b16 %v1980
    %v2174 = vunpack.c.h.b16 %v1980
    %v2175 = vunpack.c.l.b16 %v1981
    %v2176 = vunpack.c.h.b16 %v1981
    %v2177 = vunpack.c.l.b16 %v1982
    %v2178 = vunpack.c.h.b16 %v1982
    %v2179 = vunpack.c.l.b16 %v1983
    %v2180 = vunpack.c.h.b16 %v1983
    %v2181 = vunpack.c.l.b16 %v1984
    %v2182 = vunpack.c.h.b16 %v1984
    %v2183 = vunpack.c.l.b16 %v1985
    %v2184 = vunpack.c.h.b16 %v1985
    %v2185 = vunpack.c.l.b16 %v1986
    %v2186 = vunpack.c.h.b16 %v1986
    %v2187 = vunpack.c.l.b16 %v1987
    %v2188 = vunpack.c.h.b16 %v1987
    %v2189 = vunpack.c.l.b16 %v1988
    %v2190 = vunpack.c.h.b16 %v1988
    %v2191 = vunpack.c.l.b16 %v1989
    %v2192 = vunpack.c.h.b16 %v1989
    %v2193 = vunpack.c.l.b16 %v1990
    %v2194 = vunpack.c.h.b16 %v1990
    %v2195 = vunpack.c.l.b16 %v1991
    %v2196 = vunpack.c.h.b16 %v1991
    %v2197 = vunpack.c.l.b16 %v1992
    %v2198 = vunpack.c.h.b16 %v1992
    %v2199 = vunpack.c.l.b16 %v1993
    %v2200 = vunpack.c.h.b16 %v1993
    %v2201 = vunpack.c.l.b16 %v1994
    %v2202 = vunpack.c.h.b16 %v1994
    %v2203 = vunpack.c.l.b16 %v1995
    %v2204 = vunpack.c.h.b16 %v1995
    %v2205 = vunpack.c.l.b16 %v1996
    %v2206 = vunpack.c.h.b16 %v1996
    %v2207 = vunpack.c.l.b16 %v1997
    %v2208 = vunpack.c.h.b16 %v1997
    %v2209 = vunpack.c.l.b16 %v1998
    %v2210 = vunpack.c.h.b16 %v1998
    %v2211 = vunpack.c.l.b16 %v1999
    %v2212 = vunpack.c.h.b16 %v1999
    %v2213 = vunpack.c.l.b16 %v2000
    %v2214 = vunpack.c.h.b16 %v2000
    %v2215 = vunpack.c.l.b16 %v2001
    %v2216 = vunpack.c.h.b16 %v2001
    %v2217 = vunpack.c.l.b16 %v2002
    %v2218 = vunpack.c.h.b16 %v2002
    %v2219 = vunpack.c.l.b16 %v2003
    %v2220 = vunpack.c.h.b16 %v2003
    %v2221 = vunpack.c.l.b16 %v2004
    %v2222 = vunpack.c.h.b16 %v2004
    %v2223 = vunpack.c.l.b16 %v2005
    %v2224 = vunpack.c.h.b16 %v2005
    %v2225 = vunpack.c.l.b16 %v2006
    %v2226 = vunpack.c.h.b16 %v2006
    %v2227 = vunpack.c.l.b16 %v2007
    %v2228 = vunpack.c.h.b16 %v2007
    %v2229 = vunpack.c.l.b16 %v2008
    %v2230 = vunpack.c.h.b16 %v2008
    %v2231 = vunpack.c.l.b16 %v2009
    %v2232 = vunpack.c.h.b16 %v2009
    %v2233 = vunpack.c.l.b16 %v2010
    %v2234 = vunpack.c.h.b16 %v2010
    %v2235 = vunpack.c.l.b16 %v2011
    %v2236 = vunpack.c.h.b16 %v2011
    %v2237 = vunpack.c.l.b16 %v2012
    %v2238 = vunpack.c.h.b16 %v2012
    %v2239 = vunpack.c.l.b16 %v2013
    %v2240 = vunpack.c.h.b16 %v2013
    %v2241 = vunpack.c.l.b16 %v2014
    %v2242 = vunpack.c.h.b16 %v2014
    %v2243 = vunpack.c.l.b16 %v2015
    %v2244 = vunpack.c.h.b16 %v2015
    %v2245 = vunpack.c.l.b16 %v2016
    %v2246 = vunpack.c.h.b16 %v2016
    %v2247 = vunpack.c.l.b16 %v2017
    %v2248 = vunpack.c.h.b16 %v2017
    %v2249 = vunpack.c.l.b16 %v2018
    %v2250 = vunpack.c.h.b16 %v2018
    %v2251 = vunpack.c.l.b16 %v2019
    %v2252 = vunpack.c.h.b16 %v2019
    %v2253 = vunpack.c.l.b16 %v2020
    %v2254 = vunpack.c.h.b16 %v2020
    %v2255 = vunpack.c.l.b16 %v2021
    %v2256 = vunpack.c.h.b16 %v2021
    %v2257 = vunpack.c.l.b16 %v2022
    %v2258 = vunpack.c.h.b16 %v2022
    %v2259 = vunpack.c.l.b16 %v2023
    %v2260 = vunpack.c.h.b16 %v2023
    %v2261 = vunpack.c.l.b16 %v2024
    %v2262 = vunpack.c.h.b16 %v2024
    %v2263 = vunpack.c.l.b16 %v2025
    %v2264 = vunpack.c.h.b16 %v2025
    %v2265 = vunpack.c.l.b16 %v2026
    %v2266 = vunpack.c.h.b16 %v2026
    %v2267 = vunpack.c.l.b16 %v2027
    %v2268 = vunpack.c.h.b16 %v2027
    %v2269 = vunpack.c.l.b16 %v2028
    %v2270 = vunpack.c.h.b16 %v2028
    %v2271 = vunpack.c.l.b16 %v2029
    %v2272 = vunpack.c.h.b16 %v2029
    %v2273 = vunpack.c.l.b16 %v2030
    %v2274 = vunpack.c.h.b16 %v2030
    %v2275 = vunpack.c.l.b16 %v2031
    %v2276 = vunpack.c.h.b16 %v2031
    %v2277 = vunpack.c.l.b16 %v2032
    %v2278 = vunpack.c.h.b16 %v2032
    %v2279 = vunpack.c.l.b16 %v2033
    %v2280 = vunpack.c.h.b16 %v2033
    %v2281 = vunpack.c.l.b16 %v2034
    %v2282 = vunpack.c.h.b16 %v2034
    %v2283 = vpack.c.b16 %v2145, %v2139
    %v2284 = vpack.c.b16 %v2146, %v2140
    %v2285 = vpack.c.b16 %v2147, %v2141
    %v2286 = vpack.c.b16 %v2148, %v2142
    %v2287 = vpack.c.b16 %v2149, %v2143
    %v2288 = vpack.c.b16 %v2150, %v2144
    %v2289 = vpack.c.b16 %v2157, %v2151
    %v2290 = vpack.c.b16 %v2158, %v2152
    %v2291 = vpack.c.b16 %v2159, %v2153
    %v2292 = vpack.c.b16 %v2160, %v2154
    %v2293 = vpack.c.b16 %v2161, %v2155
    %v2294 = vpack.c.b16 %v2162, %v2156
    %v2295 = vpack.c.b16 %v2169, %v2163
    %v2296 = vpack.c.b16 %v2170, %v2164
    %v2297 = vpack.c.b16 %v2171, %v2165
    %v2298 = vpack.c.b16 %v2172, %v2166
    %v2299 = vpack.c.b16 %v2173, %v2167
    %v2300 = vpack.c.b16 %v2174, %v2168
    %v2301 = vpack.c.b16 %v2181, %v2175
    %v2302 = vpack.c.b16 %v2182, %v2176
    %v2303 = vpack.c.b16 %v2183, %v2177
    %v2304 = vpack.c.b16 %v2184, %v2178
    %v2305 = vpack.c.b16 %v2185, %v2179
    %v2306 = vpack.c.b16 %v2186, %v2180
    %v2307 = vpack.c.b16 %v2193, %v2187
    %v2308 = vpack.c.b16 %v2194, %v2188
    %v2309 = vpack.c.b16 %v2195, %v2189
    %v2310 = vpack.c.b16 %v2196, %v2190
    %v2311 = vpack.c.b16 %v2197, %v2191
    %v2312 = vpack.c.b16 %v2198, %v2192
    %v2313 = vpack.c.b16 %v2205, %v2199
    %v2314 = vpack.c.b16 %v2206, %v2200
    %v2315 = vpack.c.b16 %v2207, %v2201
    %v2316 = vpack.c.b16 %v2208, %v2202
    %v2317 = vpack.c.b16 %v2209, %v2203
    %v2318 = vpack.c.b16 %v2210, %v2204
    %v2319 = vpack.c.b16 %v2217, %v2211
    %v2320 = vpack.c.b16 %v2218, %v2212
    %v2321 = vpack.c.b16 %v2219, %v2213
    %v2322 = vpack.c.b16 %v2220, %v2214
    %v2323 = vpack.c.b16 %v2221, %v2215
    %v2324 = vpack.c.b16 %v2222, %v2216
    %v2325 = vpack.c.b16 %v2229, %v2223
    %v2326 = vpack.c.b16 %v2230, %v2224
    %v2327 = vpack.c.b16 %v2231, %v2225
    %v2328 = vpack.c.b16 %v2232, %v2226
    %v2329 = vpack.c.b16 %v2233, %v2227
    %v2330 = vpack.c.b16 %v2234, %v2228
    %v2331 = vpack.c.b16 %v2241, %v2235
    %v2332 = vpack.c.b16 %v2242, %v2236
    %v2333 = vpack.c.b16 %v2243, %v2237
    %v2334 = vpack.c.b16 %v2244, %v2238
    %v2335 = vpack.c.b16 %v2245, %v2239
    %v2336 = vpack.c.b16 %v2246, %v2240
    %v2337 = vpack.c.b16 %v2253, %v2247
    %v2338 = vpack.c.b16 %v2254, %v2248
    %v2339 = vpack.c.b16 %v2255, %v2249
    %v2340 = vpack.c.b16 %v2256, %v2250
    %v2341 = vpack.c.b16 %v2257, %v2251
    %v2342 = vpack.c.b16 %v2258, %v2252
    %v2343 = vpack.c.b16 %v2265, %v2259
    %v2344 = vpack.c.b16 %v2266, %v2260
    %v2345 = vpack.c.b16 %v2267, %v2261
    %v2346 = vpack.c.b16 %v2268, %v2262
    %v2347 = vpack.c.b16 %v2269, %v2263
    %v2348 = vpack.c.b16 %v2270, %v2264
    %v2349 = vpack.c.b16 %v2277, %v2271
    %v2350 = vpack.c.b16 %v2278, %v2272
    %v2351 = vpack.c.b16 %v2279, %v2273
    %v2352 = vpack.c.b16 %v2280, %v2274
    %v2353 = vpack.c.b16 %v2281, %v2275
    %v2354 = vpack.c.b16 %v2282, %v2276
    %v2428 = vsel %vm53, %v1960, 0
    %v2431 = vsel %vm53, %v1962, 0
    %2433 = vmatprep.subr.bf16.mxu0 %v2284
    %2434 = vmatpush1.bf16.msra.mxu0 %v2283
    %2435 = vmatprep.subr.bf16.mxu0 %v2290
    %2436 = vmatpush1.bf16.msra.mxu0 %v2289
    %2437 = vmatprep.subr.bf16.mxu0 %v2296
    %2438 = vmatpush1.bf16.msra.mxu0 %v2295
    %2439 = vmatprep.subr.bf16.mxu0 %v2302
    %2440 = vmatpush1.bf16.msra.mxu0 %v2301
    %2441 = vmatprep.subr.bf16.mxu0 %v2308
    %2442 = vmatpush1.bf16.msra.mxu0 %v2307
    %2443 = vmatprep.subr.bf16.mxu0 %v2314
    %2444 = vmatpush1.bf16.msra.mxu0 %v2313
    %2445 = vmatprep.subr.bf16.mxu0 %v2320
    %2446 = vmatpush1.bf16.msra.mxu0 %v2319
    %2447 = vmatprep.subr.bf16.mxu0 %v2326
    %2448 = vmatpush1.bf16.msra.mxu0 %v2325
    %2449 = vmatprep.subr.bf16.mxu0 %v2332
    %2450 = vmatpush1.bf16.msra.mxu0 %v2331
    %2451 = vmatprep.subr.bf16.mxu0 %v2338
    %2452 = vmatpush1.bf16.msra.mxu0 %v2337
    %2453 = vmatprep.subr.bf16.mxu0 %v2344
    %2454 = vmatpush1.bf16.msra.mxu0 %v2343
    %2455 = vmatprep.subr.bf16.mxu0 %v2350
    %2456 = vmatpush1.bf16.msra.mxu0 %v2349
    %2457 = vmatprep.subr.bf16.mxu0 0
    %2458 = vmatpush1.bf16.msra.mxu0 0
    %2459 = vmatprep.subr.bf16.mxu0 0
    %2460 = vmatpush1.bf16.msra.mxu0 0
    %2461 = vmatprep.subr.bf16.mxu0 0
    %2462 = vmatpush1.bf16.msra.mxu0 0
    %2463 = vmatprep.subr.bf16.mxu0 0
    %2464 = vmatpush1.bf16.msra.mxu0 0
    %2465 = vmatprep.mubr.bf16.mxu0 %v2428
    %2466 = vmatmul.mubr.bf16.gmra.mrb[0].mxu0 %v1959
    %v2467 = vpop.f32.mrb[0].mxu0
    %v2468 = vadd.f32 %v2040, %v2467
    %v2469 = vpop.f32.mrb[0].mxu0
    %v2470 = vadd.f32 %v2044, %v2469
    %v2471 = vpop.f32.mrb[0].mxu0
    %v2472 = vadd.f32 %v2040, %v2471
    %v2473 = vpop.f32.mrb[0].mxu0
    %v2474 = vadd.f32 %v2044, %v2473
    %2475 = vmatprep.mubr.bf16.mxu0 %v2431
    %2476 = vmatmul.mubr.bf16.gmra.mrb[0].mxu0 %v1961
    %v2477 = vpop.f32.mrb[0].mxu0
    %v2478 = vadd.f32 %v2040, %v2477
    %v2479 = vpop.f32.mrb[0].mxu0
    %v2480 = vadd.f32 %v2044, %v2479
    %v2481 = vpop.f32.mrb[0].mxu0
    %v2482 = vadd.f32 %v2040, %v2481
    %v2483 = vpop.f32.mrb[0].mxu0
    %v2484 = vadd.f32 %v2044, %v2483
    %2485 = vdwg.mxu0
    %2486 = vmatprep.subr.bf16.mxu0 %v2286
    %2487 = vmatpush1.bf16.msra.mxu0 %v2285
    %2488 = vmatprep.subr.bf16.mxu0 %v2292
    %2489 = vmatpush1.bf16.msra.mxu0 %v2291
    %2490 = vmatprep.subr.bf16.mxu0 %v2298
    %2491 = vmatpush1.bf16.msra.mxu0 %v2297
    %2492 = vmatprep.subr.bf16.mxu0 %v2304
    %2493 = vmatpush1.bf16.msra.mxu0 %v2303
    %2494 = vmatprep.subr.bf16.mxu0 %v2310
    %2495 = vmatpush1.bf16.msra.mxu0 %v2309
    %2496 = vmatprep.subr.bf16.mxu0 %v2316
    %2497 = vmatpush1.bf16.msra.mxu0 %v2315
    %2498 = vmatprep.subr.bf16.mxu0 %v2322
    %2499 = vmatpush1.bf16.msra.mxu0 %v2321
    %2500 = vmatprep.subr.bf16.mxu0 %v2328
    %2501 = vmatpush1.bf16.msra.mxu0 %v2327
    %2502 = vmatprep.subr.bf16.mxu0 %v2334
    %2503 = vmatpush1.bf16.msra.mxu0 %v2333
    %2504 = vmatprep.subr.bf16.mxu0 %v2340
    %2505 = vmatpush1.bf16.msra.mxu0 %v2339
    %2506 = vmatprep.subr.bf16.mxu0 %v2346
    %2507 = vmatpush1.bf16.msra.mxu0 %v2345
    %2508 = vmatprep.subr.bf16.mxu0 %v2352
    %2509 = vmatpush1.bf16.msra.mxu0 %v2351
    %2510 = vmatprep.subr.bf16.mxu0 0
    %2511 = vmatpush1.bf16.msra.mxu0 0
    %2512 = vmatprep.subr.bf16.mxu0 0
    %2513 = vmatpush1.bf16.msra.mxu0 0
    %2514 = vmatprep.subr.bf16.mxu0 0
    %2515 = vmatpush1.bf16.msra.mxu0 0
    %2516 = vmatprep.subr.bf16.mxu0 0
    %2517 = vmatpush1.bf16.msra.mxu0 0
    %2518 = vmatprep.mubr.bf16.mxu0 %v2428
    %2519 = vmatmul.mubr.bf16.gmra.mrb[0].mxu0 %v1959
    %v2520 = vpop.f32.mrb[0].mxu0
    %v2521 = vadd.f32 %v2048, %v2520
    %v2522 = vpop.f32.mrb[0].mxu0
    %v2523 = vadd.f32 %v2052, %v2522
    %v2524 = vpop.f32.mrb[0].mxu0
    %v2525 = vadd.f32 %v2048, %v2524
    %v2526 = vpop.f32.mrb[0].mxu0
    %v2527 = vadd.f32 %v2052, %v2526
    %2528 = vmatprep.mubr.bf16.mxu0 %v2431
    %2529 = vmatmul.mubr.bf16.gmra.mrb[0].mxu0 %v1961
    %v2530 = vpop.f32.mrb[0].mxu0
    %v2531 = vadd.f32 %v2048, %v2530
    %v2532 = vpop.f32.mrb[0].mxu0
    %v2533 = vadd.f32 %v2052, %v2532
    %v2534 = vpop.f32.mrb[0].mxu0
    %v2535 = vadd.f32 %v2048, %v2534
    %v2536 = vpop.f32.mrb[0].mxu0
    %v2537 = vadd.f32 %v2052, %v2536
    %2538 = vdwg.mxu0
    %2539 = vmatprep.subr.bf16.mxu0 %v2288
    %2540 = vmatpush1.bf16.msra.mxu0 %v2287
    %2541 = vmatprep.subr.bf16.mxu0 %v2294
    %2542 = vmatpush1.bf16.msra.mxu0 %v2293
    %2543 = vmatprep.subr.bf16.mxu0 %v2300
    %2544 = vmatpush1.bf16.msra.mxu0 %v2299
    %2545 = vmatprep.subr.bf16.mxu0 %v2306
    %2546 = vmatpush1.bf16.msra.mxu0 %v2305
    %2547 = vmatprep.subr.bf16.mxu0 %v2312
    %2548 = vmatpush1.bf16.msra.mxu0 %v2311
    %2549 = vmatprep.subr.bf16.mxu0 %v2318
    %2550 = vmatpush1.bf16.msra.mxu0 %v2317
    %2551 = vmatprep.subr.bf16.mxu0 %v2324
    %2552 = vmatpush1.bf16.msra.mxu0 %v2323
    %2553 = vmatprep.subr.bf16.mxu0 %v2330
    %2554 = vmatpush1.bf16.msra.mxu0 %v2329
    %2555 = vmatprep.subr.bf16.mxu0 %v2336
    %2556 = vmatpush1.bf16.msra.mxu0 %v2335
    %2557 = vmatprep.subr.bf16.mxu0 %v2342
    %2558 = vmatpush1.bf16.msra.mxu0 %v2341
    %2559 = vmatprep.subr.bf16.mxu0 %v2348
    %2560 = vmatpush1.bf16.msra.mxu0 %v2347
    %2561 = vmatprep.subr.bf16.mxu0 %v2354
    %2562 = vmatpush1.bf16.msra.mxu0 %v2353
    %2563 = vmatprep.subr.bf16.mxu0 0
    %2564 = vmatpush1.bf16.msra.mxu0 0
    %2565 = vmatprep.subr.bf16.mxu0 0
    %2566 = vmatpush1.bf16.msra.mxu0 0
    %2567 = vmatprep.subr.bf16.mxu0 0
    %2568 = vmatpush1.bf16.msra.mxu0 0
    %2569 = vmatprep.subr.bf16.mxu0 0
    %2570 = vmatpush1.bf16.msra.mxu0 0
    %2571 = vmatprep.mubr.bf16.mxu0 %v2428
    %2572 = vmatmul.mubr.bf16.gmra.mrb[0].mxu0 %v1959
    %v2573 = vpop.f32.mrb[0].mxu0
    %v2574 = vadd.f32 %v2056, %v2573
    %v2575 = vpop.f32.mrb[0].mxu0
    %v2576 = vadd.f32 %v2060, %v2575
    %v2577 = vpop.f32.mrb[0].mxu0
    %v2578 = vadd.f32 %v2056, %v2577
    %v2579 = vpop.f32.mrb[0].mxu0
    %v2580 = vadd.f32 %v2060, %v2579
    %2581 = vmatprep.mubr.bf16.mxu0 %v2431
    %2582 = vmatmul.mubr.bf16.gmra.mrb[0].mxu0 %v1961
    %v2583 = vpop.f32.mrb[0].mxu0
    %v2584 = vadd.f32 %v2056, %v2583
    %v2585 = vpop.f32.mrb[0].mxu0
    %v2586 = vadd.f32 %v2060, %v2585
    %v2587 = vpop.f32.mrb[0].mxu0
    %v2588 = vadd.f32 %v2056, %v2587
    %v2589 = vpop.f32.mrb[0].mxu0
    %v2590 = vadd.f32 %v2060, %v2589
    %2591 = vdwg.mxu0
    %v2592 = vmax.f32 %v2468, 0.0
    %v2593 = vmax.f32 %v2470, 0.0
    %v2594 = vmax.f32 %v2521, 0.0
    %v2595 = vmax.f32 %v2523, 0.0
    %v2596 = vmax.f32 %v2574, 0.0
    %v2597 = vmax.f32 %v2576, 0.0
    %v2598 = vmax.f32 %v2472, 0.0
    %v2599 = vmax.f32 %v2474, 0.0
    %v2600 = vmax.f32 %v2525, 0.0
    %v2601 = vmax.f32 %v2527, 0.0
    %v2602 = vmax.f32 %v2578, 0.0
    %v2603 = vmax.f32 %v2580, 0.0
    %v2604 = vmax.f32 %v2478, 0.0
    %v2605 = vmax.f32 %v2480, 0.0
    %v2606 = vmax.f32 %v2531, 0.0
    %v2607 = vmax.f32 %v2533, 0.0
    %v2608 = vmax.f32 %v2584, 0.0
    %v2609 = vmax.f32 %v2586, 0.0
    %v2610 = vmax.f32 %v2482, 0.0
    %v2611 = vmax.f32 %v2484, 0.0
    %v2612 = vmax.f32 %v2535, 0.0
    %v2613 = vmax.f32 %v2537, 0.0
    %v2614 = vmax.f32 %v2588, 0.0
    %v2615 = vmax.f32 %v2590, 0.0
    %v2616 = vpack.c.bf16 %v2598, %v2592
    %v2617 = vpack.c.bf16 %v2599, %v2593
    %v2618 = vpack.c.bf16 %v2600, %v2594
    %v2619 = vpack.c.bf16 %v2601, %v2595
    %v2620 = vpack.c.bf16 %v2602, %v2596
    %v2621 = vpack.c.bf16 %v2603, %v2597
    %v2622 = vpack.c.bf16 %v2610, %v2604
    %v2623 = vpack.c.bf16 %v2611, %v2605
    %v2624 = vpack.c.bf16 %v2612, %v2606
    %v2625 = vpack.c.bf16 %v2613, %v2607
    %v2626 = vpack.c.bf16 %v2614, %v2608
    %v2627 = vpack.c.bf16 %v2615, %v2609
    %v2628 = vld [vmem:[%s10] sm:$0xff]
    %v2629 = vld [vmem:[%s10 + $0x8] sm:$0xff]
    %v2630 = vld [vmem:[%s10 + $0x10] sm:$0xff]
    %v2631 = vld [vmem:[%s10 + $0x18] sm:$0xff]
    %v2632 = vld [vmem:[%s10 + $0x20] sm:$0xff]
    %v2633 = vld [vmem:[%s10 + $0x28] sm:$0xff]
    %v2634 = vld [vmem:[%s10 + $0x30] sm:$0xff]
    %v2635 = vld [vmem:[%s10 + $0x38] sm:$0xff]
    %v2636 = vld [vmem:[%s10 + $0x40] sm:$0xff]
    %v2637 = vld [vmem:[%s10 + $0x48] sm:$0xff]
    %v2638 = vld [vmem:[%s10 + $0x50] sm:$0xff]
    %v2639 = vld [vmem:[%s10 + $0x58] sm:$0xff]
    %v2640 = vld [vmem:[%s10 + $0x60] sm:$0xff]
    %v2641 = vld [vmem:[%s10 + $0x68] sm:$0xff]
    %v2642 = vld [vmem:[%s10 + $0x70] sm:$0xff]
    %v2643 = vld [vmem:[%s10 + $0x78] sm:$0xff]
    %v2644 = vld [vmem:[%s10 + $0x80] sm:$0xff]
    %v2645 = vld [vmem:[%s10 + $0x88] sm:$0xff]
    %v2646 = vld [vmem:[%s10 + $0x90] sm:$0xff]
    %v2647 = vld [vmem:[%s10 + $0x98] sm:$0xff]
    %v2648 = vld [vmem:[%s10 + $0xa0] sm:$0xff]
    %v2649 = vld [vmem:[%s10 + $0xa8] sm:$0xff]
    %v2650 = vld [vmem:[%s10 + $0xb0] sm:$0xff]
    %v2651 = vld [vmem:[%s10 + $0xb8] sm:$0xff]
    %v2652 = vld [vmem:[%s10 + $0xc0] sm:$0xff]
    %v2653 = vld [vmem:[%s10 + $0xc8] sm:$0xff]
    %v2654 = vld [vmem:[%s10 + $0xd0] sm:$0xff]
    %v2655 = vld [vmem:[%s10 + $0xd8] sm:$0xff]
    %v2656 = vld [vmem:[%s10 + $0xe0] sm:$0xff]
    %v2657 = vld [vmem:[%s10 + $0xe8] sm:$0xff]
    %v2658 = vld [vmem:[%s10 + $0xf0] sm:$0xff]
    %v2659 = vld [vmem:[%s10 + $0xf8] sm:$0xff]
    %v2660 = vld [vmem:[%s10 + $0x100] sm:$0xff]
    %v2661 = vld [vmem:[%s10 + $0x108] sm:$0xff]
    %v2662 = vld [vmem:[%s10 + $0x110] sm:$0xff]
    %v2663 = vld [vmem:[%s10 + $0x118] sm:$0xff]
    %v2664 = vld [vmem:[%s10 + $0x120] sm:$0xff]
    %v2665 = vld [vmem:[%s10 + $0x128] sm:$0xff]
    %v2666 = vld [vmem:[%s10 + $0x130] sm:$0xff]
    %v2667 = vld [vmem:[%s10 + $0x138] sm:$0xff]
    %v2668 = vld [vmem:[%s10 + $0x140] sm:$0xff]
    %v2669 = vld [vmem:[%s10 + $0x148] sm:$0xff]
    %v2670 = vld [vmem:[%s10 + $0x150] sm:$0xff]
    %v2671 = vld [vmem:[%s10 + $0x158] sm:$0xff]
    %v2672 = vld [vmem:[%s10 + $0x160] sm:$0xff]
    %v2673 = vld [vmem:[%s10 + $0x168] sm:$0xff]
    %v2674 = vld [vmem:[%s10 + $0x170] sm:$0xff]
    %v2675 = vld [vmem:[%s10 + $0x178] sm:$0xff]
    %v2676 = vld [vmem:[%s10 + $0x180] sm:$0xff]
    %v2677 = vld [vmem:[%s10 + $0x188] sm:$0xff]
    %v2678 = vld [vmem:[%s10 + $0x190] sm:$0xff]
    %v2679 = vld [vmem:[%s10 + $0x198] sm:$0xff]
    %v2680 = vld [vmem:[%s10 + $0x1a0] sm:$0xff]
    %v2681 = vld [vmem:[%s10 + $0x1a8] sm:$0xff]
    %v2682 = vld [vmem:[%s10 + $0x1b0] sm:$0xff]
    %v2683 = vld [vmem:[%s10 + $0x1b8] sm:$0xff]
    %v2684 = vld [vmem:[%s10 + $0x1c0] sm:$0xff]
    %v2685 = vld [vmem:[%s10 + $0x1c8] sm:$0xff]
    %v2686 = vld [vmem:[%s10 + $0x1d0] sm:$0xff]
    %v2687 = vld [vmem:[%s10 + $0x1d8] sm:$0xff]
    %v2688 = vld [vmem:[%s10 + $0x1e0] sm:$0xff]
    %v2689 = vld [vmem:[%s10 + $0x1e8] sm:$0xff]
    %v2690 = vld [vmem:[%s10 + $0x1f0] sm:$0xff]
    %v2691 = vld [vmem:[%s10 + $0x1f8] sm:$0xff]
    %v2692 = vld [vmem:[%s10 + $0x200] sm:$0xff]
    %v2693 = vld [vmem:[%s10 + $0x208] sm:$0xff]
    %v2694 = vld [vmem:[%s10 + $0x210] sm:$0xff]
    %v2695 = vld [vmem:[%s10 + $0x218] sm:$0xff]
    %v2696 = vld [vmem:[%s10 + $0x220] sm:$0xff]
    %v2697 = vld [vmem:[%s10 + $0x228] sm:$0xff]
    %v2698 = vld [vmem:[%s10 + $0x230] sm:$0xff]
    %v2699 = vld [vmem:[%s10 + $0x238] sm:$0xff]
    %v2700 = vld [vmem:[%s10 + $0x240] sm:$0xff]
    %v2701 = vld [vmem:[%s10 + $0x248] sm:$0xff]
    %v2702 = vld [vmem:[%s10 + $0x250] sm:$0xff]
    %v2703 = vld [vmem:[%s10 + $0x258] sm:$0xff]
    %v2704 = vld [vmem:[%s10 + $0x260] sm:$0xff]
    %v2705 = vld [vmem:[%s10 + $0x268] sm:$0xff]
    %v2706 = vld [vmem:[%s10 + $0x270] sm:$0xff]
    %v2707 = vld [vmem:[%s10 + $0x278] sm:$0xff]
    %v2708 = vld [vmem:[%s10 + $0x280] sm:$0xff]
    %v2709 = vld [vmem:[%s10 + $0x288] sm:$0xff]
    %v2710 = vld [vmem:[%s10 + $0x290] sm:$0xff]
    %v2711 = vld [vmem:[%s10 + $0x298] sm:$0xff]
    %v2712 = vld [vmem:[%s10 + $0x2a0] sm:$0xff]
    %v2713 = vld [vmem:[%s10 + $0x2a8] sm:$0xff]
    %v2714 = vld [vmem:[%s10 + $0x2b0] sm:$0xff]
    %v2715 = vld [vmem:[%s10 + $0x2b8] sm:$0xff]
    %v2716 = vld [vmem:[%s10 + $0x2c0] sm:$0xff]
    %v2717 = vld [vmem:[%s10 + $0x2c8] sm:$0xff]
    %v2718 = vld [vmem:[%s10 + $0x2d0] sm:$0xff]
    %v2719 = vld [vmem:[%s10 + $0x2d8] sm:$0xff]
    %v2720 = vld [vmem:[%s10 + $0x2e0] sm:$0xff]
    %v2721 = vld [vmem:[%s10 + $0x2e8] sm:$0xff]
    %v2722 = vld [vmem:[%s10 + $0x2f0] sm:$0xff]
    %v2723 = vld [vmem:[%s10 + $0x2f8] sm:$0xff]
    %v2724 = vld [vmem:[%s11] sm:$0x3]
    %v2726 = vlaneseq
    %v2727 = vshrl.u32 %v2726, 7
    %v2728 = vsub.s32 0, %v2727
    %v2729 = vrot.slane %v2724, %v2728
    %v2730 = vlaneseq
    %v2731 = vshrl.u32 %v2730, 7
    %v2732 = vsub.s32 1, %v2731
    %v2733 = vrot.slane %v2724, %v2732
    %v2832 = vunpack.c.l.b16 %v2628
    %v2833 = vunpack.c.h.b16 %v2628
    %v2834 = vunpack.c.l.b16 %v2629
    %v2835 = vunpack.c.h.b16 %v2629
    %v2836 = vunpack.c.l.b16 %v2630
    %v2837 = vunpack.c.h.b16 %v2630
    %v2838 = vunpack.c.l.b16 %v2631
    %v2839 = vunpack.c.h.b16 %v2631
    %v2840 = vunpack.c.l.b16 %v2632
    %v2841 = vunpack.c.h.b16 %v2632
    %v2842 = vunpack.c.l.b16 %v2633
    %v2843 = vunpack.c.h.b16 %v2633
    %v2844 = vunpack.c.l.b16 %v2634
    %v2845 = vunpack.c.h.b16 %v2634
    %v2846 = vunpack.c.l.b16 %v2635
    %v2847 = vunpack.c.h.b16 %v2635
    %v2848 = vunpack.c.l.b16 %v2636
    %v2849 = vunpack.c.h.b16 %v2636
    %v2850 = vunpack.c.l.b16 %v2637
    %v2851 = vunpack.c.h.b16 %v2637
    %v2852 = vunpack.c.l.b16 %v2638
    %v2853 = vunpack.c.h.b16 %v2638
    %v2854 = vunpack.c.l.b16 %v2639
    %v2855 = vunpack.c.h.b16 %v2639
    %v2856 = vunpack.c.l.b16 %v2640
    %v2857 = vunpack.c.h.b16 %v2640
    %v2858 = vunpack.c.l.b16 %v2641
    %v2859 = vunpack.c.h.b16 %v2641
    %v2860 = vunpack.c.l.b16 %v2642
    %v2861 = vunpack.c.h.b16 %v2642
    %v2862 = vunpack.c.l.b16 %v2643
    %v2863 = vunpack.c.h.b16 %v2643
    %v2864 = vunpack.c.l.b16 %v2644
    %v2865 = vunpack.c.h.b16 %v2644
    %v2866 = vunpack.c.l.b16 %v2645
    %v2867 = vunpack.c.h.b16 %v2645
    %v2868 = vunpack.c.l.b16 %v2646
    %v2869 = vunpack.c.h.b16 %v2646
    %v2870 = vunpack.c.l.b16 %v2647
    %v2871 = vunpack.c.h.b16 %v2647
    %v2872 = vunpack.c.l.b16 %v2648
    %v2873 = vunpack.c.h.b16 %v2648
    %v2874 = vunpack.c.l.b16 %v2649
    %v2875 = vunpack.c.h.b16 %v2649
    %v2876 = vunpack.c.l.b16 %v2650
    %v2877 = vunpack.c.h.b16 %v2650
    %v2878 = vunpack.c.l.b16 %v2651
    %v2879 = vunpack.c.h.b16 %v2651
    %v2880 = vunpack.c.l.b16 %v2652
    %v2881 = vunpack.c.h.b16 %v2652
    %v2882 = vunpack.c.l.b16 %v2653
    %v2883 = vunpack.c.h.b16 %v2653
    %v2884 = vunpack.c.l.b16 %v2654
    %v2885 = vunpack.c.h.b16 %v2654
    %v2886 = vunpack.c.l.b16 %v2655
    %v2887 = vunpack.c.h.b16 %v2655
    %v2888 = vunpack.c.l.b16 %v2656
    %v2889 = vunpack.c.h.b16 %v2656
    %v2890 = vunpack.c.l.b16 %v2657
    %v2891 = vunpack.c.h.b16 %v2657
    %v2892 = vunpack.c.l.b16 %v2658
    %v2893 = vunpack.c.h.b16 %v2658
    %v2894 = vunpack.c.l.b16 %v2659
    %v2895 = vunpack.c.h.b16 %v2659
    %v2896 = vunpack.c.l.b16 %v2660
    %v2897 = vunpack.c.h.b16 %v2660
    %v2898 = vunpack.c.l.b16 %v2661
    %v2899 = vunpack.c.h.b16 %v2661
    %v2900 = vunpack.c.l.b16 %v2662
    %v2901 = vunpack.c.h.b16 %v2662
    %v2902 = vunpack.c.l.b16 %v2663
    %v2903 = vunpack.c.h.b16 %v2663
    %v2904 = vunpack.c.l.b16 %v2664
    %v2905 = vunpack.c.h.b16 %v2664
    %v2906 = vunpack.c.l.b16 %v2665
    %v2907 = vunpack.c.h.b16 %v2665
    %v2908 = vunpack.c.l.b16 %v2666
    %v2909 = vunpack.c.h.b16 %v2666
    %v2910 = vunpack.c.l.b16 %v2667
    %v2911 = vunpack.c.h.b16 %v2667
    %v2912 = vunpack.c.l.b16 %v2668
    %v2913 = vunpack.c.h.b16 %v2668
    %v2914 = vunpack.c.l.b16 %v2669
    %v2915 = vunpack.c.h.b16 %v2669
    %v2916 = vunpack.c.l.b16 %v2670
    %v2917 = vunpack.c.h.b16 %v2670
    %v2918 = vunpack.c.l.b16 %v2671
    %v2919 = vunpack.c.h.b16 %v2671
    %v2920 = vunpack.c.l.b16 %v2672
    %v2921 = vunpack.c.h.b16 %v2672
    %v2922 = vunpack.c.l.b16 %v2673
    %v2923 = vunpack.c.h.b16 %v2673
    %v2924 = vunpack.c.l.b16 %v2674
    %v2925 = vunpack.c.h.b16 %v2674
    %v2926 = vunpack.c.l.b16 %v2675
    %v2927 = vunpack.c.h.b16 %v2675
    %v2928 = vunpack.c.l.b16 %v2676
    %v2929 = vunpack.c.h.b16 %v2676
    %v2930 = vunpack.c.l.b16 %v2677
    %v2931 = vunpack.c.h.b16 %v2677
    %v2932 = vunpack.c.l.b16 %v2678
    %v2933 = vunpack.c.h.b16 %v2678
    %v2934 = vunpack.c.l.b16 %v2679
    %v2935 = vunpack.c.h.b16 %v2679
    %v2936 = vunpack.c.l.b16 %v2680
    %v2937 = vunpack.c.h.b16 %v2680
    %v2938 = vunpack.c.l.b16 %v2681
    %v2939 = vunpack.c.h.b16 %v2681
    %v2940 = vunpack.c.l.b16 %v2682
    %v2941 = vunpack.c.h.b16 %v2682
    %v2942 = vunpack.c.l.b16 %v2683
    %v2943 = vunpack.c.h.b16 %v2683
    %v2944 = vunpack.c.l.b16 %v2684
    %v2945 = vunpack.c.h.b16 %v2684
    %v2946 = vunpack.c.l.b16 %v2685
    %v2947 = vunpack.c.h.b16 %v2685
    %v2948 = vunpack.c.l.b16 %v2686
    %v2949 = vunpack.c.h.b16 %v2686
    %v2950 = vunpack.c.l.b16 %v2687
    %v2951 = vunpack.c.h.b16 %v2687
    %v2952 = vunpack.c.l.b16 %v2688
    %v2953 = vunpack.c.h.b16 %v2688
    %v2954 = vunpack.c.l.b16 %v2689
    %v2955 = vunpack.c.h.b16 %v2689
    %v2956 = vunpack.c.l.b16 %v2690
    %v2957 = vunpack.c.h.b16 %v2690
    %v2958 = vunpack.c.l.b16 %v2691
    %v2959 = vunpack.c.h.b16 %v2691
    %v2960 = vunpack.c.l.b16 %v2692
    %v2961 = vunpack.c.h.b16 %v2692
    %v2962 = vunpack.c.l.b16 %v2693
    %v2963 = vunpack.c.h.b16 %v2693
    %v2964 = vunpack.c.l.b16 %v2694
    %v2965 = vunpack.c.h.b16 %v2694
    %v2966 = vunpack.c.l.b16 %v2695
    %v2967 = vunpack.c.h.b16 %v2695
    %v2968 = vunpack.c.l.b16 %v2696
    %v2969 = vunpack.c.h.b16 %v2696
    %v2970 = vunpack.c.l.b16 %v2697
    %v2971 = vunpack.c.h.b16 %v2697
    %v2972 = vunpack.c.l.b16 %v2698
    %v2973 = vunpack.c.h.b16 %v2698
    %v2974 = vunpack.c.l.b16 %v2699
    %v2975 = vunpack.c.h.b16 %v2699
    %v2976 = vunpack.c.l.b16 %v2700
    %v2977 = vunpack.c.h.b16 %v2700
    %v2978 = vunpack.c.l.b16 %v2701
    %v2979 = vunpack.c.h.b16 %v2701
    %v2980 = vunpack.c.l.b16 %v2702
    %v2981 = vunpack.c.h.b16 %v2702
    %v2982 = vunpack.c.l.b16 %v2703
    %v2983 = vunpack.c.h.b16 %v2703
    %v2984 = vunpack.c.l.b16 %v2704
    %v2985 = vunpack.c.h.b16 %v2704
    %v2986 = vunpack.c.l.b16 %v2705
    %v2987 = vunpack.c.h.b16 %v2705
    %v2988 = vunpack.c.l.b16 %v2706
    %v2989 = vunpack.c.h.b16 %v2706
    %v2990 = vunpack.c.l.b16 %v2707
    %v2991 = vunpack.c.h.b16 %v2707
    %v2992 = vunpack.c.l.b16 %v2708
    %v2993 = vunpack.c.h.b16 %v2708
    %v2994 = vunpack.c.l.b16 %v2709
    %v2995 = vunpack.c.h.b16 %v2709
    %v2996 = vunpack.c.l.b16 %v2710
    %v2997 = vunpack.c.h.b16 %v2710
    %v2998 = vunpack.c.l.b16 %v2711
    %v2999 = vunpack.c.h.b16 %v2711
    %v3000 = vunpack.c.l.b16 %v2712
    %v3001 = vunpack.c.h.b16 %v2712
    %v3002 = vunpack.c.l.b16 %v2713
    %v3003 = vunpack.c.h.b16 %v2713
    %v3004 = vunpack.c.l.b16 %v2714
    %v3005 = vunpack.c.h.b16 %v2714
    %v3006 = vunpack.c.l.b16 %v2715
    %v3007 = vunpack.c.h.b16 %v2715
    %v3008 = vunpack.c.l.b16 %v2716
    %v3009 = vunpack.c.h.b16 %v2716
    %v3010 = vunpack.c.l.b16 %v2717
    %v3011 = vunpack.c.h.b16 %v2717
    %v3012 = vunpack.c.l.b16 %v2718
    %v3013 = vunpack.c.h.b16 %v2718
    %v3014 = vunpack.c.l.b16 %v2719
    %v3015 = vunpack.c.h.b16 %v2719
    %v3016 = vunpack.c.l.b16 %v2720
    %v3017 = vunpack.c.h.b16 %v2720
    %v3018 = vunpack.c.l.b16 %v2721
    %v3019 = vunpack.c.h.b16 %v2721
    %v3020 = vunpack.c.l.b16 %v2722
    %v3021 = vunpack.c.h.b16 %v2722
    %v3022 = vunpack.c.l.b16 %v2723
    %v3023 = vunpack.c.h.b16 %v2723
    %v3024 = vpack.c.b16 %v2834, %v2832
    %v3025 = vpack.c.b16 %v2835, %v2833
    %v3026 = vpack.c.b16 %v2838, %v2836
    %v3027 = vpack.c.b16 %v2839, %v2837
    %v3028 = vpack.c.b16 %v2842, %v2840
    %v3029 = vpack.c.b16 %v2843, %v2841
    %v3030 = vpack.c.b16 %v2846, %v2844
    %v3031 = vpack.c.b16 %v2847, %v2845
    %v3032 = vpack.c.b16 %v2850, %v2848
    %v3033 = vpack.c.b16 %v2851, %v2849
    %v3034 = vpack.c.b16 %v2854, %v2852
    %v3035 = vpack.c.b16 %v2855, %v2853
    %v3036 = vpack.c.b16 %v2858, %v2856
    %v3037 = vpack.c.b16 %v2859, %v2857
    %v3038 = vpack.c.b16 %v2862, %v2860
    %v3039 = vpack.c.b16 %v2863, %v2861
    %v3040 = vpack.c.b16 %v2866, %v2864
    %v3041 = vpack.c.b16 %v2867, %v2865
    %v3042 = vpack.c.b16 %v2870, %v2868
    %v3043 = vpack.c.b16 %v2871, %v2869
    %v3044 = vpack.c.b16 %v2874, %v2872
    %v3045 = vpack.c.b16 %v2875, %v2873
    %v3046 = vpack.c.b16 %v2878, %v2876
    %v3047 = vpack.c.b16 %v2879, %v2877
    %v3048 = vpack.c.b16 %v2882, %v2880
    %v3049 = vpack.c.b16 %v2883, %v2881
    %v3050 = vpack.c.b16 %v2886, %v2884
    %v3051 = vpack.c.b16 %v2887, %v2885
    %v3052 = vpack.c.b16 %v2890, %v2888
    %v3053 = vpack.c.b16 %v2891, %v2889
    %v3054 = vpack.c.b16 %v2894, %v2892
    %v3055 = vpack.c.b16 %v2895, %v2893
    %v3056 = vpack.c.b16 %v2898, %v2896
    %v3057 = vpack.c.b16 %v2899, %v2897
    %v3058 = vpack.c.b16 %v2902, %v2900
    %v3059 = vpack.c.b16 %v2903, %v2901
    %v3060 = vpack.c.b16 %v2906, %v2904
    %v3061 = vpack.c.b16 %v2907, %v2905
    %v3062 = vpack.c.b16 %v2910, %v2908
    %v3063 = vpack.c.b16 %v2911, %v2909
    %v3064 = vpack.c.b16 %v2914, %v2912
    %v3065 = vpack.c.b16 %v2915, %v2913
    %v3066 = vpack.c.b16 %v2918, %v2916
    %v3067 = vpack.c.b16 %v2919, %v2917
    %v3068 = vpack.c.b16 %v2922, %v2920
    %v3069 = vpack.c.b16 %v2923, %v2921
    %v3070 = vpack.c.b16 %v2926, %v2924
    %v3071 = vpack.c.b16 %v2927, %v2925
    %v3072 = vpack.c.b16 %v2930, %v2928
    %v3073 = vpack.c.b16 %v2931, %v2929
    %v3074 = vpack.c.b16 %v2934, %v2932
    %v3075 = vpack.c.b16 %v2935, %v2933
    %v3076 = vpack.c.b16 %v2938, %v2936
    %v3077 = vpack.c.b16 %v2939, %v2937
    %v3078 = vpack.c.b16 %v2942, %v2940
    %v3079 = vpack.c.b16 %v2943, %v2941
    %v3080 = vpack.c.b16 %v2946, %v2944
    %v3081 = vpack.c.b16 %v2947, %v2945
    %v3082 = vpack.c.b16 %v2950, %v2948
    %v3083 = vpack.c.b16 %v2951, %v2949
    %v3084 = vpack.c.b16 %v2954, %v2952
    %v3085 = vpack.c.b16 %v2955, %v2953
    %v3086 = vpack.c.b16 %v2958, %v2956
    %v3087 = vpack.c.b16 %v2959, %v2957
    %v3088 = vpack.c.b16 %v2962, %v2960
    %v3089 = vpack.c.b16 %v2963, %v2961
    %v3090 = vpack.c.b16 %v2966, %v2964
    %v3091 = vpack.c.b16 %v2967, %v2965
    %v3092 = vpack.c.b16 %v2970, %v2968
    %v3093 = vpack.c.b16 %v2971, %v2969
    %v3094 = vpack.c.b16 %v2974, %v2972
    %v3095 = vpack.c.b16 %v2975, %v2973
    %v3096 = vpack.c.b16 %v2978, %v2976
    %v3097 = vpack.c.b16 %v2979, %v2977
    %v3098 = vpack.c.b16 %v2982, %v2980
    %v3099 = vpack.c.b16 %v2983, %v2981
    %v3100 = vpack.c.b16 %v2986, %v2984
    %v3101 = vpack.c.b16 %v2987, %v2985
    %v3102 = vpack.c.b16 %v2990, %v2988
    %v3103 = vpack.c.b16 %v2991, %v2989
    %v3104 = vpack.c.b16 %v2994, %v2992
    %v3105 = vpack.c.b16 %v2995, %v2993
    %v3106 = vpack.c.b16 %v2998, %v2996
    %v3107 = vpack.c.b16 %v2999, %v2997
    %v3108 = vpack.c.b16 %v3002, %v3000
    %v3109 = vpack.c.b16 %v3003, %v3001
    %v3110 = vpack.c.b16 %v3006, %v3004
    %v3111 = vpack.c.b16 %v3007, %v3005
    %v3112 = vpack.c.b16 %v3010, %v3008
    %v3113 = vpack.c.b16 %v3011, %v3009
    %v3114 = vpack.c.b16 %v3014, %v3012
    %v3115 = vpack.c.b16 %v3015, %v3013
    %v3116 = vpack.c.b16 %v3018, %v3016
    %v3117 = vpack.c.b16 %v3019, %v3017
    %v3118 = vpack.c.b16 %v3022, %v3020
    %v3119 = vpack.c.b16 %v3023, %v3021
    %3216 = vmatprep.subr.bf16.mxu0 %v3025
    %3217 = vmatpush1.bf16.msra.mxu0 %v3024
    %3218 = vmatprep.subr.bf16.mxu0 %v3027
    %3219 = vmatpush1.bf16.msra.mxu0 %v3026
    %3220 = vmatprep.subr.bf16.mxu0 %v3029
    %3221 = vmatpush1.bf16.msra.mxu0 %v3028
    %3222 = vmatprep.subr.bf16.mxu0 %v3031
    %3223 = vmatpush1.bf16.msra.mxu0 %v3030
    %3224 = vmatprep.subr.bf16.mxu0 %v3033
    %3225 = vmatpush1.bf16.msra.mxu0 %v3032
    %3226 = vmatprep.subr.bf16.mxu0 %v3035
    %3227 = vmatpush1.bf16.msra.mxu0 %v3034
    %3228 = vmatprep.subr.bf16.mxu0 %v3037
    %3229 = vmatpush1.bf16.msra.mxu0 %v3036
    %3230 = vmatprep.subr.bf16.mxu0 %v3039
    %3231 = vmatpush1.bf16.msra.mxu0 %v3038
    %3232 = vmatprep.subr.bf16.mxu0 %v3041
    %3233 = vmatpush1.bf16.msra.mxu0 %v3040
    %3234 = vmatprep.subr.bf16.mxu0 %v3043
    %3235 = vmatpush1.bf16.msra.mxu0 %v3042
    %3236 = vmatprep.subr.bf16.mxu0 %v3045
    %3237 = vmatpush1.bf16.msra.mxu0 %v3044
    %3238 = vmatprep.subr.bf16.mxu0 %v3047
    %3239 = vmatpush1.bf16.msra.mxu0 %v3046
    %3240 = vmatprep.subr.bf16.mxu0 %v3049
    %3241 = vmatpush1.bf16.msra.mxu0 %v3048
    %3242 = vmatprep.subr.bf16.mxu0 %v3051
    %3243 = vmatpush1.bf16.msra.mxu0 %v3050
    %3244 = vmatprep.subr.bf16.mxu0 %v3053
    %3245 = vmatpush1.bf16.msra.mxu0 %v3052
    %3246 = vmatprep.subr.bf16.mxu0 %v3055
    %3247 = vmatpush1.bf16.msra.mxu0 %v3054
    %3248 = vmatprep.mubr.bf16.mxu0 %v2617
    %3249 = vmatmul.mubr.bf16.gmra.mrb[0].mxu0 %v2616
    %v3250 = vpop.f32.mrb[0].mxu0
    %v3251 = vadd.f32 %v2729, %v3250
    %v3252 = vpop.f32.mrb[0].mxu0
    %v3253 = vadd.f32 %v2733, %v3252
    %v3254 = vpop.f32.mrb[0].mxu0
    %v3255 = vadd.f32 %v2729, %v3254
    %v3256 = vpop.f32.mrb[0].mxu0
    %v3257 = vadd.f32 %v2733, %v3256
    %3258 = vmatprep.mubr.bf16.mxu0 %v2623
    %3259 = vmatmul.mubr.bf16.gmra.mrb[0].mxu0 %v2622
    %v3260 = vpop.f32.mrb[0].mxu0
    %v3261 = vadd.f32 %v2729, %v3260
    %v3262 = vpop.f32.mrb[0].mxu0
    %v3263 = vadd.f32 %v2733, %v3262
    %v3264 = vpop.f32.mrb[0].mxu0
    %v3265 = vadd.f32 %v2729, %v3264
    %v3266 = vpop.f32.mrb[0].mxu0
    %v3267 = vadd.f32 %v2733, %v3266
    %3268 = vdwg.mxu0
    %3269 = vmatprep.subr.bf16.mxu0 %v3057
    %3270 = vmatpush1.bf16.msra.mxu0 %v3056
    %3271 = vmatprep.subr.bf16.mxu0 %v3059
    %3272 = vmatpush1.bf16.msra.mxu0 %v3058
    %3273 = vmatprep.subr.bf16.mxu0 %v3061
    %3274 = vmatpush1.bf16.msra.mxu0 %v3060
    %3275 = vmatprep.subr.bf16.mxu0 %v3063
    %3276 = vmatpush1.bf16.msra.mxu0 %v3062
    %3277 = vmatprep.subr.bf16.mxu0 %v3065
    %3278 = vmatpush1.bf16.msra.mxu0 %v3064
    %3279 = vmatprep.subr.bf16.mxu0 %v3067
    %3280 = vmatpush1.bf16.msra.mxu0 %v3066
    %3281 = vmatprep.subr.bf16.mxu0 %v3069
    %3282 = vmatpush1.bf16.msra.mxu0 %v3068
    %3283 = vmatprep.subr.bf16.mxu0 %v3071
    %3284 = vmatpush1.bf16.msra.mxu0 %v3070
    %3285 = vmatprep.subr.bf16.mxu0 %v3073
    %3286 = vmatpush1.bf16.msra.mxu0 %v3072
    %3287 = vmatprep.subr.bf16.mxu0 %v3075
    %3288 = vmatpush1.bf16.msra.mxu0 %v3074
    %3289 = vmatprep.subr.bf16.mxu0 %v3077
    %3290 = vmatpush1.bf16.msra.mxu0 %v3076
    %3291 = vmatprep.subr.bf16.mxu0 %v3079
    %3292 = vmatpush1.bf16.msra.mxu0 %v3078
    %3293 = vmatprep.subr.bf16.mxu0 %v3081
    %3294 = vmatpush1.bf16.msra.mxu0 %v3080
    %3295 = vmatprep.subr.bf16.mxu0 %v3083
    %3296 = vmatpush1.bf16.msra.mxu0 %v3082
    %3297 = vmatprep.subr.bf16.mxu0 %v3085
    %3298 = vmatpush1.bf16.msra.mxu0 %v3084
    %3299 = vmatprep.subr.bf16.mxu0 %v3087
    %3300 = vmatpush1.bf16.msra.mxu0 %v3086
    %3301 = vmatprep.mubr.bf16.mxu0 %v2619
    %3302 = vmatmul.mubr.bf16.gmra.mrb[0].mxu0 %v2618
    %v3303 = vpop.f32.mrb[0].mxu0
    %v3304 = vadd.f32 %v3251, %v3303
    %v3305 = vpop.f32.mrb[0].mxu0
    %v3306 = vadd.f32 %v3253, %v3305
    %v3307 = vpop.f32.mrb[0].mxu0
    %v3308 = vadd.f32 %v3255, %v3307
    %v3309 = vpop.f32.mrb[0].mxu0
    %v3310 = vadd.f32 %v3257, %v3309
    %3311 = vmatprep.mubr.bf16.mxu0 %v2625
    %3312 = vmatmul.mubr.bf16.gmra.mrb[0].mxu0 %v2624
    %v3313 = vpop.f32.mrb[0].mxu0
    %v3314 = vadd.f32 %v3261, %v3313
    %v3315 = vpop.f32.mrb[0].mxu0
    %v3316 = vadd.f32 %v3263, %v3315
    %v3317 = vpop.f32.mrb[0].mxu0
    %v3318 = vadd.f32 %v3265, %v3317
    %v3319 = vpop.f32.mrb[0].mxu0
    %v3320 = vadd.f32 %v3267, %v3319
    %3321 = vdwg.mxu0
    %3322 = vmatprep.subr.bf16.mxu0 %v3089
    %3323 = vmatpush1.bf16.msra.mxu0 %v3088
    %3324 = vmatprep.subr.bf16.mxu0 %v3091
    %3325 = vmatpush1.bf16.msra.mxu0 %v3090
    %3326 = vmatprep.subr.bf16.mxu0 %v3093
    %3327 = vmatpush1.bf16.msra.mxu0 %v3092
    %3328 = vmatprep.subr.bf16.mxu0 %v3095
    %3329 = vmatpush1.bf16.msra.mxu0 %v3094
    %3330 = vmatprep.subr.bf16.mxu0 %v3097
    %3331 = vmatpush1.bf16.msra.mxu0 %v3096
    %3332 = vmatprep.subr.bf16.mxu0 %v3099
    %3333 = vmatpush1.bf16.msra.mxu0 %v3098
    %3334 = vmatprep.subr.bf16.mxu0 %v3101
    %3335 = vmatpush1.bf16.msra.mxu0 %v3100
    %3336 = vmatprep.subr.bf16.mxu0 %v3103
    %3337 = vmatpush1.bf16.msra.mxu0 %v3102
    %3338 = vmatprep.subr.bf16.mxu0 %v3105
    %3339 = vmatpush1.bf16.msra.mxu0 %v3104
    %3340 = vmatprep.subr.bf16.mxu0 %v3107
    %3341 = vmatpush1.bf16.msra.mxu0 %v3106
    %3342 = vmatprep.subr.bf16.mxu0 %v3109
    %3343 = vmatpush1.bf16.msra.mxu0 %v3108
    %3344 = vmatprep.subr.bf16.mxu0 %v3111
    %3345 = vmatpush1.bf16.msra.mxu0 %v3110
    %3346 = vmatprep.subr.bf16.mxu0 %v3113
    %3347 = vmatpush1.bf16.msra.mxu0 %v3112
    %3348 = vmatprep.subr.bf16.mxu0 %v3115
    %3349 = vmatpush1.bf16.msra.mxu0 %v3114
    %3350 = vmatprep.subr.bf16.mxu0 %v3117
    %3351 = vmatpush1.bf16.msra.mxu0 %v3116
    %3352 = vmatprep.subr.bf16.mxu0 %v3119
    %3353 = vmatpush1.bf16.msra.mxu0 %v3118
    %3354 = vmatprep.mubr.bf16.mxu0 %v2621
    %3355 = vmatmul.mubr.bf16.gmra.mrb[0].mxu0 %v2620
    %v3356 = vpop.f32.mrb[0].mxu0
    %v3357 = vadd.f32 %v3304, %v3356
    %v3358 = vpop.f32.mrb[0].mxu0
    %v3359 = vadd.f32 %v3306, %v3358
    %v3360 = vpop.f32.mrb[0].mxu0
    %v3361 = vadd.f32 %v3308, %v3360
    %v3362 = vpop.f32.mrb[0].mxu0
    %v3363 = vadd.f32 %v3310, %v3362
    %3364 = vmatprep.mubr.bf16.mxu0 %v2627
    %3365 = vmatmul.mubr.bf16.gmra.mrb[0].mxu0 %v2626
    %v3366 = vpop.f32.mrb[0].mxu0
    %v3367 = vadd.f32 %v3314, %v3366
    %v3368 = vpop.f32.mrb[0].mxu0
    %v3369 = vadd.f32 %v3316, %v3368
    %v3370 = vpop.f32.mrb[0].mxu0
    %v3371 = vadd.f32 %v3318, %v3370
    %v3372 = vpop.f32.mrb[0].mxu0
    %v3373 = vadd.f32 %v3320, %v3372
    %3374 = vdwg.mxu0
    %v3375 = vadd.f32 %v1839, %v3357
    %v3376 = vadd.f32 %v1840, %v3359
    %v3377 = vadd.f32 %v1841, %v3361
    %v3378 = vadd.f32 %v1842, %v3363
    %v3379 = vadd.f32 %v1843, %v3367
    %v3380 = vadd.f32 %v1844, %v3369
    %v3381 = vadd.f32 %v1845, %v3371
    %v3382 = vadd.f32 %v1846, %v3373
    %3383 = vst [vmem:[#allocation2] sm:$0xff] %v3375
    %3384 = vst.msk [vmem:[#allocation2 + $0x8] sm:$0xff] %vm53, %v3376
    %3385 = vst [vmem:[#allocation2 + $0x10] sm:$0xff] %v3377
    %3386 = vst.msk [vmem:[#allocation2 + $0x18] sm:$0xff] %vm53, %v3378
    %3387 = vst [vmem:[#allocation2 + $0x20] sm:$0xff] %v3379
    %3388 = vst.msk [vmem:[#allocation2 + $0x28] sm:$0xff] %vm53, %v3380
    %3389 = vst [vmem:[#allocation2 + $0x30] sm:$0xff] %v3381
    %3390 = vst.msk [vmem:[#allocation2 + $0x38] sm:$0xff] %vm53, %v3382
    // Predicated region
    $region50: #{tpu_custom_call.1} parent=1 // pred_check
      _
    $region51: #{tpu_custom_call.1} parent=1 // pred_check_branch
      %3392 = sbr.rel (0) target = $region53
    $region52: #{tpu_custom_call.1} parent=1 // pred_region
      %s3394 = ssub.s32 1024, 1024
      %3395 = vsyncadd [#allocation3], %s3394
      %s3396 = sshll.u32 [#allocation2], 4
      %s3397 = int_to_ptr.vmem [resolvable:$true] %s3396
      %3402 = dma.vmem_to_hbm [thread:$0]  %s3397, 1024, %s12, [#allocation3], 256, 256, 16
    $region53: #{tpu_custom_call.1} parent=1 // pred_fallthru
      _
    // Predicated region
    $region54: #{tpu_custom_call.1} parent=1 // pred_check
      _
    $region55: #{tpu_custom_call.1} parent=1 // pred_check_branch
      %3404 = sbr.rel (0) target = $region57
    $region56: #{tpu_custom_call.1} parent=1 // pred_region
      %3405 = dma.done [#allocation3], 1024
    $region57: #{tpu_custom_call.1} parent=1 // pred_fallthru
      _
    %3406 = vsyncpa [#allocation3], 1

</llo_original>
